<compile_context>
chip_gen: v6e
topology: v6e:2x2x1
jax: 0.10.0
libtpu: 0.0.40
codegen_flags: <defaults>
</compile_context>

<pallas_src>
import functools
import math

import jax
import jax.numpy as jnp
from jax.experimental import pallas as pl
from jax.experimental.pallas import tpu as pltpu


def _local_attn_kernel(x_ref, wqkv_ref, bqkv_ref, wout_ref, bout_ref, bias_ref,
                       o_ref, *, heads):
    """Block-diagonal masked dense attention over G windows stacked on sublanes.

    x_ref:    (GN, C)         bf16  -- G windows * N tokens, lane-dense C
    wqkv_ref: (C, 3C)         bf16  (1/sqrt(head_dim) folded into the Q columns)
    bqkv_ref: (1, 3C)         f32
    wout_ref: (C, C)          bf16
    bout_ref: (1, C)          f32
    bias_ref: (heads, GN, GN) f32   -- rel-pos bias on the block diagonal, -1e9 off
    o_ref:    (GN, C)         bf16
    """
    GN, C = x_ref.shape
    hd = C // heads

    # Fused QKV projection: one (GN, C) x (C, 3C) MXU matmul; keep the result in
    # bf16 (all consumers are bf16 MXU operands) to halve spill/reload traffic.
    qkv = (jnp.dot(x_ref[...], wqkv_ref[...], preferred_element_type=jnp.float32)
           + bqkv_ref[...]).astype(jnp.bfloat16)                      # (GN, 3C)

    # TODO(synk): for production head counts (8-16) switch this static unroll to
    # lax.fori_loop(..., unroll=True) over pl.ds slices to bound live ranges.
    head_outs = []
    for h in range(heads):          # static unroll; all slices on 128-lane boundaries
        lo = h * hd
        q_h = qkv[:, lo:lo + hd]
        k_h = qkv[:, C + lo:C + lo + hd]
        v_h = qkv[:, 2 * C + lo:2 * C + lo + hd]

        # One dense (GN, hd) x (hd, GN) MXU matmul covering all G windows; the
        # cross-window entries are killed by the -1e9 mask baked into bias_ref.
        s = jax.lax.dot_general(q_h, k_h, (((1,), (1,)), ((), ())),
                                preferred_element_type=jnp.float32)   # (GN, GN)
        s = s + bias_ref[h]

        # Lane-dense max-stabilized softmax in f32; normalization folded into the
        # probabilities via the EUP approximate reciprocal (separate slot, ~free).
        m = jnp.max(s, axis=-1, keepdims=True)
        e = jnp.exp(s - m)
        r = pl.reciprocal(jnp.sum(e, axis=-1, keepdims=True), approx=True)
        p = (e * r).astype(jnp.bfloat16)

        head_outs.append(
            jnp.dot(p, v_h, preferred_element_type=jnp.float32).astype(jnp.bfloat16))

    # Concatenate per-head outputs on 128-lane boundaries (free layout write) and
    # run a single deep-K (GN, C) x (C, C) output projection.
    out_h = jnp.concatenate(head_outs, axis=-1)                       # (GN, C) bf16
    y = jnp.dot(out_h, wout_ref[...],
                preferred_element_type=jnp.float32) + bout_ref[...]   # (GN, C) f32
    o_ref[...] = y.astype(o_ref.dtype)        # lane-dense bf16 store (C % 128 == 0)


def prepare_local_attention_params(w_qkv, b_qkv, w_out, b_out, heads):
    """Fold the 1/sqrt(head_dim) scale into the Q columns and cast weights to bf16."""
    C = w_qkv.shape[0]
    head_dim = C // heads
    scale = head_dim ** (-0.5)
    col_scale = jnp.concatenate(
        [jnp.full((C,), scale, jnp.float32), jnp.ones((2 * C,), jnp.float32)])
    w_qkv_p = (w_qkv.astype(jnp.float32) * col_scale[None, :]).astype(jnp.bfloat16)
    b_qkv_p = (b_qkv.astype(jnp.float32) * col_scale).reshape(1, 3 * C)
    w_out_p = w_out.astype(jnp.bfloat16)
    b_out_p = b_out.astype(jnp.float32).reshape(1, C)
    return w_qkv_p, b_qkv_p, w_out_p, b_out_p


def make_relative_position_bias(table, Wh, Ww, heads):
    """table: ((2Wh-1)*(2Ww-1), heads) -> bias (heads, N, N), matching torch."""
    coords_h = jnp.arange(Wh)
    coords_w = jnp.arange(Ww)
    coords = jnp.stack(jnp.meshgrid(coords_h, coords_w, indexing='ij'))  # (2,Wh,Ww)
    coords_flat = coords.reshape(2, -1)                                  # (2, N)
    rel = coords_flat[:, :, None] - coords_flat[:, None, :]              # (2, N, N)
    rel = rel.transpose(1, 2, 0)                                         # (N, N, 2)
    rel = rel.at[:, :, 0].add(Wh - 1)
    rel = rel.at[:, :, 1].add(Ww - 1)
    rel = rel.at[:, :, 0].multiply(2 * Ww - 1)
    rel_index = rel.sum(-1)                                              # (N, N)
    N = Wh * Ww
    bias = table[rel_index.reshape(-1)].reshape(N, N, heads)
    return bias.transpose(2, 0, 1).astype(jnp.float32)                   # (heads,N,N)


def make_block_diag_bias(bias, group, neg=-1e9):
    """(heads, N, N) rel-pos bias -> (heads, G*N, G*N) block-diag bias + mask.

    Large finite negative (not -inf) off the block diagonal so exp() underflows
    to 0 without producing NaNs.
    """
    heads, N, _ = bias.shape
    block_mask = jnp.kron(jnp.eye(group, dtype=jnp.float32),
                          jnp.ones((N, N), jnp.float32))                 # (GN, GN)
    tiled = jnp.tile(bias, (1, group, group))                            # (heads,GN,GN)
    return jnp.where(block_mask[None] > 0.0, tiled,
                     jnp.float32(neg)).astype(jnp.float32)


def local_attention_pallas(x_total, w_qkv, b_qkv, w_out, b_out, bias, *,
                           heads, group=None):
    """x_total: (BW, N, C); prepared params (bf16 weights, f32 biases);
    bias: (heads, N, N) f32.  Returns (BW, N, C) bf16."""
    BW, N, C = x_total.shape
    assert C % heads == 0 and C % 128 == 0, "lane-dense C (multiple of 128) required"
    head_dim = C // heads

    if group is None:
        # Target GN = 256 rows/step: fills the 256-wide MXU on v6e/v7x, keeps the
        # softmax lane-dense, and amortizes the ~0.35us/step grid overhead; on
        # v5e 128-row tiles are already MXU-native so 256 simply halves the grid.
        group = max(1, 256 // N)
    GN = group * N
    assert GN % 8 == 0, "G*N must be sublane aligned"
    # TODO(synk): N not a power-of-two-friendly size (e.g. 7x7 windows, N=49)
    # needs a padded-token + masked-softmax variant of this kernel.

    # Pad the window batch so it splits into groups of `group` windows.
    pad = (-BW) % group
    x_bf = x_total.astype(jnp.bfloat16)            # bf16 activation I/O: halves HBM traffic
    if pad:
        x_bf = jnp.pad(x_bf, ((0, pad), (0, 0), (0, 0)))
    BWp = BW + pad
    x_flat = x_bf.reshape(BWp * N, C)              # leading-dim merge only: free

    bias_bd = make_block_diag_bias(bias, group)    # (heads, GN, GN)

    kernel = functools.partial(_local_attn_kernel, heads=heads)
    steps = (BWp * N) // GN

    flops_per_step = (2 * GN * C * (3 * C)                   # QKV projection
                      + 2 * 2 * heads * GN * GN * head_dim   # dense scores + PV
                      + 2 * GN * C * C)                      # output projection
    cost = pl.CostEstimate(
        flops=int(steps * flops_per_step),
        transcendentals=int(steps * heads * GN * GN),
        bytes_accessed=int(2 * 2 * BWp * N * C                    # bf16 x in + y out
                           + 2 * (w_qkv.size + w_out.size)        # bf16 weights
                           + 4 * (b_qkv.size + b_out.size + bias_bd.size)))

    out = pl.pallas_call(
        kernel,
        out_shape=jax.ShapeDtypeStruct((BWp * N, C), jnp.bfloat16),
        grid=(steps,),
        in_specs=[
            pl.BlockSpec((GN, C), lambda i: (i, 0)),               # x tokens (bf16)
            # TODO(synk): on v7x (64 MiB VMEM) single-buffer the grid-invariant
            # operands below with pipeline_mode=pl.Buffered(1) at production C.
            pl.BlockSpec((C, 3 * C), lambda i: (0, 0)),            # W_qkv (bf16, scale folded)
            pl.BlockSpec((1, 3 * C), lambda i: (0, 0)),            # b_qkv (f32)
            pl.BlockSpec((C, C), lambda i: (0, 0)),                # W_out (bf16)
            pl.BlockSpec((1, C), lambda i: (0, 0)),                # b_out (f32)
            pl.BlockSpec((heads, GN, GN), lambda i: (0, 0, 0)),    # bias + block mask (f32)
        ],
        out_specs=pl.BlockSpec((GN, C), lambda i: (i, 0)),
        compiler_params=pltpu.CompilerParams(
            dimension_semantics=("parallel",)),
        cost_estimate=cost,
    )(x_flat, w_qkv, b_qkv, w_out, b_out, bias_bd)

    out = out.reshape(BWp, N, C)
    return out[:BW] if pad else out


# ---- NHWC window partition glue (C stays in the minor dim: no lane transposes) ----

def window_partition_nhwc(x_nhwc, Wh, Ww):
    """x: (B, H, W, C) -> (B*r1*r2, Wh*Ww, C); matches the module's rearrange."""
    B, H, W, C = x_nhwc.shape
    r1, r2 = H // Wh, W // Ww
    x = x_nhwc.reshape(B, r1, Wh, r2, Ww, C)
    x = x.transpose(0, 1, 3, 2, 4, 5)              # major-dim only permute (C stays last)
    return x.reshape(B * r1 * r2, Wh * Ww, C), (B, H, W, C, r1, r2)


def window_unpartition_nhwc(xw, meta, Wh, Ww):
    B, H, W, C, r1, r2 = meta
    x = xw.reshape(B, r1, r2, Wh, Ww, C)
    x = x.transpose(0, 1, 3, 2, 4, 5)              # (B, r1, Wh, r2, Ww, C)
    return x.reshape(B, H, W, C)


def local_attention_reference(x_total, w_qkv, b_qkv, w_out, b_out, bias, heads):
    """Pure-JAX reference mirroring the kernel's precision (bf16 MXU / f32 acc)."""
    BW, N, C = x_total.shape
    hd = C // heads
    qkv = jnp.einsum('bnc,cd->bnd', x_total.astype(jnp.bfloat16), w_qkv,
                     preferred_element_type=jnp.float32) + b_qkv.reshape(1, 1, 3 * C)
    q, k, v = qkv[..., :C], qkv[..., C:2 * C], qkv[..., 2 * C:]
    def split(t):
        return t.reshape(BW, N, heads, hd).transpose(0, 2, 1, 3)
    qh, kh, vh = split(q), split(k), split(v)
    attn = jnp.einsum('bhmc,bhnc->bhmn', qh.astype(jnp.bfloat16), kh.astype(jnp.bfloat16),
                      preferred_element_type=jnp.float32) + bias[None]
    attn = jax.nn.softmax(attn, axis=-1)
    out = jnp.einsum('bhmn,bhnc->bhmc', attn.astype(jnp.bfloat16), vh.astype(jnp.bfloat16),
                     preferred_element_type=jnp.float32)
    out = out.transpose(0, 2, 1, 3).reshape(BW, N, C)
    return jnp.einsum('bnc,cd->bnd', out.astype(jnp.bfloat16), w_out,
                      preferred_element_type=jnp.float32) + b_out.reshape(1, 1, C)


if __name__ == "__main__":
    # Small DAT-like shapes: dim is a multiple of 128 so window tokens are lane-dense.
    B, dim, H, W = 2, 256, 16, 16
    heads = 2                      # head_dim = 128 -> all head slices on vreg boundaries
    Wh = Ww = 4
    N = Wh * Ww                    # 16 tokens / window, 32 windows, group=16 -> grid of 2

    key = jax.random.PRNGKey(0)
    kx, k1, k2, k3, k4, k5 = jax.random.split(key, 6)

    x = jax.random.normal(kx, (B, dim, H, W), dtype=jnp.float32)   # module-style NCHW input

    # deterministic parameter init (nn.Linear-style, synthetic values)
    w_qkv = jax.random.normal(k1, (dim, 3 * dim), dtype=jnp.float32) * (1.0 / math.sqrt(dim))
    b_qkv = jax.random.normal(k2, (3 * dim,), dtype=jnp.float32) * 0.01
    w_out = jax.random.normal(k3, (dim, dim), dtype=jnp.float32) * (1.0 / math.sqrt(dim))
    b_out = jax.random.normal(k4, (dim,), dtype=jnp.float32) * 0.01
    # trunc_normal(std=0.01) approximated by clipped normal
    rpb_table = jnp.clip(
        jax.random.normal(k5, ((2 * Wh - 1) * (2 * Ww - 1), heads), dtype=jnp.float32) * 0.01,
        -0.02, 0.02)

    bias = make_relative_position_bias(rpb_table, Wh, Ww, heads)     # (heads, N, N)

    # one-time weight transform: fold 1/sqrt(head_dim) into Q columns, cast to bf16
    w_qkv_p, b_qkv_p, w_out_p, b_out_p = prepare_local_attention_params(
        w_qkv, b_qkv, w_out, b_out, heads)

    # TODO(synk): in a full TransformerStage port keep activations channels-last
    # end-to-end; this one NCHW->NHWC transpose stands in for that convention.
    x_nhwc = jnp.transpose(x, (0, 2, 3, 1))
    x_total, meta = window_partition_nhwc(x_nhwc, Wh, Ww)             # (B*nW, N, C)

    out_windows = local_attention_pallas(
        x_total, w_qkv_p, b_qkv_p, w_out_p, b_out_p, bias, heads=heads)  # bf16
    out_windows = jax.block_until_ready(out_windows)

    # verify against a precision-matched pure-JAX reference
    # (tolerance covers bf16 I/O rounding and the approx EUP reciprocal)
    ref = local_attention_reference(x_total, w_qkv_p, b_qkv_p, w_out_p, b_out_p, bias, heads)
    assert jnp.allclose(out_windows.astype(jnp.float32), ref, atol=5e-2, rtol=5e-2), \
        "mismatch vs reference"

    # windowed tokens -> NHWC -> NCHW (glue); module forward returns (x, None, None)
    y_nhwc = window_unpartition_nhwc(out_windows.astype(jnp.float32), meta, Wh, Ww)
    y = jnp.transpose(y_nhwc, (0, 3, 1, 2))
    y = jax.block_until_ready(y)
    assert y.shape == (B, dim, H, W)

    print("KERNEL_OK")
</pallas_src>

<mosaic_0001>
module attributes {stable_mosaic.version = 11 : i64} {
  func.func @_local_attn_kernel(%arg0: i32, %arg1: memref<256x256xbf16, #tpu.memory_space<vmem>>, %arg2: memref<256x768xbf16, #tpu.memory_space<vmem>>, %arg3: memref<1x768xf32, #tpu.memory_space<vmem>>, %arg4: memref<256x256xbf16, #tpu.memory_space<vmem>>, %arg5: memref<1x256xf32, #tpu.memory_space<vmem>>, %arg6: memref<2x256x256xf32, #tpu.memory_space<vmem>>, %arg7: memref<256x256xbf16, #tpu.memory_space<vmem>>) attributes {dimension_semantics = [#tpu.dimension_semantics<parallel>], iteration_bounds = array<i64: 2>, scalar_prefetch = 0 : i64, scratch_operands = 0 : i64, tpu.core_type = #tpu.core_type<tc>, window_params = [{transform_indices = @transform_0, window_bounds = array<i64: 256, 256>}, {pipeline_mode = #tpu.pipeline_mode<synchronous>, transform_indices = @transform_1, window_bounds = array<i64: 256, 768>}, {pipeline_mode = #tpu.pipeline_mode<synchronous>, transform_indices = @transform_2, window_bounds = array<i64: 1, 768>}, {pipeline_mode = #tpu.pipeline_mode<synchronous>, transform_indices = @transform_3, window_bounds = array<i64: 256, 256>}, {pipeline_mode = #tpu.pipeline_mode<synchronous>, transform_indices = @transform_4, window_bounds = array<i64: 1, 256>}, {pipeline_mode = #tpu.pipeline_mode<synchronous>, transform_indices = @transform_5, window_bounds = array<i64: 2, 256, 256>}, {transform_indices = @transform_6, window_bounds = array<i64: 256, 256>}]} {
    %c0 = arith.constant 0 : index
    %c0_0 = arith.constant 0 : index
    %0 = vector.load %arg1[%c0, %c0_0] : memref<256x256xbf16, #tpu.memory_space<vmem>>, vector<256x256xbf16>
    %c0_1 = arith.constant 0 : index
    %c0_2 = arith.constant 0 : index
    %1 = vector.load %arg2[%c0_1, %c0_2] : memref<256x768xbf16, #tpu.memory_space<vmem>>, vector<256x768xbf16>
    %cst = arith.constant dense<0.000000e+00> : vector<256x768xf32>
    %2 = tpu.matmul %0, %1, %cst {dimension_numbers = #tpu.dot_dimension_numbers<[1], [0], [0], [1], [0, 0, 1, 1], [], []>} : vector<256x256xbf16>, vector<256x768xbf16>, vector<256x768xf32> -> vector<256x768xf32>
    %c0_3 = arith.constant 0 : index
    %c0_4 = arith.constant 0 : index
    %3 = vector.load %arg3[%c0_3, %c0_4] : memref<1x768xf32, #tpu.memory_space<vmem>>, vector<1x768xf32>
    %4 = vector.broadcast %3 : vector<1x768xf32> to vector<256x768xf32>
    %5 = arith.addf %2, %4 : vector<256x768xf32>
    %6 = arith.truncf %5 : vector<256x768xf32> to vector<256x768xbf16>
    %7 = vector.extract_strided_slice %6 {offsets = [0, 0], sizes = [256, 128], strides = [1, 1]} : vector<256x768xbf16> to vector<256x128xbf16>
    %8 = vector.extract_strided_slice %6 {offsets = [0, 256], sizes = [256, 128], strides = [1, 1]} : vector<256x768xbf16> to vector<256x128xbf16>
    %9 = vector.extract_strided_slice %6 {offsets = [0, 512], sizes = [256, 128], strides = [1, 1]} : vector<256x768xbf16> to vector<256x128xbf16>
    %cst_5 = arith.constant dense<0.000000e+00> : vector<256x256xf32>
    %10 = tpu.matmul %7, %8, %cst_5 {dimension_numbers = #tpu.dot_dimension_numbers<[1], [1], [0], [0], [0, 0, 1, 0], [], []>} : vector<256x128xbf16>, vector<256x128xbf16>, vector<256x256xf32> -> vector<256x256xf32>
    %c0_6 = arith.constant 0 : index
    %c0_7 = arith.constant 0 : index
    %c0_8 = arith.constant 0 : index
    %11 = vector.load %arg6[%c0_6, %c0_7, %c0_8] : memref<2x256x256xf32, #tpu.memory_space<vmem>>, vector<1x256x256xf32>
    %12 = vector.shape_cast %11 : vector<1x256x256xf32> to vector<256x256xf32>
    %13 = arith.addf %10, %12 : vector<256x256xf32>
    %cst_9 = arith.constant dense<0xFF800000> : vector<256xf32>
    %14 = vector.multi_reduction <maximumf>, %13, %cst_9 [1] : vector<256x256xf32> to vector<256xf32>
    %15 = vector.shape_cast %14 : vector<256xf32> to vector<256x1xf32>
    %16 = vector.broadcast %15 : vector<256x1xf32> to vector<256x256xf32>
    %17 = arith.subf %13, %16 : vector<256x256xf32>
    %18 = math.exp %17 : vector<256x256xf32>
    %cst_10 = arith.constant dense<0.000000e+00> : vector<256xf32>
    %19 = vector.multi_reduction <add>, %18, %cst_10 [1] : vector<256x256xf32> to vector<256xf32>
    %20 = vector.shape_cast %19 : vector<256xf32> to vector<256x1xf32>
    %21 = tpu.reciprocal %20 {approx = true} : vector<256x1xf32> -> vector<256x1xf32>
    %22 = vector.broadcast %21 : vector<256x1xf32> to vector<256x256xf32>
    %23 = arith.mulf %18, %22 : vector<256x256xf32>
    %24 = arith.truncf %23 : vector<256x256xf32> to vector<256x256xbf16>
    %cst_11 = arith.constant dense<0.000000e+00> : vector<256x128xf32>
    %25 = tpu.matmul %24, %9, %cst_11 {dimension_numbers = #tpu.dot_dimension_numbers<[1], [0], [0], [1], [0, 0, 1, 1], [], []>} : vector<256x256xbf16>, vector<256x128xbf16>, vector<256x128xf32> -> vector<256x128xf32>
    %26 = arith.truncf %25 : vector<256x128xf32> to vector<256x128xbf16>
    %27 = vector.extract_strided_slice %6 {offsets = [0, 128], sizes = [256, 128], strides = [1, 1]} : vector<256x768xbf16> to vector<256x128xbf16>
    %28 = vector.extract_strided_slice %6 {offsets = [0, 384], sizes = [256, 128], strides = [1, 1]} : vector<256x768xbf16> to vector<256x128xbf16>
    %29 = vector.extract_strided_slice %6 {offsets = [0, 640], sizes = [256, 128], strides = [1, 1]} : vector<256x768xbf16> to vector<256x128xbf16>
    %cst_12 = arith.constant dense<0.000000e+00> : vector<256x256xf32>
    %30 = tpu.matmul %27, %28, %cst_12 {dimension_numbers = #tpu.dot_dimension_numbers<[1], [1], [0], [0], [0, 0, 1, 0], [], []>} : vector<256x128xbf16>, vector<256x128xbf16>, vector<256x256xf32> -> vector<256x256xf32>
    %c1 = arith.constant 1 : index
    %c0_13 = arith.constant 0 : index
    %c0_14 = arith.constant 0 : index
    %31 = vector.load %arg6[%c1, %c0_13, %c0_14] : memref<2x256x256xf32, #tpu.memory_space<vmem>>, vector<1x256x256xf32>
    %32 = vector.shape_cast %31 : vector<1x256x256xf32> to vector<256x256xf32>
    %33 = arith.addf %30, %32 : vector<256x256xf32>
    %cst_15 = arith.constant dense<0xFF800000> : vector<256xf32>
    %34 = vector.multi_reduction <maximumf>, %33, %cst_15 [1] : vector<256x256xf32> to vector<256xf32>
    %35 = vector.shape_cast %34 : vector<256xf32> to vector<256x1xf32>
    %36 = vector.broadcast %35 : vector<256x1xf32> to vector<256x256xf32>
    %37 = arith.subf %33, %36 : vector<256x256xf32>
    %38 = math.exp %37 : vector<256x256xf32>
    %cst_16 = arith.constant dense<0.000000e+00> : vector<256xf32>
    %39 = vector.multi_reduction <add>, %38, %cst_16 [1] : vector<256x256xf32> to vector<256xf32>
    %40 = vector.shape_cast %39 : vector<256xf32> to vector<256x1xf32>
    %41 = tpu.reciprocal %40 {approx = true} : vector<256x1xf32> -> vector<256x1xf32>
    %42 = vector.broadcast %41 : vector<256x1xf32> to vector<256x256xf32>
    %43 = arith.mulf %38, %42 : vector<256x256xf32>
    %44 = arith.truncf %43 : vector<256x256xf32> to vector<256x256xbf16>
    %cst_17 = arith.constant dense<0.000000e+00> : vector<256x128xf32>
    %45 = tpu.matmul %44, %29, %cst_17 {dimension_numbers = #tpu.dot_dimension_numbers<[1], [0], [0], [1], [0, 0, 1, 1], [], []>} : vector<256x256xbf16>, vector<256x128xbf16>, vector<256x128xf32> -> vector<256x128xf32>
    %46 = arith.truncf %45 : vector<256x128xf32> to vector<256x128xbf16>
    %47 = tpu.concatenate %26, %46 in 1 : vector<256x128xbf16>, vector<256x128xbf16> -> vector<256x256xbf16>
    %c0_18 = arith.constant 0 : index
    %c0_19 = arith.constant 0 : index
    %48 = vector.load %arg4[%c0_18, %c0_19] : memref<256x256xbf16, #tpu.memory_space<vmem>>, vector<256x256xbf16>
    %cst_20 = arith.constant dense<0.000000e+00> : vector<256x256xf32>
    %49 = tpu.matmul %47, %48, %cst_20 {dimension_numbers = #tpu.dot_dimension_numbers<[1], [0], [0], [1], [0, 0, 1, 1], [], []>} : vector<256x256xbf16>, vector<256x256xbf16>, vector<256x256xf32> -> vector<256x256xf32>
    %c0_21 = arith.constant 0 : index
    %c0_22 = arith.constant 0 : index
    %50 = vector.load %arg5[%c0_21, %c0_22] : memref<1x256xf32, #tpu.memory_space<vmem>>, vector<1x256xf32>
    %51 = vector.broadcast %50 : vector<1x256xf32> to vector<256x256xf32>
    %52 = arith.addf %49, %51 : vector<256x256xf32>
    %53 = arith.truncf %52 : vector<256x256xf32> to vector<256x256xbf16>
    %c0_23 = arith.constant 0 : index
    %c0_24 = arith.constant 0 : index
    %54 = vector.load %arg7[%c0_23, %c0_24] : memref<256x256xbf16, #tpu.memory_space<vmem>>, vector<256x256xbf16>
    tpu.vector_store %arg7[%c0_23, %c0_24], %53 {strides = array<i32>} : memref<256x256xbf16, #tpu.memory_space<vmem>>, vector<256x256xbf16>,
    return
  }
  func.func @transform_0(%arg0: i32) -> (i32, i32) {
    %c0_i32 = arith.constant 0 : i32
    %c0_i32_0 = arith.constant 0 : i32
    return %arg0, %c0_i32 : i32, i32
  }
  func.func @transform_1(%arg0: i32) -> (i32, i32) {
    %c0_i32 = arith.constant 0 : i32
    %c0_i32_0 = arith.constant 0 : i32
    %c0_i32_1 = arith.constant 0 : i32
    return %c0_i32, %c0_i32_0 : i32, i32
  }
  func.func @transform_2(%arg0: i32) -> (i32, i32) {
    %c0_i32 = arith.constant 0 : i32
    %c0_i32_0 = arith.constant 0 : i32
    %c0_i32_1 = arith.constant 0 : i32
    return %c0_i32, %c0_i32_0 : i32, i32
  }
  func.func @transform_3(%arg0: i32) -> (i32, i32) {
    %c0_i32 = arith.constant 0 : i32
    %c0_i32_0 = arith.constant 0 : i32
    %c0_i32_1 = arith.constant 0 : i32
    return %c0_i32, %c0_i32_0 : i32, i32
  }
  func.func @transform_4(%arg0: i32) -> (i32, i32) {
    %c0_i32 = arith.constant 0 : i32
    %c0_i32_0 = arith.constant 0 : i32
    %c0_i32_1 = arith.constant 0 : i32
    return %c0_i32, %c0_i32_0 : i32, i32
  }
  func.func @transform_5(%arg0: i32) -> (i32, i32, i32) {
    %c0_i32 = arith.constant 0 : i32
    %c0_i32_0 = arith.constant 0 : i32
    %c0_i32_1 = arith.constant 0 : i32
    %c0_i32_2 = arith.constant 0 : i32
    return %c0_i32, %c0_i32_0, %c0_i32_1 : i32, i32, i32
  }
  func.func @transform_6(%arg0: i32) -> (i32, i32) {
    %c0_i32 = arith.constant 0 : i32
    %c0_i32_0 = arith.constant 0 : i32
    return %arg0, %c0_i32 : i32, i32
  }
}

</mosaic_0001>

<llo_original>
// kernel: tpu_custom_call.1
$region0: #{tpu_custom_call.1}
  #allocation0 [shape = 'u32[]', space=smem, size = 0x4, offset = 0x4, fixed_abs, tag = 'smem constant byte address 0x4 - core index']
  #allocation1 [shape = 'u32[144,128]{1,0:T(1,128)}', space=vmem, size = 0x12000, scoped, tag = 'internal scratch']
  %s0 = inlined_call_operand.hbm [shape: bf16[512,256], index: 0, kind: input, shape index: {}]
  %s1 = inlined_call_operand.hbm [shape: bf16[256,768], index: 1, kind: input, shape index: {}]
  %s2 = inlined_call_operand.hbm [shape: f32[1,768], index: 2, kind: input, shape index: {}]
  %s3 = inlined_call_operand.hbm [shape: bf16[256,256], index: 3, kind: input, shape index: {}]
  %s4 = inlined_call_operand.vmem [shape: f32[1,256], index: 4, kind: input, shape index: {}]
  %s5 = inlined_call_operand.hbm [shape: f32[2,256,256], index: 5, kind: input, shape index: {}]
  %s6 = inlined_call_operand.hbm [shape: bf16[512,256], index: 6, kind: output, shape index: {}]
  %s7 = sld [smem:[#allocation0]]
  $region77: #{tpu_custom_call.1} parent=0
    _
  %s9 = ssub.s32 1, %s7
  %s10 = scalar_select 0, %s9, %s7
  $region1: #{tpu_custom_call.1} parent=0
    #allocation2 [shape = 'u8[262144]{0}', space=vmem, size = 0x40000, scoped, tag = 'input window, operand 0']
    #allocation3 [shape = 's32[2]{0}', space=sflag, size = 0x8, scoped, tag = 'scoped memory for tpu_custom_call.1']
    #allocation4 [shape = 's32[2]{0}', space=sflag, size = 0x8, scoped, tag = 'scoped memory for tpu_custom_call.1']
    #allocation5 [shape = 'u8[393216]{0}', space=vmem, size = 0x60000, scoped, tag = 'input window, operand 1, single buffered']
    #allocation6 [shape = 's32[1]{0}', space=sflag, size = 0x4, scoped, tag = 'scoped memory for tpu_custom_call.1']
    #allocation7 [shape = 'u8[3072]{0}', space=vmem, size = 0xc00, scoped, tag = 'input window, operand 2, single buffered']
    #allocation8 [shape = 'u8[131072]{0}', space=vmem, size = 0x20000, scoped, tag = 'input window, operand 3, single buffered']
    #allocation9 [shape = 's32[1]{0}', space=sflag, size = 0x4, scoped, tag = 'scoped memory for tpu_custom_call.1']
    #allocation10 [shape = 'u8[524288]{0}', space=vmem, size = 0x80000, scoped, tag = 'input window, operand 5, single buffered']
    #allocation11 [shape = 'u8[262144]{0}', space=vmem, size = 0x40000, scoped, tag = 'output window, operand 0']
    %11 = vsyncpa [#allocation3], 0
    %s12 = scalar_lea.sflag [#allocation3], 1
    %13 = vsyncpa %s12, 0
    %14 = vsyncpa [#allocation6], 0
    %15 = vsyncpa [#allocation9], 0
    %16 = vsyncpa [#allocation4], 0
    %s17 = scalar_lea.sflag [#allocation4], 1
    %18 = vsyncpa %s17, 0
    loop: start=0, step=1, limit=4
    $region2: #{tpu_custom_call.1} parent=1 // loop_pre_header
      _
    $region3: #{tpu_custom_call.1} parent=1 // loop_header
      %s20 = sphi 0, %s24
      %p21 = scmp.ge.s32.totalorder %s20, 4
      %s30 = sphi 0, %s32
      %s33 = sphi 0, %s30
      %s34 = sphi 0, %s33
      %s50 = sphi 0, %s34
      %s54 = sphi 0, %s54
      %s56 = sphi 0, %s54
      %s57 = sphi 0, %s56
      %s71 = sphi 0, %s57
      %s75 = sphi 0, %s75
      %s77 = sphi 0, %s75
      %s78 = sphi 0, %s77
      %s92 = sphi 0, %s78
      %s96 = sphi 0, %s96
      %s98 = sphi 0, %s96
      %s99 = sphi 0, %s98
      %s113 = sphi 0, %s99
      %s117 = sphi 0, %s117
      %s119 = sphi 0, %s117
      %s120 = sphi 0, %s119
      %s134 = sphi 0, %s120
      %s138 = sphi 0, %s138
      %s140 = sphi 0, %s138
      %s141 = sphi 0, %s140
      %s155 = sphi 0, %s141
      %s161 = sphi 0, %s163
      %s164 = sphi 0, %s161
      %s165 = sphi 0, %s164
      %s181 = sphi 0, %s165
    $region4: #{tpu_custom_call.1} parent=1 // loop_header_branch
      %23 = sbr.rel (%p21) target = $region8
    $region5: #{tpu_custom_call.1} parent=1 // loop_body
      %s25 = ssub.s32 %s20, 1
      %s26 = ssub.s32 %s20, 2
      %s27 = sadd.s32 %s20, 1
      %s28 = ssub.s32 %s20, %s27
      %p29 = scmp.eq.s32.totalorder %s28, 0
      %s31 = sadd.s32 %s30, 1
      %s32 = scalar_select %p29, %s30, %s31
      %p35 = pneg %p29
      %p36 = scmp.eq.s32.totalorder %s20, 1
      %p37 = por %p35, %p36
      %p38 = scmp.ne.s32.totalorder %s30, %s33
      %p39 = scmp.eq.s32.totalorder %s20, 0
      %p40 = por %p38, %p39
      %p41 = scmp.ne.s32.totalorder %s30, %s33
      %p42 = scmp.eq.s32.totalorder %s25, 1
      %p43 = por %p41, %p42
      %p44 = scmp.ne.s32.totalorder %s33, %s34
      %p45 = scmp.eq.s32.totalorder %s25, 0
      %p46 = por %p44, %p45
      %p47 = scmp.ne.s32.totalorder %s33, %s34
      %p48 = scmp.eq.s32.totalorder %s26, 1
      %p49 = por %p47, %p48
      %p51 = scmp.ne.s32.totalorder %s34, %s50
      %p52 = scmp.eq.s32.totalorder %s26, 0
      %p53 = por %p51, %p52
      %s55 = sadd.s32 %s54, 1
      %p58 = scmp.eq.s32.totalorder %s20, 1
      %p59 = scmp.ne.s32.totalorder %s54, %s56
      %p60 = scmp.eq.s32.totalorder %s20, 0
      %p61 = por %p59, %p60
      %p62 = scmp.ne.s32.totalorder %s54, %s56
      %p63 = scmp.eq.s32.totalorder %s25, 1
      %p64 = por %p62, %p63
      %p65 = scmp.ne.s32.totalorder %s56, %s57
      %p66 = scmp.eq.s32.totalorder %s25, 0
      %p67 = por %p65, %p66
      %p68 = scmp.ne.s32.totalorder %s56, %s57
      %p69 = scmp.eq.s32.totalorder %s26, 1
      %p70 = por %p68, %p69
      %p72 = scmp.ne.s32.totalorder %s57, %s71
      %p73 = scmp.eq.s32.totalorder %s26, 0
      %p74 = por %p72, %p73
      %s76 = sadd.s32 %s75, 1
      %p79 = scmp.eq.s32.totalorder %s20, 1
      %p80 = scmp.ne.s32.totalorder %s75, %s77
      %p81 = scmp.eq.s32.totalorder %s20, 0
      %p82 = por %p80, %p81
      %p83 = scmp.ne.s32.totalorder %s75, %s77
      %p84 = scmp.eq.s32.totalorder %s25, 1
      %p85 = por %p83, %p84
      %p86 = scmp.ne.s32.totalorder %s77, %s78
      %p87 = scmp.eq.s32.totalorder %s25, 0
      %p88 = por %p86, %p87
      %p89 = scmp.ne.s32.totalorder %s77, %s78
      %p90 = scmp.eq.s32.totalorder %s26, 1
      %p91 = por %p89, %p90
      %p93 = scmp.ne.s32.totalorder %s78, %s92
      %p94 = scmp.eq.s32.totalorder %s26, 0
      %p95 = por %p93, %p94
      %s97 = sadd.s32 %s96, 1
      %p100 = scmp.eq.s32.totalorder %s20, 1
      %p101 = scmp.ne.s32.totalorder %s96, %s98
      %p102 = scmp.eq.s32.totalorder %s20, 0
      %p103 = por %p101, %p102
      %p104 = scmp.ne.s32.totalorder %s96, %s98
      %p105 = scmp.eq.s32.totalorder %s25, 1
      %p106 = por %p104, %p105
      %p107 = scmp.ne.s32.totalorder %s98, %s99
      %p108 = scmp.eq.s32.totalorder %s25, 0
      %p109 = por %p107, %p108
      %p110 = scmp.ne.s32.totalorder %s98, %s99
      %p111 = scmp.eq.s32.totalorder %s26, 1
      %p112 = por %p110, %p111
      %p114 = scmp.ne.s32.totalorder %s99, %s113
      %p115 = scmp.eq.s32.totalorder %s26, 0
      %p116 = por %p114, %p115
      %s118 = sadd.s32 %s117, 1
      %p121 = scmp.eq.s32.totalorder %s20, 1
      %p122 = scmp.ne.s32.totalorder %s117, %s119
      %p123 = scmp.eq.s32.totalorder %s20, 0
      %p124 = por %p122, %p123
      %p125 = scmp.ne.s32.totalorder %s117, %s119
      %p126 = scmp.eq.s32.totalorder %s25, 1
      %p127 = por %p125, %p126
      %p128 = scmp.ne.s32.totalorder %s119, %s120
      %p129 = scmp.eq.s32.totalorder %s25, 0
      %p130 = por %p128, %p129
      %p131 = scmp.ne.s32.totalorder %s119, %s120
      %p132 = scmp.eq.s32.totalorder %s26, 1
      %p133 = por %p131, %p132
      %p135 = scmp.ne.s32.totalorder %s120, %s134
      %p136 = scmp.eq.s32.totalorder %s26, 0
      %p137 = por %p135, %p136
      %s139 = sadd.s32 %s138, 1
      %p142 = scmp.eq.s32.totalorder %s20, 1
      %p143 = scmp.ne.s32.totalorder %s138, %s140
      %p144 = scmp.eq.s32.totalorder %s20, 0
      %p145 = por %p143, %p144
      %p146 = scmp.ne.s32.totalorder %s138, %s140
      %p147 = scmp.eq.s32.totalorder %s25, 1
      %p148 = por %p146, %p147
      %p149 = scmp.ne.s32.totalorder %s140, %s141
      %p150 = scmp.eq.s32.totalorder %s25, 0
      %p151 = por %p149, %p150
      %p152 = scmp.ne.s32.totalorder %s140, %s141
      %p153 = scmp.eq.s32.totalorder %s26, 1
      %p154 = por %p152, %p153
      %p156 = scmp.ne.s32.totalorder %s141, %s155
      %p157 = scmp.eq.s32.totalorder %s26, 0
      %p158 = por %p156, %p157
      %s159 = ssub.s32 %s20, %s27
      %p160 = scmp.eq.s32.totalorder %s159, 0
      %s162 = sadd.s32 %s161, 1
      %s163 = scalar_select %p160, %s161, %s162
      %p166 = pneg %p160
      %p167 = scmp.eq.s32.totalorder %s20, 1
      %p168 = por %p166, %p167
      %p169 = scmp.ne.s32.totalorder %s161, %s164
      %p170 = scmp.eq.s32.totalorder %s20, 0
      %p171 = por %p169, %p170
      %p172 = scmp.ne.s32.totalorder %s161, %s164
      %p173 = scmp.eq.s32.totalorder %s25, 1
      %p174 = por %p172, %p173
      %p175 = scmp.ne.s32.totalorder %s164, %s165
      %p176 = scmp.eq.s32.totalorder %s25, 0
      %p177 = por %p175, %p176
      %p178 = scmp.ne.s32.totalorder %s164, %s165
      %p179 = scmp.eq.s32.totalorder %s26, 1
      %p180 = por %p178, %p179
      %p182 = scmp.ne.s32.totalorder %s165, %s181
      %p183 = scmp.eq.s32.totalorder %s26, 0
      %p184 = por %p182, %p183
      %p185 = scmp.le.s32.totalorder 1, %s20
      %p186 = scmp.lt.s32.totalorder %s20, 3
      %p187 = pnand %p185, %p186
      %p188 = pneg %p187
      // Predicated region
      $region9: #{tpu_custom_call.1} parent=5 // pred_check
        _
      $region10: #{tpu_custom_call.1} parent=5 // pred_check_branch
        %190 = sbr.rel (%p187) target = $region12
      $region11: #{tpu_custom_call.1} parent=5 // pred_region
        %s191 = ssub.s32 %s20, 1
        // Predicated region
        $region13: #{tpu_custom_call.1} parent=11 // pred_check
          %p192 = pneg %p67
        $region14: #{tpu_custom_call.1} parent=11 // pred_check_branch
          %194 = sbr.rel (%p192) target = $region16
        $region15: #{tpu_custom_call.1} parent=11 // pred_region
          %s196 = ssub.s32 12288, 12288
          %197 = vsyncadd [#allocation6], %s196
          %s198 = sshll.u32 [#allocation5], 4
          %s199 = int_to_ptr.vmem [resolvable:$true] %s198
          %204 = dma.hbm_to_vmem [thread:$0]  %s1, 12288, %s199, [#allocation6], 384, 384, 24
        $region16: #{tpu_custom_call.1} parent=11 // pred_fallthru
          _
        // Predicated region
        $region17: #{tpu_custom_call.1} parent=11 // pred_check
          %p205 = pneg %p88
        $region18: #{tpu_custom_call.1} parent=11 // pred_check_branch
          %207 = sbr.rel (%p205) target = $region20
        $region19: #{tpu_custom_call.1} parent=11 // pred_region
          %s209 = ssub.s32 96, 96
          %210 = vsyncadd [#allocation6], %s209
          %s212 = sshll.u32 [#allocation7], 4
          %s213 = int_to_ptr.vmem [resolvable:$true] %s212
          %215 = dma.hbm_to_vmem [thread:$0]  %s2, 96, %s213, [#allocation6]
        $region20: #{tpu_custom_call.1} parent=11 // pred_fallthru
          _
        // Predicated region
        $region21: #{tpu_custom_call.1} parent=11 // pred_check
          %p216 = pneg %p109
        $region22: #{tpu_custom_call.1} parent=11 // pred_check_branch
          %218 = sbr.rel (%p216) target = $region24
        $region23: #{tpu_custom_call.1} parent=11 // pred_region
          %s220 = ssub.s32 4096, 4096
          %221 = vsyncadd [#allocation9], %s220
          %s222 = sshll.u32 [#allocation8], 4
          %s223 = int_to_ptr.vmem [resolvable:$true] %s222
          %228 = dma.hbm_to_vmem [thread:$0]  %s3, 4096, %s223, [#allocation9], 128, 128, 8
        $region24: #{tpu_custom_call.1} parent=11 // pred_fallthru
          _
        // Predicated region
        $region25: #{tpu_custom_call.1} parent=11 // pred_check
          %p229 = pneg %p130
        $region26: #{tpu_custom_call.1} parent=11 // pred_check_branch
          %231 = sbr.rel (%p229) target = $region28
        $region27: #{tpu_custom_call.1} parent=11 // pred_region
          _
        $region28: #{tpu_custom_call.1} parent=11 // pred_fallthru
          _
        // Predicated region
        $region29: #{tpu_custom_call.1} parent=11 // pred_check
          %p232 = pneg %p151
        $region30: #{tpu_custom_call.1} parent=11 // pred_check_branch
          %234 = sbr.rel (%p232) target = $region32
        $region31: #{tpu_custom_call.1} parent=11 // pred_region
          %s236 = ssub.s32 16384, 16384
          %237 = vsyncadd [#allocation9], %s236
          %s238 = sshll.u32 [#allocation10], 4
          %s239 = int_to_ptr.vmem [resolvable:$true] %s238
          %244 = dma.hbm_to_vmem [thread:$0]  %s5, 16384, %s239, [#allocation9], 256, 256, 16
        $region32: #{tpu_custom_call.1} parent=11 // pred_fallthru
          _
      $region12: #{tpu_custom_call.1} parent=5 // pred_fallthru
        _
      %p245 = scmp.lt.s32.totalorder %s20, 2
      // Predicated region
      $region33: #{tpu_custom_call.1} parent=5 // pred_check
        %p246 = pneg %p245
      $region34: #{tpu_custom_call.1} parent=5 // pred_check_branch
        %248 = sbr.rel (%p246) target = $region36
      $region35: #{tpu_custom_call.1} parent=5 // pred_region
        // Predicated region
        $region37: #{tpu_custom_call.1} parent=35 // pred_check
          %p249 = pneg %p40
        $region38: #{tpu_custom_call.1} parent=35 // pred_check_branch
          %251 = sbr.rel (%p249) target = $region40
        $region39: #{tpu_custom_call.1} parent=35 // pred_region
          %s252 = sand.u32 %s30, 1
          %s253 = scalar_lea.sflag [#allocation3], %s252
          %s254 = sand.u32 %s30, 1
          %s255 = smul.addr %s254, 256
          %s256 = scalar_lea.vmem [#allocation2], %s255
          %s257 = smul.u32 32, %s20
          %s259 = ssub.s32 4096, 4096
          %260 = vsyncadd %s253, %s259
          %s261 = smul.addr %s257, 2
          %s262 = smul.addr %s261, 64
          %s263 = scalar_lea.hbm %s0, %s262
          %s264 = sshll.u32 %s256, 4
          %s265 = int_to_ptr.vmem [resolvable:$true] %s264
          %270 = dma.hbm_to_vmem [thread:$0]  %s263, 4096, %s265, %s253, 128, 128, 8
        $region40: #{tpu_custom_call.1} parent=35 // pred_fallthru
          _
      $region36: #{tpu_custom_call.1} parent=5 // pred_fallthru
        _
      %p271 = scmp.le.s32.totalorder 1, %s20
      %p272 = scmp.lt.s32.totalorder %s20, 3
      %p273 = pnand %p271, %p272
      %p274 = pneg %p273
      // Predicated region
      $region41: #{tpu_custom_call.1} parent=5 // pred_check
        _
      $region42: #{tpu_custom_call.1} parent=5 // pred_check_branch
        %276 = sbr.rel (%p273) target = $region44
      $region43: #{tpu_custom_call.1} parent=5 // pred_region
        %s277 = ssub.s32 %s20, 1
        %s278 = sand.u32 %s33, 1
        %s279 = scalar_lea.sflag [#allocation3], %s278
        %s280 = sand.u32 %s33, 1
        %s281 = smul.addr %s280, 256
        %s282 = scalar_lea.vmem [#allocation2], %s281
        // Predicated region
        $region45: #{tpu_custom_call.1} parent=43 // pred_check
          %p283 = pneg %p46
        $region46: #{tpu_custom_call.1} parent=43 // pred_check_branch
          %285 = sbr.rel (%p283) target = $region48
        $region47: #{tpu_custom_call.1} parent=43 // pred_region
          %286 = dma.done %s279, 4096
        $region48: #{tpu_custom_call.1} parent=43 // pred_fallthru
          _
        // Predicated region
        $region49: #{tpu_custom_call.1} parent=43 // pred_check
          %p287 = pneg %p67
        $region50: #{tpu_custom_call.1} parent=43 // pred_check_branch
          %289 = sbr.rel (%p287) target = $region52
        $region51: #{tpu_custom_call.1} parent=43 // pred_region
          %290 = dma.done [#allocation6], 12288
        $region52: #{tpu_custom_call.1} parent=43 // pred_fallthru
          _
        // Predicated region
        $region53: #{tpu_custom_call.1} parent=43 // pred_check
          %p291 = pneg %p88
        $region54: #{tpu_custom_call.1} parent=43 // pred_check_branch
          %293 = sbr.rel (%p291) target = $region56
        $region55: #{tpu_custom_call.1} parent=43 // pred_region
          %294 = dma.done [#allocation6], 96
        $region56: #{tpu_custom_call.1} parent=43 // pred_fallthru
          _
        // Predicated region
        $region57: #{tpu_custom_call.1} parent=43 // pred_check
          %p295 = pneg %p109
        $region58: #{tpu_custom_call.1} parent=43 // pred_check_branch
          %297 = sbr.rel (%p295) target = $region60
        $region59: #{tpu_custom_call.1} parent=43 // pred_region
          %298 = dma.done [#allocation9], 4096
        $region60: #{tpu_custom_call.1} parent=43 // pred_fallthru
          _
        // Predicated region
        $region61: #{tpu_custom_call.1} parent=43 // pred_check
          %p299 = pneg %p151
        $region62: #{tpu_custom_call.1} parent=43 // pred_check_branch
          %301 = sbr.rel (%p299) target = $region64
        $region63: #{tpu_custom_call.1} parent=43 // pred_region
          %302 = dma.done [#allocation9], 16384
        $region64: #{tpu_custom_call.1} parent=43 // pred_fallthru
          _
        %s303 = sand.u32 %s33, 1
        %s304 = scalar_lea.sflag [#allocation3], %s303
        %s305 = sand.u32 %s33, 1
        %s306 = smul.addr %s305, 256
        %s307 = scalar_lea.vmem [#allocation2], %s306
        %p308 = pneg %p46
        %p309 = pneg %p43
        %p310 = pneg %p67
        %p311 = pneg %p64
        %p312 = pneg %p88
        %p313 = pneg %p85
        %p314 = pneg %p109
        %p315 = pneg %p106
        %p316 = pneg %p130
        %p317 = pneg %p127
        %p318 = pneg %p151
        %p319 = pneg %p148
        %p320 = pneg %p177
        %p321 = pneg %p174
        %s322 = sand.u32 %s164, 1
        %s323 = scalar_lea.sflag [#allocation4], %s322
        %s324 = sand.u32 %s164, 1
        %s325 = smul.addr %s324, 256
        %s326 = scalar_lea.vmem [#allocation11], %s325
        %s327 = smul.u32 32, %s25
        %s328 = smul.u32 32, %s25
        %v330 = vld [vmem:[%s282] sm:$0xff]
        %v331 = vld [vmem:[%s282 + $0x8] sm:$0xff]
        %v332 = vld [vmem:[%s282 + $0x10] sm:$0xff]
        %v333 = vld [vmem:[%s282 + $0x18] sm:$0xff]
        %v334 = vld [vmem:[%s282 + $0x20] sm:$0xff]
        %v335 = vld [vmem:[%s282 + $0x28] sm:$0xff]
        %v336 = vld [vmem:[%s282 + $0x30] sm:$0xff]
        %v337 = vld [vmem:[%s282 + $0x38] sm:$0xff]
        %v338 = vld [vmem:[%s282 + $0x40] sm:$0xff]
        %v339 = vld [vmem:[%s282 + $0x48] sm:$0xff]
        %v340 = vld [vmem:[%s282 + $0x50] sm:$0xff]
        %v341 = vld [vmem:[%s282 + $0x58] sm:$0xff]
        %v342 = vld [vmem:[%s282 + $0x60] sm:$0xff]
        %v343 = vld [vmem:[%s282 + $0x68] sm:$0xff]
        %v344 = vld [vmem:[%s282 + $0x70] sm:$0xff]
        %v345 = vld [vmem:[%s282 + $0x78] sm:$0xff]
        %v346 = vld [vmem:[%s282 + $0x80] sm:$0xff]
        %v347 = vld [vmem:[%s282 + $0x88] sm:$0xff]
        %v348 = vld [vmem:[%s282 + $0x90] sm:$0xff]
        %v349 = vld [vmem:[%s282 + $0x98] sm:$0xff]
        %v350 = vld [vmem:[%s282 + $0xa0] sm:$0xff]
        %v351 = vld [vmem:[%s282 + $0xa8] sm:$0xff]
        %v352 = vld [vmem:[%s282 + $0xb0] sm:$0xff]
        %v353 = vld [vmem:[%s282 + $0xb8] sm:$0xff]
        %v354 = vld [vmem:[%s282 + $0xc0] sm:$0xff]
        %v355 = vld [vmem:[%s282 + $0xc8] sm:$0xff]
        %v356 = vld [vmem:[%s282 + $0xd0] sm:$0xff]
        %v357 = vld [vmem:[%s282 + $0xd8] sm:$0xff]
        %v358 = vld [vmem:[%s282 + $0xe0] sm:$0xff]
        %v359 = vld [vmem:[%s282 + $0xe8] sm:$0xff]
        %v360 = vld [vmem:[%s282 + $0xf0] sm:$0xff]
        %v361 = vld [vmem:[%s282 + $0xf8] sm:$0xff]
        %v362 = vld [vmem:[#allocation5] sm:$0xff]
        %v363 = vld [vmem:[#allocation5 + $0x8] sm:$0xff]
        %v364 = vld [vmem:[#allocation5 + $0x10] sm:$0xff]
        %v365 = vld [vmem:[#allocation5 + $0x18] sm:$0xff]
        %v366 = vld [vmem:[#allocation5 + $0x20] sm:$0xff]
        %v367 = vld [vmem:[#allocation5 + $0x28] sm:$0xff]
        %v368 = vld [vmem:[#allocation5 + $0x30] sm:$0xff]
        %v369 = vld [vmem:[#allocation5 + $0x38] sm:$0xff]
        %v370 = vld [vmem:[#allocation5 + $0x40] sm:$0xff]
        %v371 = vld [vmem:[#allocation5 + $0x48] sm:$0xff]
        %v372 = vld [vmem:[#allocation5 + $0x50] sm:$0xff]
        %v373 = vld [vmem:[#allocation5 + $0x58] sm:$0xff]
        %v374 = vld [vmem:[#allocation5 + $0x60] sm:$0xff]
        %v375 = vld [vmem:[#allocation5 + $0x68] sm:$0xff]
        %v376 = vld [vmem:[#allocation5 + $0x70] sm:$0xff]
        %v377 = vld [vmem:[#allocation5 + $0x78] sm:$0xff]
        %v378 = vld [vmem:[#allocation5 + $0x80] sm:$0xff]
        %v379 = vld [vmem:[#allocation5 + $0x88] sm:$0xff]
        %v380 = vld [vmem:[#allocation5 + $0x90] sm:$0xff]
        %v381 = vld [vmem:[#allocation5 + $0x98] sm:$0xff]
        %v382 = vld [vmem:[#allocation5 + $0xa0] sm:$0xff]
        %v383 = vld [vmem:[#allocation5 + $0xa8] sm:$0xff]
        %v384 = vld [vmem:[#allocation5 + $0xb0] sm:$0xff]
        %v385 = vld [vmem:[#allocation5 + $0xb8] sm:$0xff]
        %v386 = vld [vmem:[#allocation5 + $0xc0] sm:$0xff]
        %v387 = vld [vmem:[#allocation5 + $0xc8] sm:$0xff]
        %v388 = vld [vmem:[#allocation5 + $0xd0] sm:$0xff]
        %v389 = vld [vmem:[#allocation5 + $0xd8] sm:$0xff]
        %v390 = vld [vmem:[#allocation5 + $0xe0] sm:$0xff]
        %v391 = vld [vmem:[#allocation5 + $0xe8] sm:$0xff]
        %v392 = vld [vmem:[#allocation5 + $0xf0] sm:$0xff]
        %v393 = vld [vmem:[#allocation5 + $0xf8] sm:$0xff]
        %v394 = vld [vmem:[#allocation5 + $0x100] sm:$0xff]
        %v395 = vld [vmem:[#allocation5 + $0x108] sm:$0xff]
        %v396 = vld [vmem:[#allocation5 + $0x110] sm:$0xff]
        %v397 = vld [vmem:[#allocation5 + $0x118] sm:$0xff]
        %v398 = vld [vmem:[#allocation5 + $0x120] sm:$0xff]
        %v399 = vld [vmem:[#allocation5 + $0x128] sm:$0xff]
        %v400 = vld [vmem:[#allocation5 + $0x130] sm:$0xff]
        %v401 = vld [vmem:[#allocation5 + $0x138] sm:$0xff]
        %v402 = vld [vmem:[#allocation5 + $0x140] sm:$0xff]
        %v403 = vld [vmem:[#allocation5 + $0x148] sm:$0xff]
        %v404 = vld [vmem:[#allocation5 + $0x150] sm:$0xff]
        %v405 = vld [vmem:[#allocation5 + $0x158] sm:$0xff]
        %v406 = vld [vmem:[#allocation5 + $0x160] sm:$0xff]
        %v407 = vld [vmem:[#allocation5 + $0x168] sm:$0xff]
        %v408 = vld [vmem:[#allocation5 + $0x170] sm:$0xff]
        %v409 = vld [vmem:[#allocation5 + $0x178] sm:$0xff]
        %v410 = vld [vmem:[#allocation5 + $0x180] sm:$0xff]
        %v411 = vld [vmem:[#allocation5 + $0x188] sm:$0xff]
        %v412 = vld [vmem:[#allocation5 + $0x190] sm:$0xff]
        %v413 = vld [vmem:[#allocation5 + $0x198] sm:$0xff]
        %v414 = vld [vmem:[#allocation5 + $0x1a0] sm:$0xff]
        %v415 = vld [vmem:[#allocation5 + $0x1a8] sm:$0xff]
        %v416 = vld [vmem:[#allocation5 + $0x1b0] sm:$0xff]
        %v417 = vld [vmem:[#allocation5 + $0x1b8] sm:$0xff]
        %v418 = vld [vmem:[#allocation5 + $0x1c0] sm:$0xff]
        %v419 = vld [vmem:[#allocation5 + $0x1c8] sm:$0xff]
        %v420 = vld [vmem:[#allocation5 + $0x1d0] sm:$0xff]
        %v421 = vld [vmem:[#allocation5 + $0x1d8] sm:$0xff]
        %v422 = vld [vmem:[#allocation5 + $0x1e0] sm:$0xff]
        %v423 = vld [vmem:[#allocation5 + $0x1e8] sm:$0xff]
        %v424 = vld [vmem:[#allocation5 + $0x1f0] sm:$0xff]
        %v425 = vld [vmem:[#allocation5 + $0x1f8] sm:$0xff]
        %v426 = vld [vmem:[#allocation5 + $0x200] sm:$0xff]
        %v427 = vld [vmem:[#allocation5 + $0x208] sm:$0xff]
        %v428 = vld [vmem:[#allocation5 + $0x210] sm:$0xff]
        %v429 = vld [vmem:[#allocation5 + $0x218] sm:$0xff]
        %v430 = vld [vmem:[#allocation5 + $0x220] sm:$0xff]
        %v431 = vld [vmem:[#allocation5 + $0x228] sm:$0xff]
        %v432 = vld [vmem:[#allocation5 + $0x230] sm:$0xff]
        %v433 = vld [vmem:[#allocation5 + $0x238] sm:$0xff]
        %v434 = vld [vmem:[#allocation5 + $0x240] sm:$0xff]
        %v435 = vld [vmem:[#allocation5 + $0x248] sm:$0xff]
        %v436 = vld [vmem:[#allocation5 + $0x250] sm:$0xff]
        %v437 = vld [vmem:[#allocation5 + $0x258] sm:$0xff]
        %v438 = vld [vmem:[#allocation5 + $0x260] sm:$0xff]
        %v439 = vld [vmem:[#allocation5 + $0x268] sm:$0xff]
        %v440 = vld [vmem:[#allocation5 + $0x270] sm:$0xff]
        %v441 = vld [vmem:[#allocation5 + $0x278] sm:$0xff]
        %v442 = vld [vmem:[#allocation5 + $0x280] sm:$0xff]
        %v443 = vld [vmem:[#allocation5 + $0x288] sm:$0xff]
        %v444 = vld [vmem:[#allocation5 + $0x290] sm:$0xff]
        %v445 = vld [vmem:[#allocation5 + $0x298] sm:$0xff]
        %v446 = vld [vmem:[#allocation5 + $0x2a0] sm:$0xff]
        %v447 = vld [vmem:[#allocation5 + $0x2a8] sm:$0xff]
        %v448 = vld [vmem:[#allocation5 + $0x2b0] sm:$0xff]
        %v449 = vld [vmem:[#allocation5 + $0x2b8] sm:$0xff]
        %v450 = vld [vmem:[#allocation5 + $0x2c0] sm:$0xff]
        %v451 = vld [vmem:[#allocation5 + $0x2c8] sm:$0xff]
        %v452 = vld [vmem:[#allocation5 + $0x2d0] sm:$0xff]
        %v453 = vld [vmem:[#allocation5 + $0x2d8] sm:$0xff]
        %v454 = vld [vmem:[#allocation5 + $0x2e0] sm:$0xff]
        %v455 = vld [vmem:[#allocation5 + $0x2e8] sm:$0xff]
        %v456 = vld [vmem:[#allocation5 + $0x2f0] sm:$0xff]
        %v457 = vld [vmem:[#allocation5 + $0x2f8] sm:$0xff]
        %v458 = vld [vmem:[#allocation7] sm:$0x3f]
        %v460 = vlaneseq
        %v461 = vshrl.u32 %v460, 7
        %v462 = vsub.s32 0, %v461
        %v463 = vrot.slane %v458, %v462
        %v464 = vlaneseq
        %v465 = vshrl.u32 %v464, 7
        %v466 = vsub.s32 1, %v465
        %v467 = vrot.slane %v458, %v466
        %v468 = vlaneseq
        %v469 = vshrl.u32 %v468, 7
        %v470 = vsub.s32 2, %v469
        %v471 = vrot.slane %v458, %v470
        %v472 = vlaneseq
        %v473 = vshrl.u32 %v472, 7
        %v474 = vsub.s32 3, %v473
        %v475 = vrot.slane %v458, %v474
        %v476 = vlaneseq
        %v477 = vshrl.u32 %v476, 7
        %v478 = vsub.s32 4, %v477
        %v479 = vrot.slane %v458, %v478
        %v480 = vlaneseq
        %v481 = vshrl.u32 %v480, 7
        %v482 = vsub.s32 5, %v481
        %v483 = vrot.slane %v458, %v482
        %v522 = vunpack.c.l.b16 %v330
        %v523 = vunpack.c.h.b16 %v330
        %v524 = vunpack.c.l.b16 %v331
        %v525 = vunpack.c.h.b16 %v331
        %v526 = vunpack.c.l.b16 %v332
        %v527 = vunpack.c.h.b16 %v332
        %v528 = vunpack.c.l.b16 %v333
        %v529 = vunpack.c.h.b16 %v333
        %v530 = vunpack.c.l.b16 %v334
        %v531 = vunpack.c.h.b16 %v334
        %v532 = vunpack.c.l.b16 %v335
        %v533 = vunpack.c.h.b16 %v335
        %v534 = vunpack.c.l.b16 %v336
        %v535 = vunpack.c.h.b16 %v336
        %v536 = vunpack.c.l.b16 %v337
        %v537 = vunpack.c.h.b16 %v337
        %v538 = vunpack.c.l.b16 %v338
        %v539 = vunpack.c.h.b16 %v338
        %v540 = vunpack.c.l.b16 %v339
        %v541 = vunpack.c.h.b16 %v339
        %v542 = vunpack.c.l.b16 %v340
        %v543 = vunpack.c.h.b16 %v340
        %v544 = vunpack.c.l.b16 %v341
        %v545 = vunpack.c.h.b16 %v341
        %v546 = vunpack.c.l.b16 %v342
        %v547 = vunpack.c.h.b16 %v342
        %v548 = vunpack.c.l.b16 %v343
        %v549 = vunpack.c.h.b16 %v343
        %v550 = vunpack.c.l.b16 %v344
        %v551 = vunpack.c.h.b16 %v344
        %v552 = vunpack.c.l.b16 %v345
        %v553 = vunpack.c.h.b16 %v345
        %v554 = vunpack.c.l.b16 %v346
        %v555 = vunpack.c.h.b16 %v346
        %v556 = vunpack.c.l.b16 %v347
        %v557 = vunpack.c.h.b16 %v347
        %v558 = vunpack.c.l.b16 %v348
        %v559 = vunpack.c.h.b16 %v348
        %v560 = vunpack.c.l.b16 %v349
        %v561 = vunpack.c.h.b16 %v349
        %v562 = vunpack.c.l.b16 %v350
        %v563 = vunpack.c.h.b16 %v350
        %v564 = vunpack.c.l.b16 %v351
        %v565 = vunpack.c.h.b16 %v351
        %v566 = vunpack.c.l.b16 %v352
        %v567 = vunpack.c.h.b16 %v352
        %v568 = vunpack.c.l.b16 %v353
        %v569 = vunpack.c.h.b16 %v353
        %v570 = vunpack.c.l.b16 %v354
        %v571 = vunpack.c.h.b16 %v354
        %v572 = vunpack.c.l.b16 %v355
        %v573 = vunpack.c.h.b16 %v355
        %v574 = vunpack.c.l.b16 %v356
        %v575 = vunpack.c.h.b16 %v356
        %v576 = vunpack.c.l.b16 %v357
        %v577 = vunpack.c.h.b16 %v357
        %v578 = vunpack.c.l.b16 %v358
        %v579 = vunpack.c.h.b16 %v358
        %v580 = vunpack.c.l.b16 %v359
        %v581 = vunpack.c.h.b16 %v359
        %v582 = vunpack.c.l.b16 %v360
        %v583 = vunpack.c.h.b16 %v360
        %v584 = vunpack.c.l.b16 %v361
        %v585 = vunpack.c.h.b16 %v361
        %v586 = vpack.c.b16 %v524, %v522
        %v587 = vpack.c.b16 %v525, %v523
        %v588 = vpack.c.b16 %v528, %v526
        %v589 = vpack.c.b16 %v529, %v527
        %v590 = vpack.c.b16 %v532, %v530
        %v591 = vpack.c.b16 %v533, %v531
        %v592 = vpack.c.b16 %v536, %v534
        %v593 = vpack.c.b16 %v537, %v535
        %v594 = vpack.c.b16 %v540, %v538
        %v595 = vpack.c.b16 %v541, %v539
        %v596 = vpack.c.b16 %v544, %v542
        %v597 = vpack.c.b16 %v545, %v543
        %v598 = vpack.c.b16 %v548, %v546
        %v599 = vpack.c.b16 %v549, %v547
        %v600 = vpack.c.b16 %v552, %v550
        %v601 = vpack.c.b16 %v553, %v551
        %v602 = vpack.c.b16 %v556, %v554
        %v603 = vpack.c.b16 %v557, %v555
        %v604 = vpack.c.b16 %v560, %v558
        %v605 = vpack.c.b16 %v561, %v559
        %v606 = vpack.c.b16 %v564, %v562
        %v607 = vpack.c.b16 %v565, %v563
        %v608 = vpack.c.b16 %v568, %v566
        %v609 = vpack.c.b16 %v569, %v567
        %v610 = vpack.c.b16 %v572, %v570
        %v611 = vpack.c.b16 %v573, %v571
        %v612 = vpack.c.b16 %v576, %v574
        %v613 = vpack.c.b16 %v577, %v575
        %v614 = vpack.c.b16 %v580, %v578
        %v615 = vpack.c.b16 %v581, %v579
        %v616 = vpack.c.b16 %v584, %v582
        %v617 = vpack.c.b16 %v585, %v583
        %v746 = vunpack.c.l.b16 %v362
        %v747 = vunpack.c.h.b16 %v362
        %v748 = vunpack.c.l.b16 %v363
        %v749 = vunpack.c.h.b16 %v363
        %v750 = vunpack.c.l.b16 %v364
        %v751 = vunpack.c.h.b16 %v364
        %v752 = vunpack.c.l.b16 %v365
        %v753 = vunpack.c.h.b16 %v365
        %v754 = vunpack.c.l.b16 %v366
        %v755 = vunpack.c.h.b16 %v366
        %v756 = vunpack.c.l.b16 %v367
        %v757 = vunpack.c.h.b16 %v367
        %v758 = vunpack.c.l.b16 %v368
        %v759 = vunpack.c.h.b16 %v368
        %v760 = vunpack.c.l.b16 %v369
        %v761 = vunpack.c.h.b16 %v369
        %v762 = vunpack.c.l.b16 %v370
        %v763 = vunpack.c.h.b16 %v370
        %v764 = vunpack.c.l.b16 %v371
        %v765 = vunpack.c.h.b16 %v371
        %v766 = vunpack.c.l.b16 %v372
        %v767 = vunpack.c.h.b16 %v372
        %v768 = vunpack.c.l.b16 %v373
        %v769 = vunpack.c.h.b16 %v373
        %v770 = vunpack.c.l.b16 %v374
        %v771 = vunpack.c.h.b16 %v374
        %v772 = vunpack.c.l.b16 %v375
        %v773 = vunpack.c.h.b16 %v375
        %v774 = vunpack.c.l.b16 %v376
        %v775 = vunpack.c.h.b16 %v376
        %v776 = vunpack.c.l.b16 %v377
        %v777 = vunpack.c.h.b16 %v377
        %v778 = vunpack.c.l.b16 %v378
        %v779 = vunpack.c.h.b16 %v378
        %v780 = vunpack.c.l.b16 %v379
        %v781 = vunpack.c.h.b16 %v379
        %v782 = vunpack.c.l.b16 %v380
        %v783 = vunpack.c.h.b16 %v380
        %v784 = vunpack.c.l.b16 %v381
        %v785 = vunpack.c.h.b16 %v381
        %v786 = vunpack.c.l.b16 %v382
        %v787 = vunpack.c.h.b16 %v382
        %v788 = vunpack.c.l.b16 %v383
        %v789 = vunpack.c.h.b16 %v383
        %v790 = vunpack.c.l.b16 %v384
        %v791 = vunpack.c.h.b16 %v384
        %v792 = vunpack.c.l.b16 %v385
        %v793 = vunpack.c.h.b16 %v385
        %v794 = vunpack.c.l.b16 %v386
        %v795 = vunpack.c.h.b16 %v386
        %v796 = vunpack.c.l.b16 %v387
        %v797 = vunpack.c.h.b16 %v387
        %v798 = vunpack.c.l.b16 %v388
        %v799 = vunpack.c.h.b16 %v388
        %v800 = vunpack.c.l.b16 %v389
        %v801 = vunpack.c.h.b16 %v389
        %v802 = vunpack.c.l.b16 %v390
        %v803 = vunpack.c.h.b16 %v390
        %v804 = vunpack.c.l.b16 %v391
        %v805 = vunpack.c.h.b16 %v391
        %v806 = vunpack.c.l.b16 %v392
        %v807 = vunpack.c.h.b16 %v392
        %v808 = vunpack.c.l.b16 %v393
        %v809 = vunpack.c.h.b16 %v393
        %v810 = vunpack.c.l.b16 %v394
        %v811 = vunpack.c.h.b16 %v394
        %v812 = vunpack.c.l.b16 %v395
        %v813 = vunpack.c.h.b16 %v395
        %v814 = vunpack.c.l.b16 %v396
        %v815 = vunpack.c.h.b16 %v396
        %v816 = vunpack.c.l.b16 %v397
        %v817 = vunpack.c.h.b16 %v397
        %v818 = vunpack.c.l.b16 %v398
        %v819 = vunpack.c.h.b16 %v398
        %v820 = vunpack.c.l.b16 %v399
        %v821 = vunpack.c.h.b16 %v399
        %v822 = vunpack.c.l.b16 %v400
        %v823 = vunpack.c.h.b16 %v400
        %v824 = vunpack.c.l.b16 %v401
        %v825 = vunpack.c.h.b16 %v401
        %v826 = vunpack.c.l.b16 %v402
        %v827 = vunpack.c.h.b16 %v402
        %v828 = vunpack.c.l.b16 %v403
        %v829 = vunpack.c.h.b16 %v403
        %v830 = vunpack.c.l.b16 %v404
        %v831 = vunpack.c.h.b16 %v404
        %v832 = vunpack.c.l.b16 %v405
        %v833 = vunpack.c.h.b16 %v405
        %v834 = vunpack.c.l.b16 %v406
        %v835 = vunpack.c.h.b16 %v406
        %v836 = vunpack.c.l.b16 %v407
        %v837 = vunpack.c.h.b16 %v407
        %v838 = vunpack.c.l.b16 %v408
        %v839 = vunpack.c.h.b16 %v408
        %v840 = vunpack.c.l.b16 %v409
        %v841 = vunpack.c.h.b16 %v409
        %v842 = vunpack.c.l.b16 %v410
        %v843 = vunpack.c.h.b16 %v410
        %v844 = vunpack.c.l.b16 %v411
        %v845 = vunpack.c.h.b16 %v411
        %v846 = vunpack.c.l.b16 %v412
        %v847 = vunpack.c.h.b16 %v412
        %v848 = vunpack.c.l.b16 %v413
        %v849 = vunpack.c.h.b16 %v413
        %v850 = vunpack.c.l.b16 %v414
        %v851 = vunpack.c.h.b16 %v414
        %v852 = vunpack.c.l.b16 %v415
        %v853 = vunpack.c.h.b16 %v415
        %v854 = vunpack.c.l.b16 %v416
        %v855 = vunpack.c.h.b16 %v416
        %v856 = vunpack.c.l.b16 %v417
        %v857 = vunpack.c.h.b16 %v417
        %v858 = vunpack.c.l.b16 %v418
        %v859 = vunpack.c.h.b16 %v418
        %v860 = vunpack.c.l.b16 %v419
        %v861 = vunpack.c.h.b16 %v419
        %v862 = vunpack.c.l.b16 %v420
        %v863 = vunpack.c.h.b16 %v420
        %v864 = vunpack.c.l.b16 %v421
        %v865 = vunpack.c.h.b16 %v421
        %v866 = vunpack.c.l.b16 %v422
        %v867 = vunpack.c.h.b16 %v422
        %v868 = vunpack.c.l.b16 %v423
        %v869 = vunpack.c.h.b16 %v423
        %v870 = vunpack.c.l.b16 %v424
        %v871 = vunpack.c.h.b16 %v424
        %v872 = vunpack.c.l.b16 %v425
        %v873 = vunpack.c.h.b16 %v425
        %v874 = vunpack.c.l.b16 %v426
        %v875 = vunpack.c.h.b16 %v426
        %v876 = vunpack.c.l.b16 %v427
        %v877 = vunpack.c.h.b16 %v427
        %v878 = vunpack.c.l.b16 %v428
        %v879 = vunpack.c.h.b16 %v428
        %v880 = vunpack.c.l.b16 %v429
        %v881 = vunpack.c.h.b16 %v429
        %v882 = vunpack.c.l.b16 %v430
        %v883 = vunpack.c.h.b16 %v430
        %v884 = vunpack.c.l.b16 %v431
        %v885 = vunpack.c.h.b16 %v431
        %v886 = vunpack.c.l.b16 %v432
        %v887 = vunpack.c.h.b16 %v432
        %v888 = vunpack.c.l.b16 %v433
        %v889 = vunpack.c.h.b16 %v433
        %v890 = vunpack.c.l.b16 %v434
        %v891 = vunpack.c.h.b16 %v434
        %v892 = vunpack.c.l.b16 %v435
        %v893 = vunpack.c.h.b16 %v435
        %v894 = vunpack.c.l.b16 %v436
        %v895 = vunpack.c.h.b16 %v436
        %v896 = vunpack.c.l.b16 %v437
        %v897 = vunpack.c.h.b16 %v437
        %v898 = vunpack.c.l.b16 %v438
        %v899 = vunpack.c.h.b16 %v438
        %v900 = vunpack.c.l.b16 %v439
        %v901 = vunpack.c.h.b16 %v439
        %v902 = vunpack.c.l.b16 %v440
        %v903 = vunpack.c.h.b16 %v440
        %v904 = vunpack.c.l.b16 %v441
        %v905 = vunpack.c.h.b16 %v441
        %v906 = vunpack.c.l.b16 %v442
        %v907 = vunpack.c.h.b16 %v442
        %v908 = vunpack.c.l.b16 %v443
        %v909 = vunpack.c.h.b16 %v443
        %v910 = vunpack.c.l.b16 %v444
        %v911 = vunpack.c.h.b16 %v444
        %v912 = vunpack.c.l.b16 %v445
        %v913 = vunpack.c.h.b16 %v445
        %v914 = vunpack.c.l.b16 %v446
        %v915 = vunpack.c.h.b16 %v446
        %v916 = vunpack.c.l.b16 %v447
        %v917 = vunpack.c.h.b16 %v447
        %v918 = vunpack.c.l.b16 %v448
        %v919 = vunpack.c.h.b16 %v448
        %v920 = vunpack.c.l.b16 %v449
        %v921 = vunpack.c.h.b16 %v449
        %v922 = vunpack.c.l.b16 %v450
        %v923 = vunpack.c.h.b16 %v450
        %v924 = vunpack.c.l.b16 %v451
        %v925 = vunpack.c.h.b16 %v451
        %v926 = vunpack.c.l.b16 %v452
        %v927 = vunpack.c.h.b16 %v452
        %v928 = vunpack.c.l.b16 %v453
        %v929 = vunpack.c.h.b16 %v453
        %v930 = vunpack.c.l.b16 %v454
        %v931 = vunpack.c.h.b16 %v454
        %v932 = vunpack.c.l.b16 %v455
        %v933 = vunpack.c.h.b16 %v455
        %v934 = vunpack.c.l.b16 %v456
        %v935 = vunpack.c.h.b16 %v456
        %v936 = vunpack.c.l.b16 %v457
        %v937 = vunpack.c.h.b16 %v457
        %v938 = vpack.c.b16 %v752, %v746
        %v939 = vpack.c.b16 %v753, %v747
        %v940 = vpack.c.b16 %v754, %v748
        %v941 = vpack.c.b16 %v755, %v749
        %v942 = vpack.c.b16 %v756, %v750
        %v943 = vpack.c.b16 %v757, %v751
        %v944 = vpack.c.b16 %v764, %v758
        %v945 = vpack.c.b16 %v765, %v759
        %v946 = vpack.c.b16 %v766, %v760
        %v947 = vpack.c.b16 %v767, %v761
        %v948 = vpack.c.b16 %v768, %v762
        %v949 = vpack.c.b16 %v769, %v763
        %v950 = vpack.c.b16 %v776, %v770
        %v951 = vpack.c.b16 %v777, %v771
        %v952 = vpack.c.b16 %v778, %v772
        %v953 = vpack.c.b16 %v779, %v773
        %v954 = vpack.c.b16 %v780, %v774
        %v955 = vpack.c.b16 %v781, %v775
        %v956 = vpack.c.b16 %v788, %v782
        %v957 = vpack.c.b16 %v789, %v783
        %v958 = vpack.c.b16 %v790, %v784
        %v959 = vpack.c.b16 %v791, %v785
        %v960 = vpack.c.b16 %v792, %v786
        %v961 = vpack.c.b16 %v793, %v787
        %v962 = vpack.c.b16 %v800, %v794
        %v963 = vpack.c.b16 %v801, %v795
        %v964 = vpack.c.b16 %v802, %v796
        %v965 = vpack.c.b16 %v803, %v797
        %v966 = vpack.c.b16 %v804, %v798
        %v967 = vpack.c.b16 %v805, %v799
        %v968 = vpack.c.b16 %v812, %v806
        %v969 = vpack.c.b16 %v813, %v807
        %v970 = vpack.c.b16 %v814, %v808
        %v971 = vpack.c.b16 %v815, %v809
        %v972 = vpack.c.b16 %v816, %v810
        %v973 = vpack.c.b16 %v817, %v811
        %v974 = vpack.c.b16 %v824, %v818
        %v975 = vpack.c.b16 %v825, %v819
        %v976 = vpack.c.b16 %v826, %v820
        %v977 = vpack.c.b16 %v827, %v821
        %v978 = vpack.c.b16 %v828, %v822
        %v979 = vpack.c.b16 %v829, %v823
        %v980 = vpack.c.b16 %v836, %v830
        %v981 = vpack.c.b16 %v837, %v831
        %v982 = vpack.c.b16 %v838, %v832
        %v983 = vpack.c.b16 %v839, %v833
        %v984 = vpack.c.b16 %v840, %v834
        %v985 = vpack.c.b16 %v841, %v835
        %v986 = vpack.c.b16 %v848, %v842
        %v987 = vpack.c.b16 %v849, %v843
        %v988 = vpack.c.b16 %v850, %v844
        %v989 = vpack.c.b16 %v851, %v845
        %v990 = vpack.c.b16 %v852, %v846
        %v991 = vpack.c.b16 %v853, %v847
        %v992 = vpack.c.b16 %v860, %v854
        %v993 = vpack.c.b16 %v861, %v855
        %v994 = vpack.c.b16 %v862, %v856
        %v995 = vpack.c.b16 %v863, %v857
        %v996 = vpack.c.b16 %v864, %v858
        %v997 = vpack.c.b16 %v865, %v859
        %v998 = vpack.c.b16 %v872, %v866
        %v999 = vpack.c.b16 %v873, %v867
        %v1000 = vpack.c.b16 %v874, %v868
        %v1001 = vpack.c.b16 %v875, %v869
        %v1002 = vpack.c.b16 %v876, %v870
        %v1003 = vpack.c.b16 %v877, %v871
        %v1004 = vpack.c.b16 %v884, %v878
        %v1005 = vpack.c.b16 %v885, %v879
        %v1006 = vpack.c.b16 %v886, %v880
        %v1007 = vpack.c.b16 %v887, %v881
        %v1008 = vpack.c.b16 %v888, %v882
        %v1009 = vpack.c.b16 %v889, %v883
        %v1010 = vpack.c.b16 %v896, %v890
        %v1011 = vpack.c.b16 %v897, %v891
        %v1012 = vpack.c.b16 %v898, %v892
        %v1013 = vpack.c.b16 %v899, %v893
        %v1014 = vpack.c.b16 %v900, %v894
        %v1015 = vpack.c.b16 %v901, %v895
        %v1016 = vpack.c.b16 %v908, %v902
        %v1017 = vpack.c.b16 %v909, %v903
        %v1018 = vpack.c.b16 %v910, %v904
        %v1019 = vpack.c.b16 %v911, %v905
        %v1020 = vpack.c.b16 %v912, %v906
        %v1021 = vpack.c.b16 %v913, %v907
        %v1022 = vpack.c.b16 %v920, %v914
        %v1023 = vpack.c.b16 %v921, %v915
        %v1024 = vpack.c.b16 %v922, %v916
        %v1025 = vpack.c.b16 %v923, %v917
        %v1026 = vpack.c.b16 %v924, %v918
        %v1027 = vpack.c.b16 %v925, %v919
        %v1028 = vpack.c.b16 %v932, %v926
        %v1029 = vpack.c.b16 %v933, %v927
        %v1030 = vpack.c.b16 %v934, %v928
        %v1031 = vpack.c.b16 %v935, %v929
        %v1032 = vpack.c.b16 %v936, %v930
        %v1033 = vpack.c.b16 %v937, %v931
        %1130 = vmatprep.subr.bf16.mxu0 %v981
        %1131 = vmatpush1.bf16.msra.mxu0 %v980
        %1132 = vmatprep.subr.bf16.mxu0 %v975
        %1133 = vmatpush1.bf16.msra.mxu0 %v974
        %1134 = vmatprep.subr.bf16.mxu0 %v969
        %1135 = vmatpush1.bf16.msra.mxu0 %v968
        %1136 = vmatprep.subr.bf16.mxu0 %v963
        %1137 = vmatpush1.bf16.msra.mxu0 %v962
        %1138 = vmatprep.subr.bf16.mxu0 %v957
        %1139 = vmatpush1.bf16.msra.mxu0 %v956
        %1140 = vmatprep.subr.bf16.mxu0 %v951
        %1141 = vmatpush1.bf16.msra.mxu0 %v950
        %1142 = vmatprep.subr.bf16.mxu0 %v945
        %1143 = vmatpush1.bf16.msra.mxu0 %v944
        %1144 = vmatprep.subr.bf16.mxu0 %v939
        %1145 = vmatpush1.bf16.msra.mxu0 %v938
        %1146 = vmatprep.subr.bf16.mxu0 %v1029
        %1147 = vmatpush2.bf16.msra.mxu0 %v1028
        %1148 = vmatprep.subr.bf16.mxu0 %v1023
        %1149 = vmatpush2.bf16.msra.mxu0 %v1022
        %1150 = vmatprep.subr.bf16.mxu0 %v1017
        %1151 = vmatpush2.bf16.msra.mxu0 %v1016
        %1152 = vmatprep.subr.bf16.mxu0 %v1011
        %1153 = vmatpush2.bf16.msra.mxu0 %v1010
        %1154 = vmatprep.subr.bf16.mxu0 %v1005
        %1155 = vmatpush2.bf16.msra.mxu0 %v1004
        %1156 = vmatprep.subr.bf16.mxu0 %v999
        %1157 = vmatpush2.bf16.msra.mxu0 %v998
        %1158 = vmatprep.subr.bf16.mxu0 %v993
        %1159 = vmatpush2.bf16.msra.mxu0 %v992
        %1160 = vmatprep.subr.bf16.mxu0 %v987
        %1161 = vmatpush2.bf16.msra.mxu0 %v986
        %1162 = vmatprep.mubr.bf16.mxu0 %v587
        %1163 = vmatmul.mubr.bf16.gmra.mxu0 %v586
        %v1164 = vpop.f32.mrf.mxu0
        %v1165 = vadd.f32 %v463, %v1164
        %v1166 = vpop.f32.mrf.mxu0
        %v1167 = vadd.f32 %v467, %v1166
        %v1168 = vpop.f32.mrf.mxu0
        %v1169 = vadd.f32 %v463, %v1168
        %v1170 = vpop.f32.mrf.mxu0
        %v1171 = vadd.f32 %v467, %v1170
        %1172 = vmatprep.mubr.bf16.mxu0 %v589
        %1173 = vmatmul.mubr.bf16.gmra.mxu0 %v588
        %v1174 = vpop.f32.mrf.mxu0
        %v1175 = vadd.f32 %v463, %v1174
        %v1176 = vpop.f32.mrf.mxu0
        %v1177 = vadd.f32 %v467, %v1176
        %v1178 = vpop.f32.mrf.mxu0
        %v1179 = vadd.f32 %v463, %v1178
        %v1180 = vpop.f32.mrf.mxu0
        %v1181 = vadd.f32 %v467, %v1180
        %1182 = vmatprep.mubr.bf16.mxu0 %v591
        %1183 = vmatmul.mubr.bf16.gmra.mxu0 %v590
        %v1184 = vpop.f32.mrf.mxu0
        %v1185 = vadd.f32 %v463, %v1184
        %v1186 = vpop.f32.mrf.mxu0
        %v1187 = vadd.f32 %v467, %v1186
        %v1188 = vpop.f32.mrf.mxu0
        %v1189 = vadd.f32 %v463, %v1188
        %v1190 = vpop.f32.mrf.mxu0
        %v1191 = vadd.f32 %v467, %v1190
        %1192 = vmatprep.mubr.bf16.mxu0 %v593
        %1193 = vmatmul.mubr.bf16.gmra.mxu0 %v592
        %v1194 = vpop.f32.mrf.mxu0
        %v1195 = vadd.f32 %v463, %v1194
        %v1196 = vpop.f32.mrf.mxu0
        %v1197 = vadd.f32 %v467, %v1196
        %v1198 = vpop.f32.mrf.mxu0
        %v1199 = vadd.f32 %v463, %v1198
        %v1200 = vpop.f32.mrf.mxu0
        %v1201 = vadd.f32 %v467, %v1200
        %1202 = vmatprep.mubr.bf16.mxu0 %v595
        %1203 = vmatmul.mubr.bf16.gmra.mxu0 %v594
        %v1204 = vpop.f32.mrf.mxu0
        %v1205 = vadd.f32 %v463, %v1204
        %v1206 = vpop.f32.mrf.mxu0
        %v1207 = vadd.f32 %v467, %v1206
        %v1208 = vpop.f32.mrf.mxu0
        %v1209 = vadd.f32 %v463, %v1208
        %v1210 = vpop.f32.mrf.mxu0
        %v1211 = vadd.f32 %v467, %v1210
        %1212 = vmatprep.mubr.bf16.mxu0 %v597
        %1213 = vmatmul.mubr.bf16.gmra.mxu0 %v596
        %v1214 = vpop.f32.mrf.mxu0
        %v1215 = vadd.f32 %v463, %v1214
        %v1216 = vpop.f32.mrf.mxu0
        %v1217 = vadd.f32 %v467, %v1216
        %v1218 = vpop.f32.mrf.mxu0
        %v1219 = vadd.f32 %v463, %v1218
        %v1220 = vpop.f32.mrf.mxu0
        %v1221 = vadd.f32 %v467, %v1220
        %1222 = vmatprep.mubr.bf16.mxu0 %v599
        %1223 = vmatmul.mubr.bf16.gmra.mxu0 %v598
        %v1224 = vpop.f32.mrf.mxu0
        %v1225 = vadd.f32 %v463, %v1224
        %v1226 = vpop.f32.mrf.mxu0
        %v1227 = vadd.f32 %v467, %v1226
        %v1228 = vpop.f32.mrf.mxu0
        %v1229 = vadd.f32 %v463, %v1228
        %v1230 = vpop.f32.mrf.mxu0
        %v1231 = vadd.f32 %v467, %v1230
        %1232 = vmatprep.mubr.bf16.mxu0 %v601
        %1233 = vmatmul.mubr.bf16.gmra.mxu0 %v600
        %v1234 = vpop.f32.mrf.mxu0
        %v1235 = vadd.f32 %v463, %v1234
        %v1236 = vpop.f32.mrf.mxu0
        %v1237 = vadd.f32 %v467, %v1236
        %v1238 = vpop.f32.mrf.mxu0
        %v1239 = vadd.f32 %v463, %v1238
        %v1240 = vpop.f32.mrf.mxu0
        %v1241 = vadd.f32 %v467, %v1240
        %1242 = vmatprep.mubr.bf16.mxu0 %v603
        %1243 = vmatmul.mubr.bf16.gmra.mxu0 %v602
        %v1244 = vpop.f32.mrf.mxu0
        %v1245 = vadd.f32 %v463, %v1244
        %v1246 = vpop.f32.mrf.mxu0
        %v1247 = vadd.f32 %v467, %v1246
        %v1248 = vpop.f32.mrf.mxu0
        %v1249 = vadd.f32 %v463, %v1248
        %v1250 = vpop.f32.mrf.mxu0
        %v1251 = vadd.f32 %v467, %v1250
        %1252 = vmatprep.mubr.bf16.mxu0 %v605
        %1253 = vmatmul.mubr.bf16.gmra.mxu0 %v604
        %v1254 = vpop.f32.mrf.mxu0
        %v1255 = vadd.f32 %v463, %v1254
        %v1256 = vpop.f32.mrf.mxu0
        %v1257 = vadd.f32 %v467, %v1256
        %v1258 = vpop.f32.mrf.mxu0
        %v1259 = vadd.f32 %v463, %v1258
        %v1260 = vpop.f32.mrf.mxu0
        %v1261 = vadd.f32 %v467, %v1260
        %1262 = vmatprep.mubr.bf16.mxu0 %v607
        %1263 = vmatmul.mubr.bf16.gmra.mxu0 %v606
        %v1264 = vpop.f32.mrf.mxu0
        %v1265 = vadd.f32 %v463, %v1264
        %v1266 = vpop.f32.mrf.mxu0
        %v1267 = vadd.f32 %v467, %v1266
        %v1268 = vpop.f32.mrf.mxu0
        %v1269 = vadd.f32 %v463, %v1268
        %v1270 = vpop.f32.mrf.mxu0
        %v1271 = vadd.f32 %v467, %v1270
        %1272 = vmatprep.mubr.bf16.mxu0 %v609
        %1273 = vmatmul.mubr.bf16.gmra.mxu0 %v608
        %v1274 = vpop.f32.mrf.mxu0
        %v1275 = vadd.f32 %v463, %v1274
        %v1276 = vpop.f32.mrf.mxu0
        %v1277 = vadd.f32 %v467, %v1276
        %v1278 = vpop.f32.mrf.mxu0
        %v1279 = vadd.f32 %v463, %v1278
        %v1280 = vpop.f32.mrf.mxu0
        %v1281 = vadd.f32 %v467, %v1280
        %1282 = vmatprep.mubr.bf16.mxu0 %v611
        %1283 = vmatmul.mubr.bf16.gmra.mxu0 %v610
        %v1284 = vpop.f32.mrf.mxu0
        %v1285 = vadd.f32 %v463, %v1284
        %v1286 = vpop.f32.mrf.mxu0
        %v1287 = vadd.f32 %v467, %v1286
        %v1288 = vpop.f32.mrf.mxu0
        %v1289 = vadd.f32 %v463, %v1288
        %v1290 = vpop.f32.mrf.mxu0
        %v1291 = vadd.f32 %v467, %v1290
        %1292 = vmatprep.mubr.bf16.mxu0 %v613
        %1293 = vmatmul.mubr.bf16.gmra.mxu0 %v612
        %v1294 = vpop.f32.mrf.mxu0
        %v1295 = vadd.f32 %v463, %v1294
        %v1296 = vpop.f32.mrf.mxu0
        %v1297 = vadd.f32 %v467, %v1296
        %v1298 = vpop.f32.mrf.mxu0
        %v1299 = vadd.f32 %v463, %v1298
        %v1300 = vpop.f32.mrf.mxu0
        %v1301 = vadd.f32 %v467, %v1300
        %1302 = vmatprep.mubr.bf16.mxu0 %v615
        %1303 = vmatmul.mubr.bf16.gmra.mxu0 %v614
        %v1304 = vpop.f32.mrf.mxu0
        %v1305 = vadd.f32 %v463, %v1304
        %v1306 = vpop.f32.mrf.mxu0
        %v1307 = vadd.f32 %v467, %v1306
        %v1308 = vpop.f32.mrf.mxu0
        %v1309 = vadd.f32 %v463, %v1308
        %v1310 = vpop.f32.mrf.mxu0
        %v1311 = vadd.f32 %v467, %v1310
        %1312 = vmatprep.mubr.bf16.mxu0 %v617
        %1313 = vmatmul.mubr.bf16.gmra.mxu0 %v616
        %v1314 = vpop.f32.mrf.mxu0
        %v1315 = vadd.f32 %v463, %v1314
        %v1316 = vpop.f32.mrf.mxu0
        %v1317 = vadd.f32 %v467, %v1316
        %v1318 = vpop.f32.mrf.mxu0
        %v1319 = vadd.f32 %v463, %v1318
        %v1320 = vpop.f32.mrf.mxu0
        %v1321 = vadd.f32 %v467, %v1320
        %1322 = vdwg.mxu0
        %1323 = vmatprep.subr.bf16.mxu0 %v983
        %1324 = vmatpush1.bf16.msra.mxu0 %v982
        %1325 = vmatprep.subr.bf16.mxu0 %v977
        %1326 = vmatpush1.bf16.msra.mxu0 %v976
        %1327 = vmatprep.subr.bf16.mxu0 %v971
        %1328 = vmatpush1.bf16.msra.mxu0 %v970
        %1329 = vmatprep.subr.bf16.mxu0 %v965
        %1330 = vmatpush1.bf16.msra.mxu0 %v964
        %1331 = vmatprep.subr.bf16.mxu0 %v959
        %1332 = vmatpush1.bf16.msra.mxu0 %v958
        %1333 = vmatprep.subr.bf16.mxu0 %v953
        %1334 = vmatpush1.bf16.msra.mxu0 %v952
        %1335 = vmatprep.subr.bf16.mxu0 %v947
        %1336 = vmatpush1.bf16.msra.mxu0 %v946
        %1337 = vmatprep.subr.bf16.mxu0 %v941
        %1338 = vmatpush1.bf16.msra.mxu0 %v940
        %1339 = vmatprep.subr.bf16.mxu0 %v1031
        %1340 = vmatpush2.bf16.msra.mxu0 %v1030
        %1341 = vmatprep.subr.bf16.mxu0 %v1025
        %1342 = vmatpush2.bf16.msra.mxu0 %v1024
        %1343 = vmatprep.subr.bf16.mxu0 %v1019
        %1344 = vmatpush2.bf16.msra.mxu0 %v1018
        %1345 = vmatprep.subr.bf16.mxu0 %v1013
        %1346 = vmatpush2.bf16.msra.mxu0 %v1012
        %1347 = vmatprep.subr.bf16.mxu0 %v1007
        %1348 = vmatpush2.bf16.msra.mxu0 %v1006
        %1349 = vmatprep.subr.bf16.mxu0 %v1001
        %1350 = vmatpush2.bf16.msra.mxu0 %v1000
        %1351 = vmatprep.subr.bf16.mxu0 %v995
        %1352 = vmatpush2.bf16.msra.mxu0 %v994
        %1353 = vmatprep.subr.bf16.mxu0 %v989
        %1354 = vmatpush2.bf16.msra.mxu0 %v988
        %1355 = vmatprep.mubr.bf16.mxu0 %v587
        %1356 = vmatmul.mubr.bf16.gmra.mxu0 %v586
        %v1357 = vpop.f32.mrf.mxu0
        %v1358 = vadd.f32 %v471, %v1357
        %v1359 = vpop.f32.mrf.mxu0
        %v1360 = vadd.f32 %v475, %v1359
        %v1361 = vpop.f32.mrf.mxu0
        %v1362 = vadd.f32 %v471, %v1361
        %v1363 = vpop.f32.mrf.mxu0
        %v1364 = vadd.f32 %v475, %v1363
        %1365 = vmatprep.mubr.bf16.mxu0 %v589
        %1366 = vmatmul.mubr.bf16.gmra.mxu0 %v588
        %v1367 = vpop.f32.mrf.mxu0
        %v1368 = vadd.f32 %v471, %v1367
        %v1369 = vpop.f32.mrf.mxu0
        %v1370 = vadd.f32 %v475, %v1369
        %v1371 = vpop.f32.mrf.mxu0
        %v1372 = vadd.f32 %v471, %v1371
        %v1373 = vpop.f32.mrf.mxu0
        %v1374 = vadd.f32 %v475, %v1373
        %1375 = vmatprep.mubr.bf16.mxu0 %v591
        %1376 = vmatmul.mubr.bf16.gmra.mxu0 %v590
        %v1377 = vpop.f32.mrf.mxu0
        %v1378 = vadd.f32 %v471, %v1377
        %v1379 = vpop.f32.mrf.mxu0
        %v1380 = vadd.f32 %v475, %v1379
        %v1381 = vpop.f32.mrf.mxu0
        %v1382 = vadd.f32 %v471, %v1381
        %v1383 = vpop.f32.mrf.mxu0
        %v1384 = vadd.f32 %v475, %v1383
        %1385 = vmatprep.mubr.bf16.mxu0 %v593
        %1386 = vmatmul.mubr.bf16.gmra.mxu0 %v592
        %v1387 = vpop.f32.mrf.mxu0
        %v1388 = vadd.f32 %v471, %v1387
        %v1389 = vpop.f32.mrf.mxu0
        %v1390 = vadd.f32 %v475, %v1389
        %v1391 = vpop.f32.mrf.mxu0
        %v1392 = vadd.f32 %v471, %v1391
        %v1393 = vpop.f32.mrf.mxu0
        %v1394 = vadd.f32 %v475, %v1393
        %1395 = vmatprep.mubr.bf16.mxu0 %v595
        %1396 = vmatmul.mubr.bf16.gmra.mxu0 %v594
        %v1397 = vpop.f32.mrf.mxu0
        %v1398 = vadd.f32 %v471, %v1397
        %v1399 = vpop.f32.mrf.mxu0
        %v1400 = vadd.f32 %v475, %v1399
        %v1401 = vpop.f32.mrf.mxu0
        %v1402 = vadd.f32 %v471, %v1401
        %v1403 = vpop.f32.mrf.mxu0
        %v1404 = vadd.f32 %v475, %v1403
        %1405 = vmatprep.mubr.bf16.mxu0 %v597
        %1406 = vmatmul.mubr.bf16.gmra.mxu0 %v596
        %v1407 = vpop.f32.mrf.mxu0
        %v1408 = vadd.f32 %v471, %v1407
        %v1409 = vpop.f32.mrf.mxu0
        %v1410 = vadd.f32 %v475, %v1409
        %v1411 = vpop.f32.mrf.mxu0
        %v1412 = vadd.f32 %v471, %v1411
        %v1413 = vpop.f32.mrf.mxu0
        %v1414 = vadd.f32 %v475, %v1413
        %1415 = vmatprep.mubr.bf16.mxu0 %v599
        %1416 = vmatmul.mubr.bf16.gmra.mxu0 %v598
        %v1417 = vpop.f32.mrf.mxu0
        %v1418 = vadd.f32 %v471, %v1417
        %v1419 = vpop.f32.mrf.mxu0
        %v1420 = vadd.f32 %v475, %v1419
        %v1421 = vpop.f32.mrf.mxu0
        %v1422 = vadd.f32 %v471, %v1421
        %v1423 = vpop.f32.mrf.mxu0
        %v1424 = vadd.f32 %v475, %v1423
        %1425 = vmatprep.mubr.bf16.mxu0 %v601
        %1426 = vmatmul.mubr.bf16.gmra.mxu0 %v600
        %v1427 = vpop.f32.mrf.mxu0
        %v1428 = vadd.f32 %v471, %v1427
        %v1429 = vpop.f32.mrf.mxu0
        %v1430 = vadd.f32 %v475, %v1429
        %v1431 = vpop.f32.mrf.mxu0
        %v1432 = vadd.f32 %v471, %v1431
        %v1433 = vpop.f32.mrf.mxu0
        %v1434 = vadd.f32 %v475, %v1433
        %1435 = vmatprep.mubr.bf16.mxu0 %v603
        %1436 = vmatmul.mubr.bf16.gmra.mxu0 %v602
        %v1437 = vpop.f32.mrf.mxu0
        %v1438 = vadd.f32 %v471, %v1437
        %v1439 = vpop.f32.mrf.mxu0
        %v1440 = vadd.f32 %v475, %v1439
        %v1441 = vpop.f32.mrf.mxu0
        %v1442 = vadd.f32 %v471, %v1441
        %v1443 = vpop.f32.mrf.mxu0
        %v1444 = vadd.f32 %v475, %v1443
        %1445 = vmatprep.mubr.bf16.mxu0 %v605
        %1446 = vmatmul.mubr.bf16.gmra.mxu0 %v604
        %v1447 = vpop.f32.mrf.mxu0
        %v1448 = vadd.f32 %v471, %v1447
        %v1449 = vpop.f32.mrf.mxu0
        %v1450 = vadd.f32 %v475, %v1449
        %v1451 = vpop.f32.mrf.mxu0
        %v1452 = vadd.f32 %v471, %v1451
        %v1453 = vpop.f32.mrf.mxu0
        %v1454 = vadd.f32 %v475, %v1453
        %1455 = vmatprep.mubr.bf16.mxu0 %v607
        %1456 = vmatmul.mubr.bf16.gmra.mxu0 %v606
        %v1457 = vpop.f32.mrf.mxu0
        %v1458 = vadd.f32 %v471, %v1457
        %v1459 = vpop.f32.mrf.mxu0
        %v1460 = vadd.f32 %v475, %v1459
        %v1461 = vpop.f32.mrf.mxu0
        %v1462 = vadd.f32 %v471, %v1461
        %v1463 = vpop.f32.mrf.mxu0
        %v1464 = vadd.f32 %v475, %v1463
        %1465 = vmatprep.mubr.bf16.mxu0 %v609
        %1466 = vmatmul.mubr.bf16.gmra.mxu0 %v608
        %v1467 = vpop.f32.mrf.mxu0
        %v1468 = vadd.f32 %v471, %v1467
        %v1469 = vpop.f32.mrf.mxu0
        %v1470 = vadd.f32 %v475, %v1469
        %v1471 = vpop.f32.mrf.mxu0
        %v1472 = vadd.f32 %v471, %v1471
        %v1473 = vpop.f32.mrf.mxu0
        %v1474 = vadd.f32 %v475, %v1473
        %1475 = vmatprep.mubr.bf16.mxu0 %v611
        %1476 = vmatmul.mubr.bf16.gmra.mxu0 %v610
        %v1477 = vpop.f32.mrf.mxu0
        %v1478 = vadd.f32 %v471, %v1477
        %v1479 = vpop.f32.mrf.mxu0
        %v1480 = vadd.f32 %v475, %v1479
        %v1481 = vpop.f32.mrf.mxu0
        %v1482 = vadd.f32 %v471, %v1481
        %v1483 = vpop.f32.mrf.mxu0
        %v1484 = vadd.f32 %v475, %v1483
        %1485 = vmatprep.mubr.bf16.mxu0 %v613
        %1486 = vmatmul.mubr.bf16.gmra.mxu0 %v612
        %v1487 = vpop.f32.mrf.mxu0
        %v1488 = vadd.f32 %v471, %v1487
        %v1489 = vpop.f32.mrf.mxu0
        %v1490 = vadd.f32 %v475, %v1489
        %v1491 = vpop.f32.mrf.mxu0
        %v1492 = vadd.f32 %v471, %v1491
        %v1493 = vpop.f32.mrf.mxu0
        %v1494 = vadd.f32 %v475, %v1493
        %1495 = vmatprep.mubr.bf16.mxu0 %v615
        %1496 = vmatmul.mubr.bf16.gmra.mxu0 %v614
        %v1497 = vpop.f32.mrf.mxu0
        %v1498 = vadd.f32 %v471, %v1497
        %v1499 = vpop.f32.mrf.mxu0
        %v1500 = vadd.f32 %v475, %v1499
        %v1501 = vpop.f32.mrf.mxu0
        %v1502 = vadd.f32 %v471, %v1501
        %v1503 = vpop.f32.mrf.mxu0
        %v1504 = vadd.f32 %v475, %v1503
        %1505 = vmatprep.mubr.bf16.mxu0 %v617
        %1506 = vmatmul.mubr.bf16.gmra.mxu0 %v616
        %v1507 = vpop.f32.mrf.mxu0
        %v1508 = vadd.f32 %v471, %v1507
        %v1509 = vpop.f32.mrf.mxu0
        %v1510 = vadd.f32 %v475, %v1509
        %v1511 = vpop.f32.mrf.mxu0
        %v1512 = vadd.f32 %v471, %v1511
        %v1513 = vpop.f32.mrf.mxu0
        %v1514 = vadd.f32 %v475, %v1513
        %1515 = vdwg.mxu0
        %1516 = vmatprep.subr.bf16.mxu0 %v985
        %1517 = vmatpush1.bf16.msra.mxu0 %v984
        %1518 = vmatprep.subr.bf16.mxu0 %v979
        %1519 = vmatpush1.bf16.msra.mxu0 %v978
        %1520 = vmatprep.subr.bf16.mxu0 %v973
        %1521 = vmatpush1.bf16.msra.mxu0 %v972
        %1522 = vmatprep.subr.bf16.mxu0 %v967
        %1523 = vmatpush1.bf16.msra.mxu0 %v966
        %1524 = vmatprep.subr.bf16.mxu0 %v961
        %1525 = vmatpush1.bf16.msra.mxu0 %v960
        %1526 = vmatprep.subr.bf16.mxu0 %v955
        %1527 = vmatpush1.bf16.msra.mxu0 %v954
        %1528 = vmatprep.subr.bf16.mxu0 %v949
        %1529 = vmatpush1.bf16.msra.mxu0 %v948
        %1530 = vmatprep.subr.bf16.mxu0 %v943
        %1531 = vmatpush1.bf16.msra.mxu0 %v942
        %1532 = vmatprep.subr.bf16.mxu0 %v1033
        %1533 = vmatpush2.bf16.msra.mxu0 %v1032
        %1534 = vmatprep.subr.bf16.mxu0 %v1027
        %1535 = vmatpush2.bf16.msra.mxu0 %v1026
        %1536 = vmatprep.subr.bf16.mxu0 %v1021
        %1537 = vmatpush2.bf16.msra.mxu0 %v1020
        %1538 = vmatprep.subr.bf16.mxu0 %v1015
        %1539 = vmatpush2.bf16.msra.mxu0 %v1014
        %1540 = vmatprep.subr.bf16.mxu0 %v1009
        %1541 = vmatpush2.bf16.msra.mxu0 %v1008
        %1542 = vmatprep.subr.bf16.mxu0 %v1003
        %1543 = vmatpush2.bf16.msra.mxu0 %v1002
        %1544 = vmatprep.subr.bf16.mxu0 %v997
        %1545 = vmatpush2.bf16.msra.mxu0 %v996
        %1546 = vmatprep.subr.bf16.mxu0 %v991
        %1547 = vmatpush2.bf16.msra.mxu0 %v990
        %1548 = vmatprep.mubr.bf16.mxu0 %v587
        %1549 = vmatmul.mubr.bf16.gmra.mxu0 %v586
        %v1550 = vpop.f32.mrf.mxu0
        %v1551 = vadd.f32 %v479, %v1550
        %v1552 = vpop.f32.mrf.mxu0
        %v1553 = vadd.f32 %v483, %v1552
        %v1554 = vpop.f32.mrf.mxu0
        %v1555 = vadd.f32 %v479, %v1554
        %v1556 = vpop.f32.mrf.mxu0
        %v1557 = vadd.f32 %v483, %v1556
        %1558 = vmatprep.mubr.bf16.mxu0 %v589
        %1559 = vmatmul.mubr.bf16.gmra.mxu0 %v588
        %v1560 = vpop.f32.mrf.mxu0
        %v1561 = vadd.f32 %v479, %v1560
        %v1562 = vpop.f32.mrf.mxu0
        %v1563 = vadd.f32 %v483, %v1562
        %v1564 = vpop.f32.mrf.mxu0
        %v1565 = vadd.f32 %v479, %v1564
        %v1566 = vpop.f32.mrf.mxu0
        %v1567 = vadd.f32 %v483, %v1566
        %1568 = vmatprep.mubr.bf16.mxu0 %v591
        %1569 = vmatmul.mubr.bf16.gmra.mxu0 %v590
        %v1570 = vpop.f32.mrf.mxu0
        %v1571 = vadd.f32 %v479, %v1570
        %v1572 = vpop.f32.mrf.mxu0
        %v1573 = vadd.f32 %v483, %v1572
        %v1574 = vpop.f32.mrf.mxu0
        %v1575 = vadd.f32 %v479, %v1574
        %v1576 = vpop.f32.mrf.mxu0
        %v1577 = vadd.f32 %v483, %v1576
        %1578 = vmatprep.mubr.bf16.mxu0 %v593
        %1579 = vmatmul.mubr.bf16.gmra.mxu0 %v592
        %v1580 = vpop.f32.mrf.mxu0
        %v1581 = vadd.f32 %v479, %v1580
        %v1582 = vpop.f32.mrf.mxu0
        %v1583 = vadd.f32 %v483, %v1582
        %v1584 = vpop.f32.mrf.mxu0
        %v1585 = vadd.f32 %v479, %v1584
        %v1586 = vpop.f32.mrf.mxu0
        %v1587 = vadd.f32 %v483, %v1586
        %1588 = vmatprep.mubr.bf16.mxu0 %v595
        %1589 = vmatmul.mubr.bf16.gmra.mxu0 %v594
        %v1590 = vpop.f32.mrf.mxu0
        %v1591 = vadd.f32 %v479, %v1590
        %v1592 = vpop.f32.mrf.mxu0
        %v1593 = vadd.f32 %v483, %v1592
        %v1594 = vpop.f32.mrf.mxu0
        %v1595 = vadd.f32 %v479, %v1594
        %v1596 = vpop.f32.mrf.mxu0
        %v1597 = vadd.f32 %v483, %v1596
        %1598 = vmatprep.mubr.bf16.mxu0 %v597
        %1599 = vmatmul.mubr.bf16.gmra.mxu0 %v596
        %v1600 = vpop.f32.mrf.mxu0
        %v1601 = vadd.f32 %v479, %v1600
        %v1602 = vpop.f32.mrf.mxu0
        %v1603 = vadd.f32 %v483, %v1602
        %v1604 = vpop.f32.mrf.mxu0
        %v1605 = vadd.f32 %v479, %v1604
        %v1606 = vpop.f32.mrf.mxu0
        %v1607 = vadd.f32 %v483, %v1606
        %1608 = vmatprep.mubr.bf16.mxu0 %v599
        %1609 = vmatmul.mubr.bf16.gmra.mxu0 %v598
        %v1610 = vpop.f32.mrf.mxu0
        %v1611 = vadd.f32 %v479, %v1610
        %v1612 = vpop.f32.mrf.mxu0
        %v1613 = vadd.f32 %v483, %v1612
        %v1614 = vpop.f32.mrf.mxu0
        %v1615 = vadd.f32 %v479, %v1614
        %v1616 = vpop.f32.mrf.mxu0
        %v1617 = vadd.f32 %v483, %v1616
        %1618 = vmatprep.mubr.bf16.mxu0 %v601
        %1619 = vmatmul.mubr.bf16.gmra.mxu0 %v600
        %v1620 = vpop.f32.mrf.mxu0
        %v1621 = vadd.f32 %v479, %v1620
        %v1622 = vpop.f32.mrf.mxu0
        %v1623 = vadd.f32 %v483, %v1622
        %v1624 = vpop.f32.mrf.mxu0
        %v1625 = vadd.f32 %v479, %v1624
        %v1626 = vpop.f32.mrf.mxu0
        %v1627 = vadd.f32 %v483, %v1626
        %1628 = vmatprep.mubr.bf16.mxu0 %v603
        %1629 = vmatmul.mubr.bf16.gmra.mxu0 %v602
        %v1630 = vpop.f32.mrf.mxu0
        %v1631 = vadd.f32 %v479, %v1630
        %v1632 = vpop.f32.mrf.mxu0
        %v1633 = vadd.f32 %v483, %v1632
        %v1634 = vpop.f32.mrf.mxu0
        %v1635 = vadd.f32 %v479, %v1634
        %v1636 = vpop.f32.mrf.mxu0
        %v1637 = vadd.f32 %v483, %v1636
        %1638 = vmatprep.mubr.bf16.mxu0 %v605
        %1639 = vmatmul.mubr.bf16.gmra.mxu0 %v604
        %v1640 = vpop.f32.mrf.mxu0
        %v1641 = vadd.f32 %v479, %v1640
        %v1642 = vpop.f32.mrf.mxu0
        %v1643 = vadd.f32 %v483, %v1642
        %v1644 = vpop.f32.mrf.mxu0
        %v1645 = vadd.f32 %v479, %v1644
        %v1646 = vpop.f32.mrf.mxu0
        %v1647 = vadd.f32 %v483, %v1646
        %1648 = vmatprep.mubr.bf16.mxu0 %v607
        %1649 = vmatmul.mubr.bf16.gmra.mxu0 %v606
        %v1650 = vpop.f32.mrf.mxu0
        %v1651 = vadd.f32 %v479, %v1650
        %v1652 = vpop.f32.mrf.mxu0
        %v1653 = vadd.f32 %v483, %v1652
        %v1654 = vpop.f32.mrf.mxu0
        %v1655 = vadd.f32 %v479, %v1654
        %v1656 = vpop.f32.mrf.mxu0
        %v1657 = vadd.f32 %v483, %v1656
        %1658 = vmatprep.mubr.bf16.mxu0 %v609
        %1659 = vmatmul.mubr.bf16.gmra.mxu0 %v608
        %v1660 = vpop.f32.mrf.mxu0
        %v1661 = vadd.f32 %v479, %v1660
        %v1662 = vpop.f32.mrf.mxu0
        %v1663 = vadd.f32 %v483, %v1662
        %v1664 = vpop.f32.mrf.mxu0
        %v1665 = vadd.f32 %v479, %v1664
        %v1666 = vpop.f32.mrf.mxu0
        %v1667 = vadd.f32 %v483, %v1666
        %1668 = vmatprep.mubr.bf16.mxu0 %v611
        %1669 = vmatmul.mubr.bf16.gmra.mxu0 %v610
        %v1670 = vpop.f32.mrf.mxu0
        %v1671 = vadd.f32 %v479, %v1670
        %v1672 = vpop.f32.mrf.mxu0
        %v1673 = vadd.f32 %v483, %v1672
        %v1674 = vpop.f32.mrf.mxu0
        %v1675 = vadd.f32 %v479, %v1674
        %v1676 = vpop.f32.mrf.mxu0
        %v1677 = vadd.f32 %v483, %v1676
        %1678 = vmatprep.mubr.bf16.mxu0 %v613
        %1679 = vmatmul.mubr.bf16.gmra.mxu0 %v612
        %v1680 = vpop.f32.mrf.mxu0
        %v1681 = vadd.f32 %v479, %v1680
        %v1682 = vpop.f32.mrf.mxu0
        %v1683 = vadd.f32 %v483, %v1682
        %v1684 = vpop.f32.mrf.mxu0
        %v1685 = vadd.f32 %v479, %v1684
        %v1686 = vpop.f32.mrf.mxu0
        %v1687 = vadd.f32 %v483, %v1686
        %1688 = vmatprep.mubr.bf16.mxu0 %v615
        %1689 = vmatmul.mubr.bf16.gmra.mxu0 %v614
        %v1690 = vpop.f32.mrf.mxu0
        %v1691 = vadd.f32 %v479, %v1690
        %v1692 = vpop.f32.mrf.mxu0
        %v1693 = vadd.f32 %v483, %v1692
        %v1694 = vpop.f32.mrf.mxu0
        %v1695 = vadd.f32 %v479, %v1694
        %v1696 = vpop.f32.mrf.mxu0
        %v1697 = vadd.f32 %v483, %v1696
        %1698 = vmatprep.mubr.bf16.mxu0 %v617
        %1699 = vmatmul.mubr.bf16.gmra.mxu0 %v616
        %v1700 = vpop.f32.mrf.mxu0
        %v1701 = vadd.f32 %v479, %v1700
        %v1702 = vpop.f32.mrf.mxu0
        %v1703 = vadd.f32 %v483, %v1702
        %v1704 = vpop.f32.mrf.mxu0
        %v1705 = vadd.f32 %v479, %v1704
        %v1706 = vpop.f32.mrf.mxu0
        %v1707 = vadd.f32 %v483, %v1706
        %1708 = vdwg.mxu0
        %v1709 = vpack.c.bf16 %v1169, %v1165
        %v1710 = vpack.c.bf16 %v1171, %v1167
        %v1711 = vpack.c.bf16 %v1362, %v1358
        %v1712 = vpack.c.bf16 %v1364, %v1360
        %v1713 = vpack.c.bf16 %v1555, %v1551
        %v1714 = vpack.c.bf16 %v1557, %v1553
        %v1715 = vpack.c.bf16 %v1179, %v1175
        %v1716 = vpack.c.bf16 %v1181, %v1177
        %v1717 = vpack.c.bf16 %v1372, %v1368
        %v1718 = vpack.c.bf16 %v1374, %v1370
        %v1719 = vpack.c.bf16 %v1565, %v1561
        %v1720 = vpack.c.bf16 %v1567, %v1563
        %v1721 = vpack.c.bf16 %v1189, %v1185
        %v1722 = vpack.c.bf16 %v1191, %v1187
        %v1723 = vpack.c.bf16 %v1382, %v1378
        %v1724 = vpack.c.bf16 %v1384, %v1380
        %v1725 = vpack.c.bf16 %v1575, %v1571
        %v1726 = vpack.c.bf16 %v1577, %v1573
        %v1727 = vpack.c.bf16 %v1199, %v1195
        %v1728 = vpack.c.bf16 %v1201, %v1197
        %v1729 = vpack.c.bf16 %v1392, %v1388
        %v1730 = vpack.c.bf16 %v1394, %v1390
        %v1731 = vpack.c.bf16 %v1585, %v1581
        %v1732 = vpack.c.bf16 %v1587, %v1583
        %v1733 = vpack.c.bf16 %v1209, %v1205
        %v1734 = vpack.c.bf16 %v1211, %v1207
        %v1735 = vpack.c.bf16 %v1402, %v1398
        %v1736 = vpack.c.bf16 %v1404, %v1400
        %v1737 = vpack.c.bf16 %v1595, %v1591
        %v1738 = vpack.c.bf16 %v1597, %v1593
        %v1739 = vpack.c.bf16 %v1219, %v1215
        %v1740 = vpack.c.bf16 %v1221, %v1217
        %v1741 = vpack.c.bf16 %v1412, %v1408
        %v1742 = vpack.c.bf16 %v1414, %v1410
        %v1743 = vpack.c.bf16 %v1605, %v1601
        %v1744 = vpack.c.bf16 %v1607, %v1603
        %v1745 = vpack.c.bf16 %v1229, %v1225
        %v1746 = vpack.c.bf16 %v1231, %v1227
        %v1747 = vpack.c.bf16 %v1422, %v1418
        %v1748 = vpack.c.bf16 %v1424, %v1420
        %v1749 = vpack.c.bf16 %v1615, %v1611
        %v1750 = vpack.c.bf16 %v1617, %v1613
        %v1751 = vpack.c.bf16 %v1239, %v1235
        %v1752 = vpack.c.bf16 %v1241, %v1237
        %v1753 = vpack.c.bf16 %v1432, %v1428
        %v1754 = vpack.c.bf16 %v1434, %v1430
        %v1755 = vpack.c.bf16 %v1625, %v1621
        %v1756 = vpack.c.bf16 %v1627, %v1623
        %v1757 = vpack.c.bf16 %v1249, %v1245
        %v1758 = vpack.c.bf16 %v1251, %v1247
        %v1759 = vpack.c.bf16 %v1442, %v1438
        %v1760 = vpack.c.bf16 %v1444, %v1440
        %v1761 = vpack.c.bf16 %v1635, %v1631
        %v1762 = vpack.c.bf16 %v1637, %v1633
        %v1763 = vpack.c.bf16 %v1259, %v1255
        %v1764 = vpack.c.bf16 %v1261, %v1257
        %v1765 = vpack.c.bf16 %v1452, %v1448
        %v1766 = vpack.c.bf16 %v1454, %v1450
        %v1767 = vpack.c.bf16 %v1645, %v1641
        %v1768 = vpack.c.bf16 %v1647, %v1643
        %v1769 = vpack.c.bf16 %v1269, %v1265
        %v1770 = vpack.c.bf16 %v1271, %v1267
        %v1771 = vpack.c.bf16 %v1462, %v1458
        %v1772 = vpack.c.bf16 %v1464, %v1460
        %v1773 = vpack.c.bf16 %v1655, %v1651
        %v1774 = vpack.c.bf16 %v1657, %v1653
        %v1775 = vpack.c.bf16 %v1279, %v1275
        %v1776 = vpack.c.bf16 %v1281, %v1277
        %v1777 = vpack.c.bf16 %v1472, %v1468
        %v1778 = vpack.c.bf16 %v1474, %v1470
        %v1779 = vpack.c.bf16 %v1665, %v1661
        %v1780 = vpack.c.bf16 %v1667, %v1663
        %v1781 = vpack.c.bf16 %v1289, %v1285
        %v1782 = vpack.c.bf16 %v1291, %v1287
        %v1783 = vpack.c.bf16 %v1482, %v1478
        %v1784 = vpack.c.bf16 %v1484, %v1480
        %v1785 = vpack.c.bf16 %v1675, %v1671
        %v1786 = vpack.c.bf16 %v1677, %v1673
        %v1787 = vpack.c.bf16 %v1299, %v1295
        %v1788 = vpack.c.bf16 %v1301, %v1297
        %v1789 = vpack.c.bf16 %v1492, %v1488
        %v1790 = vpack.c.bf16 %v1494, %v1490
        %v1791 = vpack.c.bf16 %v1685, %v1681
        %v1792 = vpack.c.bf16 %v1687, %v1683
        %v1793 = vpack.c.bf16 %v1309, %v1305
        %v1794 = vpack.c.bf16 %v1311, %v1307
        %v1795 = vpack.c.bf16 %v1502, %v1498
        %v1796 = vpack.c.bf16 %v1504, %v1500
        %v1797 = vpack.c.bf16 %v1695, %v1691
        %v1798 = vpack.c.bf16 %v1697, %v1693
        %v1799 = vpack.c.bf16 %v1319, %v1315
        %v1800 = vpack.c.bf16 %v1321, %v1317
        %v1801 = vpack.c.bf16 %v1512, %v1508
        %v1802 = vpack.c.bf16 %v1514, %v1510
        %v1803 = vpack.c.bf16 %v1705, %v1701
        %v1804 = vpack.c.bf16 %v1707, %v1703
        %v1805 = vld [vmem:[#allocation10] sm:$0xff]
        %v1806 = vld [vmem:[#allocation10 + $0x8] sm:$0xff]
        %v1807 = vld [vmem:[#allocation10 + $0x10] sm:$0xff]
        %v1808 = vld [vmem:[#allocation10 + $0x18] sm:$0xff]
        %v1809 = vld [vmem:[#allocation10 + $0x20] sm:$0xff]
        %v1810 = vld [vmem:[#allocation10 + $0x28] sm:$0xff]
        %v1811 = vld [vmem:[#allocation10 + $0x30] sm:$0xff]
        %v1812 = vld [vmem:[#allocation10 + $0x38] sm:$0xff]
        %v1813 = vld [vmem:[#allocation10 + $0x40] sm:$0xff]
        %v1814 = vld [vmem:[#allocation10 + $0x48] sm:$0xff]
        %v1815 = vld [vmem:[#allocation10 + $0x50] sm:$0xff]
        %v1816 = vld [vmem:[#allocation10 + $0x58] sm:$0xff]
        %v1817 = vld [vmem:[#allocation10 + $0x60] sm:$0xff]
        %v1818 = vld [vmem:[#allocation10 + $0x68] sm:$0xff]
        %v1819 = vld [vmem:[#allocation10 + $0x70] sm:$0xff]
        %v1820 = vld [vmem:[#allocation10 + $0x78] sm:$0xff]
        %v1821 = vld [vmem:[#allocation10 + $0x80] sm:$0xff]
        %v1822 = vld [vmem:[#allocation10 + $0x88] sm:$0xff]
        %v1823 = vld [vmem:[#allocation10 + $0x90] sm:$0xff]
        %v1824 = vld [vmem:[#allocation10 + $0x98] sm:$0xff]
        %v1825 = vld [vmem:[#allocation10 + $0xa0] sm:$0xff]
        %v1826 = vld [vmem:[#allocation10 + $0xa8] sm:$0xff]
        %v1827 = vld [vmem:[#allocation10 + $0xb0] sm:$0xff]
        %v1828 = vld [vmem:[#allocation10 + $0xb8] sm:$0xff]
        %v1829 = vld [vmem:[#allocation10 + $0xc0] sm:$0xff]
        %v1830 = vld [vmem:[#allocation10 + $0xc8] sm:$0xff]
        %v1831 = vld [vmem:[#allocation10 + $0xd0] sm:$0xff]
        %v1832 = vld [vmem:[#allocation10 + $0xd8] sm:$0xff]
        %v1833 = vld [vmem:[#allocation10 + $0xe0] sm:$0xff]
        %v1834 = vld [vmem:[#allocation10 + $0xe8] sm:$0xff]
        %v1835 = vld [vmem:[#allocation10 + $0xf0] sm:$0xff]
        %v1836 = vld [vmem:[#allocation10 + $0xf8] sm:$0xff]
        %v1837 = vld [vmem:[#allocation10 + $0x100] sm:$0xff]
        %v1838 = vld [vmem:[#allocation10 + $0x108] sm:$0xff]
        %v1839 = vld [vmem:[#allocation10 + $0x110] sm:$0xff]
        %v1840 = vld [vmem:[#allocation10 + $0x118] sm:$0xff]
        %v1841 = vld [vmem:[#allocation10 + $0x120] sm:$0xff]
        %v1842 = vld [vmem:[#allocation10 + $0x128] sm:$0xff]
        %v1843 = vld [vmem:[#allocation10 + $0x130] sm:$0xff]
        %v1844 = vld [vmem:[#allocation10 + $0x138] sm:$0xff]
        %v1845 = vld [vmem:[#allocation10 + $0x140] sm:$0xff]
        %v1846 = vld [vmem:[#allocation10 + $0x148] sm:$0xff]
        %v1847 = vld [vmem:[#allocation10 + $0x150] sm:$0xff]
        %v1848 = vld [vmem:[#allocation10 + $0x158] sm:$0xff]
        %v1849 = vld [vmem:[#allocation10 + $0x160] sm:$0xff]
        %v1850 = vld [vmem:[#allocation10 + $0x168] sm:$0xff]
        %v1851 = vld [vmem:[#allocation10 + $0x170] sm:$0xff]
        %v1852 = vld [vmem:[#allocation10 + $0x178] sm:$0xff]
        %v1853 = vld [vmem:[#allocation10 + $0x180] sm:$0xff]
        %v1854 = vld [vmem:[#allocation10 + $0x188] sm:$0xff]
        %v1855 = vld [vmem:[#allocation10 + $0x190] sm:$0xff]
        %v1856 = vld [vmem:[#allocation10 + $0x198] sm:$0xff]
        %v1857 = vld [vmem:[#allocation10 + $0x1a0] sm:$0xff]
        %v1858 = vld [vmem:[#allocation10 + $0x1a8] sm:$0xff]
        %v1859 = vld [vmem:[#allocation10 + $0x1b0] sm:$0xff]
        %v1860 = vld [vmem:[#allocation10 + $0x1b8] sm:$0xff]
        %v1861 = vld [vmem:[#allocation10 + $0x1c0] sm:$0xff]
        %v1862 = vld [vmem:[#allocation10 + $0x1c8] sm:$0xff]
        %v1863 = vld [vmem:[#allocation10 + $0x1d0] sm:$0xff]
        %v1864 = vld [vmem:[#allocation10 + $0x1d8] sm:$0xff]
        %v1865 = vld [vmem:[#allocation10 + $0x1e0] sm:$0xff]
        %v1866 = vld [vmem:[#allocation10 + $0x1e8] sm:$0xff]
        %v1867 = vld [vmem:[#allocation10 + $0x1f0] sm:$0xff]
        %v1868 = vld [vmem:[#allocation10 + $0x1f8] sm:$0xff]
        %1869 = vmatprep.subr.bf16.mxu0 0
        %1870 = vmatpush1.bf16.xpose.msra.mxu0 %v1753
        %1871 = vmatprep.subr.bf16.mxu0 0
        %1872 = vmatpush1.bf16.xpose.msra.mxu0 %v1747
        %1873 = vmatprep.subr.bf16.mxu0 0
        %1874 = vmatpush1.bf16.xpose.msra.mxu0 %v1741
        %1875 = vmatprep.subr.bf16.mxu0 0
        %1876 = vmatpush1.bf16.xpose.msra.mxu0 %v1735
        %1877 = vmatprep.subr.bf16.mxu0 0
        %1878 = vmatpush1.bf16.xpose.msra.mxu0 %v1729
        %1879 = vmatprep.subr.bf16.mxu0 0
        %1880 = vmatpush1.bf16.xpose.msra.mxu0 %v1723
        %1881 = vmatprep.subr.bf16.mxu0 0
        %1882 = vmatpush1.bf16.xpose.msra.mxu0 %v1717
        %1883 = vmatprep.subr.bf16.mxu0 0
        %1884 = vmatpush1.bf16.xpose.msra.mxu0 %v1711
        %1885 = vmatprep.subr.bf16.mxu0 0
        %1886 = vmatpush2.bf16.xpose.msra.mxu0 %v1801
        %1887 = vmatprep.subr.bf16.mxu0 0
        %1888 = vmatpush2.bf16.xpose.msra.mxu0 %v1795
        %1889 = vmatprep.subr.bf16.mxu0 0
        %1890 = vmatpush2.bf16.xpose.msra.mxu0 %v1789
        %1891 = vmatprep.subr.bf16.mxu0 0
        %1892 = vmatpush2.bf16.xpose.msra.mxu0 %v1783
        %1893 = vmatprep.subr.bf16.mxu0 0
        %1894 = vmatpush2.bf16.xpose.msra.mxu0 %v1777
        %1895 = vmatprep.subr.bf16.mxu0 0
        %1896 = vmatpush2.bf16.xpose.msra.mxu0 %v1771
        %1897 = vmatprep.subr.bf16.mxu0 0
        %1898 = vmatpush2.bf16.xpose.msra.mxu0 %v1765
        %1899 = vmatprep.subr.bf16.mxu0 0
        %1900 = vmatpush2.bf16.xpose.msra.mxu0 %v1759
        %1901 = vmatprep.mubr.bf16.mxu0 0
        %1902 = vmatmul.mubr.bf16.gmra.mxu0 %v1709
        %v1903 = vpop.f32.mrf.mxu0
        %v1904 = vadd.f32 %v1805, %v1903
        %v1905 = vpop.f32.mrf.mxu0
        %v1906 = vadd.f32 %v1806, %v1905
        %v1907 = vpop.f32.mrf.mxu0
        %v1908 = vadd.f32 %v1807, %v1907
        %v1909 = vpop.f32.mrf.mxu0
        %v1910 = vadd.f32 %v1808, %v1909
        %1911 = vmatprep.mubr.bf16.mxu0 0
        %1912 = vmatmul.mubr.bf16.gmra.mxu0 %v1715
        %v1913 = vpop.f32.mrf.mxu0
        %v1914 = vadd.f32 %v1809, %v1913
        %v1915 = vpop.f32.mrf.mxu0
        %v1916 = vadd.f32 %v1810, %v1915
        %v1917 = vpop.f32.mrf.mxu0
        %v1918 = vadd.f32 %v1811, %v1917
        %v1919 = vpop.f32.mrf.mxu0
        %v1920 = vadd.f32 %v1812, %v1919
        %1921 = vmatprep.mubr.bf16.mxu0 0
        %1922 = vmatmul.mubr.bf16.gmra.mxu0 %v1721
        %v1923 = vpop.f32.mrf.mxu0
        %v1924 = vadd.f32 %v1813, %v1923
        %v1925 = vpop.f32.mrf.mxu0
        %v1926 = vadd.f32 %v1814, %v1925
        %v1927 = vpop.f32.mrf.mxu0
        %v1928 = vadd.f32 %v1815, %v1927
        %v1929 = vpop.f32.mrf.mxu0
        %v1930 = vadd.f32 %v1816, %v1929
        %1931 = vmatprep.mubr.bf16.mxu0 0
        %1932 = vmatmul.mubr.bf16.gmra.mxu0 %v1727
        %v1933 = vpop.f32.mrf.mxu0
        %v1934 = vadd.f32 %v1817, %v1933
        %v1935 = vpop.f32.mrf.mxu0
        %v1936 = vadd.f32 %v1818, %v1935
        %v1937 = vpop.f32.mrf.mxu0
        %v1938 = vadd.f32 %v1819, %v1937
        %v1939 = vpop.f32.mrf.mxu0
        %v1940 = vadd.f32 %v1820, %v1939
        %1941 = vmatprep.mubr.bf16.mxu0 0
        %1942 = vmatmul.mubr.bf16.gmra.mxu0 %v1733
        %v1943 = vpop.f32.mrf.mxu0
        %v1944 = vadd.f32 %v1821, %v1943
        %v1945 = vpop.f32.mrf.mxu0
        %v1946 = vadd.f32 %v1822, %v1945
        %v1947 = vpop.f32.mrf.mxu0
        %v1948 = vadd.f32 %v1823, %v1947
        %v1949 = vpop.f32.mrf.mxu0
        %v1950 = vadd.f32 %v1824, %v1949
        %1951 = vmatprep.mubr.bf16.mxu0 0
        %1952 = vmatmul.mubr.bf16.gmra.mxu0 %v1739
        %v1953 = vpop.f32.mrf.mxu0
        %v1954 = vadd.f32 %v1825, %v1953
        %v1955 = vpop.f32.mrf.mxu0
        %v1956 = vadd.f32 %v1826, %v1955
        %v1957 = vpop.f32.mrf.mxu0
        %v1958 = vadd.f32 %v1827, %v1957
        %v1959 = vpop.f32.mrf.mxu0
        %v1960 = vadd.f32 %v1828, %v1959
        %1961 = vmatprep.mubr.bf16.mxu0 0
        %1962 = vmatmul.mubr.bf16.gmra.mxu0 %v1745
        %v1963 = vpop.f32.mrf.mxu0
        %v1964 = vadd.f32 %v1829, %v1963
        %v1965 = vpop.f32.mrf.mxu0
        %v1966 = vadd.f32 %v1830, %v1965
        %v1967 = vpop.f32.mrf.mxu0
        %v1968 = vadd.f32 %v1831, %v1967
        %v1969 = vpop.f32.mrf.mxu0
        %v1970 = vadd.f32 %v1832, %v1969
        %1971 = vmatprep.mubr.bf16.mxu0 0
        %1972 = vmatmul.mubr.bf16.gmra.mxu0 %v1751
        %v1973 = vpop.f32.mrf.mxu0
        %v1974 = vadd.f32 %v1833, %v1973
        %v1975 = vpop.f32.mrf.mxu0
        %v1976 = vadd.f32 %v1834, %v1975
        %v1977 = vpop.f32.mrf.mxu0
        %v1978 = vadd.f32 %v1835, %v1977
        %v1979 = vpop.f32.mrf.mxu0
        %v1980 = vadd.f32 %v1836, %v1979
        %1981 = vmatprep.mubr.bf16.mxu0 0
        %1982 = vmatmul.mubr.bf16.gmra.mxu0 %v1757
        %v1983 = vpop.f32.mrf.mxu0
        %v1984 = vadd.f32 %v1837, %v1983
        %v1985 = vpop.f32.mrf.mxu0
        %v1986 = vadd.f32 %v1838, %v1985
        %v1987 = vpop.f32.mrf.mxu0
        %v1988 = vadd.f32 %v1839, %v1987
        %v1989 = vpop.f32.mrf.mxu0
        %v1990 = vadd.f32 %v1840, %v1989
        %1991 = vmatprep.mubr.bf16.mxu0 0
        %1992 = vmatmul.mubr.bf16.gmra.mxu0 %v1763
        %v1993 = vpop.f32.mrf.mxu0
        %v1994 = vadd.f32 %v1841, %v1993
        %v1995 = vpop.f32.mrf.mxu0
        %v1996 = vadd.f32 %v1842, %v1995
        %v1997 = vpop.f32.mrf.mxu0
        %v1998 = vadd.f32 %v1843, %v1997
        %v1999 = vpop.f32.mrf.mxu0
        %v2000 = vadd.f32 %v1844, %v1999
        %2001 = vmatprep.mubr.bf16.mxu0 0
        %2002 = vmatmul.mubr.bf16.gmra.mxu0 %v1769
        %v2003 = vpop.f32.mrf.mxu0
        %v2004 = vadd.f32 %v1845, %v2003
        %v2005 = vpop.f32.mrf.mxu0
        %v2006 = vadd.f32 %v1846, %v2005
        %v2007 = vpop.f32.mrf.mxu0
        %v2008 = vadd.f32 %v1847, %v2007
        %v2009 = vpop.f32.mrf.mxu0
        %v2010 = vadd.f32 %v1848, %v2009
        %2011 = vmatprep.mubr.bf16.mxu0 0
        %2012 = vmatmul.mubr.bf16.gmra.mxu0 %v1775
        %v2013 = vpop.f32.mrf.mxu0
        %v2014 = vadd.f32 %v1849, %v2013
        %v2015 = vpop.f32.mrf.mxu0
        %v2016 = vadd.f32 %v1850, %v2015
        %v2017 = vpop.f32.mrf.mxu0
        %v2018 = vadd.f32 %v1851, %v2017
        %v2019 = vpop.f32.mrf.mxu0
        %v2020 = vadd.f32 %v1852, %v2019
        %2021 = vmatprep.mubr.bf16.mxu0 0
        %2022 = vmatmul.mubr.bf16.gmra.mxu0 %v1781
        %v2023 = vpop.f32.mrf.mxu0
        %v2024 = vadd.f32 %v1853, %v2023
        %v2025 = vpop.f32.mrf.mxu0
        %v2026 = vadd.f32 %v1854, %v2025
        %v2027 = vpop.f32.mrf.mxu0
        %v2028 = vadd.f32 %v1855, %v2027
        %v2029 = vpop.f32.mrf.mxu0
        %v2030 = vadd.f32 %v1856, %v2029
        %2031 = vmatprep.mubr.bf16.mxu0 0
        %2032 = vmatmul.mubr.bf16.gmra.mxu0 %v1787
        %v2033 = vpop.f32.mrf.mxu0
        %v2034 = vadd.f32 %v1857, %v2033
        %v2035 = vpop.f32.mrf.mxu0
        %v2036 = vadd.f32 %v1858, %v2035
        %v2037 = vpop.f32.mrf.mxu0
        %v2038 = vadd.f32 %v1859, %v2037
        %v2039 = vpop.f32.mrf.mxu0
        %v2040 = vadd.f32 %v1860, %v2039
        %2041 = vmatprep.mubr.bf16.mxu0 0
        %2042 = vmatmul.mubr.bf16.gmra.mxu0 %v1793
        %v2043 = vpop.f32.mrf.mxu0
        %v2044 = vadd.f32 %v1861, %v2043
        %v2045 = vpop.f32.mrf.mxu0
        %v2046 = vadd.f32 %v1862, %v2045
        %v2047 = vpop.f32.mrf.mxu0
        %v2048 = vadd.f32 %v1863, %v2047
        %v2049 = vpop.f32.mrf.mxu0
        %v2050 = vadd.f32 %v1864, %v2049
        %2051 = vmatprep.mubr.bf16.mxu0 0
        %2052 = vmatmul.mubr.bf16.gmra.mxu0 %v1799
        %v2053 = vpop.f32.mrf.mxu0
        %v2054 = vadd.f32 %v1865, %v2053
        %v2055 = vpop.f32.mrf.mxu0
        %v2056 = vadd.f32 %v1866, %v2055
        %v2057 = vpop.f32.mrf.mxu0
        %v2058 = vadd.f32 %v1867, %v2057
        %v2059 = vpop.f32.mrf.mxu0
        %v2060 = vadd.f32 %v1868, %v2059
        %2061 = vdwg.mxu0
        %v2062 = vmax.f32 %v1904, %v1906
        %2063 = vmax.xlane.f32.xlu0 %v2062
        %v2064 = vpop.xlane.xlu0 %2063
        %v2065 = vmax.f32 %v1908, %v1910
        %2066 = vmax.xlane.f32.xlu0 %v2065
        %v2067 = vpop.xlane.xlu0 %2066
        %v2068 = vmax.f32 %v1914, %v1916
        %2069 = vmax.xlane.f32.xlu0 %v2068
        %v2070 = vpop.xlane.xlu0 %2069
        %v2071 = vmax.f32 %v1918, %v1920
        %2072 = vmax.xlane.f32.xlu0 %v2071
        %v2073 = vpop.xlane.xlu0 %2072
        %v2074 = vmax.f32 %v1924, %v1926
        %2075 = vmax.xlane.f32.xlu0 %v2074
        %v2076 = vpop.xlane.xlu0 %2075
        %v2077 = vmax.f32 %v1928, %v1930
        %2078 = vmax.xlane.f32.xlu0 %v2077
        %v2079 = vpop.xlane.xlu0 %2078
        %v2080 = vmax.f32 %v1934, %v1936
        %2081 = vmax.xlane.f32.xlu0 %v2080
        %v2082 = vpop.xlane.xlu0 %2081
        %v2083 = vmax.f32 %v1938, %v1940
        %2084 = vmax.xlane.f32.xlu0 %v2083
        %v2085 = vpop.xlane.xlu0 %2084
        %v2086 = vmax.f32 %v1944, %v1946
        %2087 = vmax.xlane.f32.xlu0 %v2086
        %v2088 = vpop.xlane.xlu0 %2087
        %v2089 = vmax.f32 %v1948, %v1950
        %2090 = vmax.xlane.f32.xlu0 %v2089
        %v2091 = vpop.xlane.xlu0 %2090
        %v2092 = vmax.f32 %v1954, %v1956
        %2093 = vmax.xlane.f32.xlu0 %v2092
        %v2094 = vpop.xlane.xlu0 %2093
        %v2095 = vmax.f32 %v1958, %v1960
        %2096 = vmax.xlane.f32.xlu0 %v2095
        %v2097 = vpop.xlane.xlu0 %2096
        %v2098 = vmax.f32 %v1964, %v1966
        %2099 = vmax.xlane.f32.xlu0 %v2098
        %v2100 = vpop.xlane.xlu0 %2099
        %v2101 = vmax.f32 %v1968, %v1970
        %2102 = vmax.xlane.f32.xlu0 %v2101
        %v2103 = vpop.xlane.xlu0 %2102
        %v2104 = vmax.f32 %v1974, %v1976
        %2105 = vmax.xlane.f32.xlu0 %v2104
        %v2106 = vpop.xlane.xlu0 %2105
        %v2107 = vmax.f32 %v1978, %v1980
        %2108 = vmax.xlane.f32.xlu0 %v2107
        %v2109 = vpop.xlane.xlu0 %2108
        %v2110 = vmax.f32 %v1984, %v1986
        %2111 = vmax.xlane.f32.xlu0 %v2110
        %v2112 = vpop.xlane.xlu0 %2111
        %v2113 = vmax.f32 %v1988, %v1990
        %2114 = vmax.xlane.f32.xlu0 %v2113
        %v2115 = vpop.xlane.xlu0 %2114
        %v2116 = vmax.f32 %v1994, %v1996
        %2117 = vmax.xlane.f32.xlu0 %v2116
        %v2118 = vpop.xlane.xlu0 %2117
        %v2119 = vmax.f32 %v1998, %v2000
        %2120 = vmax.xlane.f32.xlu0 %v2119
        %v2121 = vpop.xlane.xlu0 %2120
        %v2122 = vmax.f32 %v2004, %v2006
        %2123 = vmax.xlane.f32.xlu0 %v2122
        %v2124 = vpop.xlane.xlu0 %2123
        %v2125 = vmax.f32 %v2008, %v2010
        %2126 = vmax.xlane.f32.xlu0 %v2125
        %v2127 = vpop.xlane.xlu0 %2126
        %v2128 = vmax.f32 %v2014, %v2016
        %2129 = vmax.xlane.f32.xlu0 %v2128
        %v2130 = vpop.xlane.xlu0 %2129
        %v2131 = vmax.f32 %v2018, %v2020
        %2132 = vmax.xlane.f32.xlu0 %v2131
        %v2133 = vpop.xlane.xlu0 %2132
        %v2134 = vmax.f32 %v2024, %v2026
        %2135 = vmax.xlane.f32.xlu0 %v2134
        %v2136 = vpop.xlane.xlu0 %2135
        %v2137 = vmax.f32 %v2028, %v2030
        %2138 = vmax.xlane.f32.xlu0 %v2137
        %v2139 = vpop.xlane.xlu0 %2138
        %v2140 = vmax.f32 %v2034, %v2036
        %2141 = vmax.xlane.f32.xlu0 %v2140
        %v2142 = vpop.xlane.xlu0 %2141
        %v2143 = vmax.f32 %v2038, %v2040
        %2144 = vmax.xlane.f32.xlu0 %v2143
        %v2145 = vpop.xlane.xlu0 %2144
        %v2146 = vmax.f32 %v2044, %v2046
        %2147 = vmax.xlane.f32.xlu0 %v2146
        %v2148 = vpop.xlane.xlu0 %2147
        %v2149 = vmax.f32 %v2048, %v2050
        %2150 = vmax.xlane.f32.xlu0 %v2149
        %v2151 = vpop.xlane.xlu0 %2150
        %v2152 = vmax.f32 %v2054, %v2056
        %2153 = vmax.xlane.f32.xlu0 %v2152
        %v2154 = vpop.xlane.xlu0 %2153
        %v2155 = vmax.f32 %v2058, %v2060
        %2156 = vmax.xlane.f32.xlu0 %v2155
        %v2157 = vpop.xlane.xlu0 %2156
        %v2158 = vsub.f32 %v1904, %v2064
        %v2159 = vsub.f32 %v1906, %v2064
        %v2160 = vsub.f32 %v1908, %v2067
        %v2161 = vsub.f32 %v1910, %v2067
        %v2162 = vsub.f32 %v1914, %v2070
        %v2163 = vsub.f32 %v1916, %v2070
        %v2164 = vsub.f32 %v1918, %v2073
        %v2165 = vsub.f32 %v1920, %v2073
        %v2166 = vsub.f32 %v1924, %v2076
        %v2167 = vsub.f32 %v1926, %v2076
        %v2168 = vsub.f32 %v1928, %v2079
        %v2169 = vsub.f32 %v1930, %v2079
        %v2170 = vsub.f32 %v1934, %v2082
        %v2171 = vsub.f32 %v1936, %v2082
        %v2172 = vsub.f32 %v1938, %v2085
        %v2173 = vsub.f32 %v1940, %v2085
        %v2174 = vsub.f32 %v1944, %v2088
        %v2175 = vsub.f32 %v1946, %v2088
        %v2176 = vsub.f32 %v1948, %v2091
        %v2177 = vsub.f32 %v1950, %v2091
        %v2178 = vsub.f32 %v1954, %v2094
        %v2179 = vsub.f32 %v1956, %v2094
        %v2180 = vsub.f32 %v1958, %v2097
        %v2181 = vsub.f32 %v1960, %v2097
        %v2182 = vsub.f32 %v1964, %v2100
        %v2183 = vsub.f32 %v1966, %v2100
        %v2184 = vsub.f32 %v1968, %v2103
        %v2185 = vsub.f32 %v1970, %v2103
        %v2186 = vsub.f32 %v1974, %v2106
        %v2187 = vsub.f32 %v1976, %v2106
        %v2188 = vsub.f32 %v1978, %v2109
        %v2189 = vsub.f32 %v1980, %v2109
        %v2190 = vsub.f32 %v1984, %v2112
        %v2191 = vsub.f32 %v1986, %v2112
        %v2192 = vsub.f32 %v1988, %v2115
        %v2193 = vsub.f32 %v1990, %v2115
        %v2194 = vsub.f32 %v1994, %v2118
        %v2195 = vsub.f32 %v1996, %v2118
        %v2196 = vsub.f32 %v1998, %v2121
        %v2197 = vsub.f32 %v2000, %v2121
        %v2198 = vsub.f32 %v2004, %v2124
        %v2199 = vsub.f32 %v2006, %v2124
        %v2200 = vsub.f32 %v2008, %v2127
        %v2201 = vsub.f32 %v2010, %v2127
        %v2202 = vsub.f32 %v2014, %v2130
        %v2203 = vsub.f32 %v2016, %v2130
        %v2204 = vsub.f32 %v2018, %v2133
        %v2205 = vsub.f32 %v2020, %v2133
        %v2206 = vsub.f32 %v2024, %v2136
        %v2207 = vsub.f32 %v2026, %v2136
        %v2208 = vsub.f32 %v2028, %v2139
        %v2209 = vsub.f32 %v2030, %v2139
        %v2210 = vsub.f32 %v2034, %v2142
        %v2211 = vsub.f32 %v2036, %v2142
        %v2212 = vsub.f32 %v2038, %v2145
        %v2213 = vsub.f32 %v2040, %v2145
        %v2214 = vsub.f32 %v2044, %v2148
        %v2215 = vsub.f32 %v2046, %v2148
        %v2216 = vsub.f32 %v2048, %v2151
        %v2217 = vsub.f32 %v2050, %v2151
        %v2218 = vsub.f32 %v2054, %v2154
        %v2219 = vsub.f32 %v2056, %v2154
        %v2220 = vsub.f32 %v2058, %v2157
        %v2221 = vsub.f32 %v2060, %v2157
        %v2222 = vmul.f32 %v2158, 1.442695
        %v2223 = vpow.pop %v2222
        %v2224 = vmul.f32 %v2159, 1.442695
        %v2225 = vpow.pop %v2224
        %v2226 = vmul.f32 %v2160, 1.442695
        %v2227 = vpow.pop %v2226
        %v2228 = vmul.f32 %v2161, 1.442695
        %v2229 = vpow.pop %v2228
        %v2230 = vmul.f32 %v2162, 1.442695
        %v2231 = vpow.pop %v2230
        %v2232 = vmul.f32 %v2163, 1.442695
        %v2233 = vpow.pop %v2232
        %v2234 = vmul.f32 %v2164, 1.442695
        %v2235 = vpow.pop %v2234
        %v2236 = vmul.f32 %v2165, 1.442695
        %v2237 = vpow.pop %v2236
        %v2238 = vmul.f32 %v2166, 1.442695
        %v2239 = vpow.pop %v2238
        %v2240 = vmul.f32 %v2167, 1.442695
        %v2241 = vpow.pop %v2240
        %v2242 = vmul.f32 %v2168, 1.442695
        %v2243 = vpow.pop %v2242
        %v2244 = vmul.f32 %v2169, 1.442695
        %v2245 = vpow.pop %v2244
        %v2246 = vmul.f32 %v2170, 1.442695
        %v2247 = vpow.pop %v2246
        %v2248 = vmul.f32 %v2171, 1.442695
        %v2249 = vpow.pop %v2248
        %v2250 = vmul.f32 %v2172, 1.442695
        %v2251 = vpow.pop %v2250
        %v2252 = vmul.f32 %v2173, 1.442695
        %v2253 = vpow.pop %v2252
        %v2254 = vmul.f32 %v2174, 1.442695
        %v2255 = vpow.pop %v2254
        %v2256 = vmul.f32 %v2175, 1.442695
        %v2257 = vpow.pop %v2256
        %v2258 = vmul.f32 %v2176, 1.442695
        %v2259 = vpow.pop %v2258
        %v2260 = vmul.f32 %v2177, 1.442695
        %v2261 = vpow.pop %v2260
        %v2262 = vmul.f32 %v2178, 1.442695
        %v2263 = vpow.pop %v2262
        %v2264 = vmul.f32 %v2179, 1.442695
        %v2265 = vpow.pop %v2264
        %v2266 = vmul.f32 %v2180, 1.442695
        %v2267 = vpow.pop %v2266
        %v2268 = vmul.f32 %v2181, 1.442695
        %v2269 = vpow.pop %v2268
        %v2270 = vmul.f32 %v2182, 1.442695
        %v2271 = vpow.pop %v2270
        %v2272 = vmul.f32 %v2183, 1.442695
        %v2273 = vpow.pop %v2272
        %v2274 = vmul.f32 %v2184, 1.442695
        %v2275 = vpow.pop %v2274
        %v2276 = vmul.f32 %v2185, 1.442695
        %v2277 = vpow.pop %v2276
        %v2278 = vmul.f32 %v2186, 1.442695
        %v2279 = vpow.pop %v2278
        %v2280 = vmul.f32 %v2187, 1.442695
        %v2281 = vpow.pop %v2280
        %v2282 = vmul.f32 %v2188, 1.442695
        %v2283 = vpow.pop %v2282
        %v2284 = vmul.f32 %v2189, 1.442695
        %v2285 = vpow.pop %v2284
        %v2286 = vmul.f32 %v2190, 1.442695
        %v2287 = vpow.pop %v2286
        %v2288 = vmul.f32 %v2191, 1.442695
        %v2289 = vpow.pop %v2288
        %v2290 = vmul.f32 %v2192, 1.442695
        %v2291 = vpow.pop %v2290
        %v2292 = vmul.f32 %v2193, 1.442695
        %v2293 = vpow.pop %v2292
        %v2294 = vmul.f32 %v2194, 1.442695
        %v2295 = vpow.pop %v2294
        %v2296 = vmul.f32 %v2195, 1.442695
        %v2297 = vpow.pop %v2296
        %v2298 = vmul.f32 %v2196, 1.442695
        %v2299 = vpow.pop %v2298
        %v2300 = vmul.f32 %v2197, 1.442695
        %v2301 = vpow.pop %v2300
        %v2302 = vmul.f32 %v2198, 1.442695
        %v2303 = vpow.pop %v2302
        %v2304 = vmul.f32 %v2199, 1.442695
        %v2305 = vpow.pop %v2304
        %v2306 = vmul.f32 %v2200, 1.442695
        %v2307 = vpow.pop %v2306
        %v2308 = vmul.f32 %v2201, 1.442695
        %v2309 = vpow.pop %v2308
        %v2310 = vmul.f32 %v2202, 1.442695
        %v2311 = vpow.pop %v2310
        %v2312 = vmul.f32 %v2203, 1.442695
        %v2313 = vpow.pop %v2312
        %v2314 = vmul.f32 %v2204, 1.442695
        %v2315 = vpow.pop %v2314
        %v2316 = vmul.f32 %v2205, 1.442695
        %v2317 = vpow.pop %v2316
        %v2318 = vmul.f32 %v2206, 1.442695
        %v2319 = vpow.pop %v2318
        %v2320 = vmul.f32 %v2207, 1.442695
        %v2321 = vpow.pop %v2320
        %v2322 = vmul.f32 %v2208, 1.442695
        %v2323 = vpow.pop %v2322
        %v2324 = vmul.f32 %v2209, 1.442695
        %v2325 = vpow.pop %v2324
        %v2326 = vmul.f32 %v2210, 1.442695
        %v2327 = vpow.pop %v2326
        %v2328 = vmul.f32 %v2211, 1.442695
        %v2329 = vpow.pop %v2328
        %v2330 = vmul.f32 %v2212, 1.442695
        %v2331 = vpow.pop %v2330
        %v2332 = vmul.f32 %v2213, 1.442695
        %v2333 = vpow.pop %v2332
        %v2334 = vmul.f32 %v2214, 1.442695
        %v2335 = vpow.pop %v2334
        %v2336 = vmul.f32 %v2215, 1.442695
        %v2337 = vpow.pop %v2336
        %v2338 = vmul.f32 %v2216, 1.442695
        %v2339 = vpow.pop %v2338
        %v2340 = vmul.f32 %v2217, 1.442695
        %v2341 = vpow.pop %v2340
        %v2342 = vmul.f32 %v2218, 1.442695
        %v2343 = vpow.pop %v2342
        %v2344 = vmul.f32 %v2219, 1.442695
        %v2345 = vpow.pop %v2344
        %v2346 = vmul.f32 %v2220, 1.442695
        %v2347 = vpow.pop %v2346
        %v2348 = vmul.f32 %v2221, 1.442695
        %v2349 = vpow.pop %v2348
        %v2350 = vadd.f32 %v2223, %v2225
        %2351 = vadd.xlane.f32.xlu0 %v2350
        %v2352 = vpop.xlane.xlu0 %2351
        %v2353 = vadd.f32 %v2227, %v2229
        %2354 = vadd.xlane.f32.xlu0 %v2353
        %v2355 = vpop.xlane.xlu0 %2354
        %v2356 = vadd.f32 %v2231, %v2233
        %2357 = vadd.xlane.f32.xlu0 %v2356
        %v2358 = vpop.xlane.xlu0 %2357
        %v2359 = vadd.f32 %v2235, %v2237
        %2360 = vadd.xlane.f32.xlu0 %v2359
        %v2361 = vpop.xlane.xlu0 %2360
        %v2362 = vadd.f32 %v2239, %v2241
        %2363 = vadd.xlane.f32.xlu0 %v2362
        %v2364 = vpop.xlane.xlu0 %2363
        %v2365 = vadd.f32 %v2243, %v2245
        %2366 = vadd.xlane.f32.xlu0 %v2365
        %v2367 = vpop.xlane.xlu0 %2366
        %v2368 = vadd.f32 %v2247, %v2249
        %2369 = vadd.xlane.f32.xlu0 %v2368
        %v2370 = vpop.xlane.xlu0 %2369
        %v2371 = vadd.f32 %v2251, %v2253
        %2372 = vadd.xlane.f32.xlu0 %v2371
        %v2373 = vpop.xlane.xlu0 %2372
        %v2374 = vadd.f32 %v2255, %v2257
        %2375 = vadd.xlane.f32.xlu0 %v2374
        %v2376 = vpop.xlane.xlu0 %2375
        %v2377 = vadd.f32 %v2259, %v2261
        %2378 = vadd.xlane.f32.xlu0 %v2377
        %v2379 = vpop.xlane.xlu0 %2378
        %v2380 = vadd.f32 %v2263, %v2265
        %2381 = vadd.xlane.f32.xlu0 %v2380
        %v2382 = vpop.xlane.xlu0 %2381
        %v2383 = vadd.f32 %v2267, %v2269
        %2384 = vadd.xlane.f32.xlu0 %v2383
        %v2385 = vpop.xlane.xlu0 %2384
        %v2386 = vadd.f32 %v2271, %v2273
        %2387 = vadd.xlane.f32.xlu0 %v2386
        %v2388 = vpop.xlane.xlu0 %2387
        %v2389 = vadd.f32 %v2275, %v2277
        %2390 = vadd.xlane.f32.xlu0 %v2389
        %v2391 = vpop.xlane.xlu0 %2390
        %v2392 = vadd.f32 %v2279, %v2281
        %2393 = vadd.xlane.f32.xlu0 %v2392
        %v2394 = vpop.xlane.xlu0 %2393
        %v2395 = vadd.f32 %v2283, %v2285
        %2396 = vadd.xlane.f32.xlu0 %v2395
        %v2397 = vpop.xlane.xlu0 %2396
        %v2398 = vadd.f32 %v2287, %v2289
        %2399 = vadd.xlane.f32.xlu0 %v2398
        %v2400 = vpop.xlane.xlu0 %2399
        %v2401 = vadd.f32 %v2291, %v2293
        %2402 = vadd.xlane.f32.xlu0 %v2401
        %v2403 = vpop.xlane.xlu0 %2402
        %v2404 = vadd.f32 %v2295, %v2297
        %2405 = vadd.xlane.f32.xlu0 %v2404
        %v2406 = vpop.xlane.xlu0 %2405
        %v2407 = vadd.f32 %v2299, %v2301
        %2408 = vadd.xlane.f32.xlu0 %v2407
        %v2409 = vpop.xlane.xlu0 %2408
        %v2410 = vadd.f32 %v2303, %v2305
        %2411 = vadd.xlane.f32.xlu0 %v2410
        %v2412 = vpop.xlane.xlu0 %2411
        %v2413 = vadd.f32 %v2307, %v2309
        %2414 = vadd.xlane.f32.xlu0 %v2413
        %v2415 = vpop.xlane.xlu0 %2414
        %v2416 = vadd.f32 %v2311, %v2313
        %2417 = vadd.xlane.f32.xlu0 %v2416
        %v2418 = vpop.xlane.xlu0 %2417
        %v2419 = vadd.f32 %v2315, %v2317
        %2420 = vadd.xlane.f32.xlu0 %v2419
        %v2421 = vpop.xlane.xlu0 %2420
        %v2422 = vadd.f32 %v2319, %v2321
        %2423 = vadd.xlane.f32.xlu0 %v2422
        %v2424 = vpop.xlane.xlu0 %2423
        %v2425 = vadd.f32 %v2323, %v2325
        %2426 = vadd.xlane.f32.xlu0 %v2425
        %v2427 = vpop.xlane.xlu0 %2426
        %v2428 = vadd.f32 %v2327, %v2329
        %2429 = vadd.xlane.f32.xlu0 %v2428
        %v2430 = vpop.xlane.xlu0 %2429
        %v2431 = vadd.f32 %v2331, %v2333
        %2432 = vadd.xlane.f32.xlu0 %v2431
        %v2433 = vpop.xlane.xlu0 %2432
        %v2434 = vadd.f32 %v2335, %v2337
        %2435 = vadd.xlane.f32.xlu0 %v2434
        %v2436 = vpop.xlane.xlu0 %2435
        %v2437 = vadd.f32 %v2339, %v2341
        %2438 = vadd.xlane.f32.xlu0 %v2437
        %v2439 = vpop.xlane.xlu0 %2438
        %v2440 = vadd.f32 %v2343, %v2345
        %2441 = vadd.xlane.f32.xlu0 %v2440
        %v2442 = vpop.xlane.xlu0 %2441
        %v2443 = vadd.f32 %v2347, %v2349
        %2444 = vadd.xlane.f32.xlu0 %v2443
        %v2445 = vpop.xlane.xlu0 %2444
        %v2446 = vrcp.pop %v2352
        %v2447 = vrcp.pop %v2355
        %v2448 = vrcp.pop %v2358
        %v2449 = vrcp.pop %v2361
        %v2450 = vrcp.pop %v2364
        %v2451 = vrcp.pop %v2367
        %v2452 = vrcp.pop %v2370
        %v2453 = vrcp.pop %v2373
        %v2454 = vrcp.pop %v2376
        %v2455 = vrcp.pop %v2379
        %v2456 = vrcp.pop %v2382
        %v2457 = vrcp.pop %v2385
        %v2458 = vrcp.pop %v2388
        %v2459 = vrcp.pop %v2391
        %v2460 = vrcp.pop %v2394
        %v2461 = vrcp.pop %v2397
        %v2462 = vrcp.pop %v2400
        %v2463 = vrcp.pop %v2403
        %v2464 = vrcp.pop %v2406
        %v2465 = vrcp.pop %v2409
        %v2466 = vrcp.pop %v2412
        %v2467 = vrcp.pop %v2415
        %v2468 = vrcp.pop %v2418
        %v2469 = vrcp.pop %v2421
        %v2470 = vrcp.pop %v2424
        %v2471 = vrcp.pop %v2427
        %v2472 = vrcp.pop %v2430
        %v2473 = vrcp.pop %v2433
        %v2474 = vrcp.pop %v2436
        %v2475 = vrcp.pop %v2439
        %v2476 = vrcp.pop %v2442
        %v2477 = vrcp.pop %v2445
        %v2478 = vmul.f32 %v2223, %v2446
        %v2479 = vmul.f32 %v2225, %v2446
        %v2480 = vmul.f32 %v2227, %v2447
        %v2481 = vmul.f32 %v2229, %v2447
        %v2482 = vmul.f32 %v2231, %v2448
        %v2483 = vmul.f32 %v2233, %v2448
        %v2484 = vmul.f32 %v2235, %v2449
        %v2485 = vmul.f32 %v2237, %v2449
        %v2486 = vmul.f32 %v2239, %v2450
        %v2487 = vmul.f32 %v2241, %v2450
        %v2488 = vmul.f32 %v2243, %v2451
        %v2489 = vmul.f32 %v2245, %v2451
        %v2490 = vmul.f32 %v2247, %v2452
        %v2491 = vmul.f32 %v2249, %v2452
        %v2492 = vmul.f32 %v2251, %v2453
        %v2493 = vmul.f32 %v2253, %v2453
        %v2494 = vmul.f32 %v2255, %v2454
        %v2495 = vmul.f32 %v2257, %v2454
        %v2496 = vmul.f32 %v2259, %v2455
        %v2497 = vmul.f32 %v2261, %v2455
        %v2498 = vmul.f32 %v2263, %v2456
        %v2499 = vmul.f32 %v2265, %v2456
        %v2500 = vmul.f32 %v2267, %v2457
        %v2501 = vmul.f32 %v2269, %v2457
        %v2502 = vmul.f32 %v2271, %v2458
        %v2503 = vmul.f32 %v2273, %v2458
        %v2504 = vmul.f32 %v2275, %v2459
        %v2505 = vmul.f32 %v2277, %v2459
        %v2506 = vmul.f32 %v2279, %v2460
        %v2507 = vmul.f32 %v2281, %v2460
        %v2508 = vmul.f32 %v2283, %v2461
        %v2509 = vmul.f32 %v2285, %v2461
        %v2510 = vmul.f32 %v2287, %v2462
        %v2511 = vmul.f32 %v2289, %v2462
        %v2512 = vmul.f32 %v2291, %v2463
        %v2513 = vmul.f32 %v2293, %v2463
        %v2514 = vmul.f32 %v2295, %v2464
        %v2515 = vmul.f32 %v2297, %v2464
        %v2516 = vmul.f32 %v2299, %v2465
        %v2517 = vmul.f32 %v2301, %v2465
        %v2518 = vmul.f32 %v2303, %v2466
        %v2519 = vmul.f32 %v2305, %v2466
        %v2520 = vmul.f32 %v2307, %v2467
        %v2521 = vmul.f32 %v2309, %v2467
        %v2522 = vmul.f32 %v2311, %v2468
        %v2523 = vmul.f32 %v2313, %v2468
        %v2524 = vmul.f32 %v2315, %v2469
        %v2525 = vmul.f32 %v2317, %v2469
        %v2526 = vmul.f32 %v2319, %v2470
        %v2527 = vmul.f32 %v2321, %v2470
        %v2528 = vmul.f32 %v2323, %v2471
        %v2529 = vmul.f32 %v2325, %v2471
        %v2530 = vmul.f32 %v2327, %v2472
        %v2531 = vmul.f32 %v2329, %v2472
        %v2532 = vmul.f32 %v2331, %v2473
        %v2533 = vmul.f32 %v2333, %v2473
        %v2534 = vmul.f32 %v2335, %v2474
        %v2535 = vmul.f32 %v2337, %v2474
        %v2536 = vmul.f32 %v2339, %v2475
        %v2537 = vmul.f32 %v2341, %v2475
        %v2538 = vmul.f32 %v2343, %v2476
        %v2539 = vmul.f32 %v2345, %v2476
        %v2540 = vmul.f32 %v2347, %v2477
        %v2541 = vmul.f32 %v2349, %v2477
        %v2542 = vpack.c.bf16 %v2480, %v2478
        %v2543 = vpack.c.bf16 %v2481, %v2479
        %v2544 = vpack.c.bf16 %v2484, %v2482
        %v2545 = vpack.c.bf16 %v2485, %v2483
        %v2546 = vpack.c.bf16 %v2488, %v2486
        %v2547 = vpack.c.bf16 %v2489, %v2487
        %v2548 = vpack.c.bf16 %v2492, %v2490
        %v2549 = vpack.c.bf16 %v2493, %v2491
        %v2550 = vpack.c.bf16 %v2496, %v2494
        %v2551 = vpack.c.bf16 %v2497, %v2495
        %v2552 = vpack.c.bf16 %v2500, %v2498
        %v2553 = vpack.c.bf16 %v2501, %v2499
        %v2554 = vpack.c.bf16 %v2504, %v2502
        %v2555 = vpack.c.bf16 %v2505, %v2503
        %v2556 = vpack.c.bf16 %v2508, %v2506
        %v2557 = vpack.c.bf16 %v2509, %v2507
        %v2558 = vpack.c.bf16 %v2512, %v2510
        %v2559 = vpack.c.bf16 %v2513, %v2511
        %v2560 = vpack.c.bf16 %v2516, %v2514
        %v2561 = vpack.c.bf16 %v2517, %v2515
        %v2562 = vpack.c.bf16 %v2520, %v2518
        %v2563 = vpack.c.bf16 %v2521, %v2519
        %v2564 = vpack.c.bf16 %v2524, %v2522
        %v2565 = vpack.c.bf16 %v2525, %v2523
        %v2566 = vpack.c.bf16 %v2528, %v2526
        %v2567 = vpack.c.bf16 %v2529, %v2527
        %v2568 = vpack.c.bf16 %v2532, %v2530
        %v2569 = vpack.c.bf16 %v2533, %v2531
        %v2570 = vpack.c.bf16 %v2536, %v2534
        %v2571 = vpack.c.bf16 %v2537, %v2535
        %v2572 = vpack.c.bf16 %v2540, %v2538
        %v2573 = vpack.c.bf16 %v2541, %v2539
        %2574 = vmatprep.subr.bf16.mxu0 0
        %2575 = vmatpush1.bf16.msra.mxu0 %v1755
        %2576 = vmatprep.subr.bf16.mxu0 0
        %2577 = vmatpush1.bf16.msra.mxu0 %v1749
        %2578 = vmatprep.subr.bf16.mxu0 0
        %2579 = vmatpush1.bf16.msra.mxu0 %v1743
        %2580 = vmatprep.subr.bf16.mxu0 0
        %2581 = vmatpush1.bf16.msra.mxu0 %v1737
        %2582 = vmatprep.subr.bf16.mxu0 0
        %2583 = vmatpush1.bf16.msra.mxu0 %v1731
        %2584 = vmatprep.subr.bf16.mxu0 0
        %2585 = vmatpush1.bf16.msra.mxu0 %v1725
        %2586 = vmatprep.subr.bf16.mxu0 0
        %2587 = vmatpush1.bf16.msra.mxu0 %v1719
        %2588 = vmatprep.subr.bf16.mxu0 0
        %2589 = vmatpush1.bf16.msra.mxu0 %v1713
        %2590 = vmatprep.subr.bf16.mxu0 0
        %2591 = vmatpush2.bf16.msra.mxu0 %v1803
        %2592 = vmatprep.subr.bf16.mxu0 0
        %2593 = vmatpush2.bf16.msra.mxu0 %v1797
        %2594 = vmatprep.subr.bf16.mxu0 0
        %2595 = vmatpush2.bf16.msra.mxu0 %v1791
        %2596 = vmatprep.subr.bf16.mxu0 0
        %2597 = vmatpush2.bf16.msra.mxu0 %v1785
        %2598 = vmatprep.subr.bf16.mxu0 0
        %2599 = vmatpush2.bf16.msra.mxu0 %v1779
        %2600 = vmatprep.subr.bf16.mxu0 0
        %2601 = vmatpush2.bf16.msra.mxu0 %v1773
        %2602 = vmatprep.subr.bf16.mxu0 0
        %2603 = vmatpush2.bf16.msra.mxu0 %v1767
        %2604 = vmatprep.subr.bf16.mxu0 0
        %2605 = vmatpush2.bf16.msra.mxu0 %v1761
        %2606 = vmatprep.mubr.bf16.mxu0 %v2543
        %2607 = vmatmul.mubr.bf16.gmra.mxu0 %v2542
        %v2608 = vpop.f32.mrf.mxu0
        %v2609 = vadd.f32 0.0, %v2608
        %v2610 = vpop.f32.mrf.mxu0
        %v2611 = vpop.f32.mrf.mxu0
        %v2612 = vadd.f32 0.0, %v2611
        %v2613 = vpop.f32.mrf.mxu0
        %2614 = vmatprep.mubr.bf16.mxu0 %v2545
        %2615 = vmatmul.mubr.bf16.gmra.mxu0 %v2544
        %v2616 = vpop.f32.mrf.mxu0
        %v2617 = vadd.f32 0.0, %v2616
        %v2618 = vpop.f32.mrf.mxu0
        %v2619 = vpop.f32.mrf.mxu0
        %v2620 = vadd.f32 0.0, %v2619
        %v2621 = vpop.f32.mrf.mxu0
        %2622 = vmatprep.mubr.bf16.mxu0 %v2547
        %2623 = vmatmul.mubr.bf16.gmra.mxu0 %v2546
        %v2624 = vpop.f32.mrf.mxu0
        %v2625 = vadd.f32 0.0, %v2624
        %v2626 = vpop.f32.mrf.mxu0
        %v2627 = vpop.f32.mrf.mxu0
        %v2628 = vadd.f32 0.0, %v2627
        %v2629 = vpop.f32.mrf.mxu0
        %2630 = vmatprep.mubr.bf16.mxu0 %v2549
        %2631 = vmatmul.mubr.bf16.gmra.mxu0 %v2548
        %v2632 = vpop.f32.mrf.mxu0
        %v2633 = vadd.f32 0.0, %v2632
        %v2634 = vpop.f32.mrf.mxu0
        %v2635 = vpop.f32.mrf.mxu0
        %v2636 = vadd.f32 0.0, %v2635
        %v2637 = vpop.f32.mrf.mxu0
        %2638 = vmatprep.mubr.bf16.mxu0 %v2551
        %2639 = vmatmul.mubr.bf16.gmra.mxu0 %v2550
        %v2640 = vpop.f32.mrf.mxu0
        %v2641 = vadd.f32 0.0, %v2640
        %v2642 = vpop.f32.mrf.mxu0
        %v2643 = vpop.f32.mrf.mxu0
        %v2644 = vadd.f32 0.0, %v2643
        %v2645 = vpop.f32.mrf.mxu0
        %2646 = vmatprep.mubr.bf16.mxu0 %v2553
        %2647 = vmatmul.mubr.bf16.gmra.mxu0 %v2552
        %v2648 = vpop.f32.mrf.mxu0
        %v2649 = vadd.f32 0.0, %v2648
        %v2650 = vpop.f32.mrf.mxu0
        %v2651 = vpop.f32.mrf.mxu0
        %v2652 = vadd.f32 0.0, %v2651
        %v2653 = vpop.f32.mrf.mxu0
        %2654 = vmatprep.mubr.bf16.mxu0 %v2555
        %2655 = vmatmul.mubr.bf16.gmra.mxu0 %v2554
        %v2656 = vpop.f32.mrf.mxu0
        %v2657 = vadd.f32 0.0, %v2656
        %v2658 = vpop.f32.mrf.mxu0
        %v2659 = vpop.f32.mrf.mxu0
        %v2660 = vadd.f32 0.0, %v2659
        %v2661 = vpop.f32.mrf.mxu0
        %2662 = vmatprep.mubr.bf16.mxu0 %v2557
        %2663 = vmatmul.mubr.bf16.gmra.mxu0 %v2556
        %v2664 = vpop.f32.mrf.mxu0
        %v2665 = vadd.f32 0.0, %v2664
        %v2666 = vpop.f32.mrf.mxu0
        %v2667 = vpop.f32.mrf.mxu0
        %v2668 = vadd.f32 0.0, %v2667
        %v2669 = vpop.f32.mrf.mxu0
        %2670 = vmatprep.mubr.bf16.mxu0 %v2559
        %2671 = vmatmul.mubr.bf16.gmra.mxu0 %v2558
        %v2672 = vpop.f32.mrf.mxu0
        %v2673 = vadd.f32 0.0, %v2672
        %v2674 = vpop.f32.mrf.mxu0
        %v2675 = vpop.f32.mrf.mxu0
        %v2676 = vadd.f32 0.0, %v2675
        %v2677 = vpop.f32.mrf.mxu0
        %2678 = vmatprep.mubr.bf16.mxu0 %v2561
        %2679 = vmatmul.mubr.bf16.gmra.mxu0 %v2560
        %v2680 = vpop.f32.mrf.mxu0
        %v2681 = vadd.f32 0.0, %v2680
        %v2682 = vpop.f32.mrf.mxu0
        %v2683 = vpop.f32.mrf.mxu0
        %v2684 = vadd.f32 0.0, %v2683
        %v2685 = vpop.f32.mrf.mxu0
        %2686 = vmatprep.mubr.bf16.mxu0 %v2563
        %2687 = vmatmul.mubr.bf16.gmra.mxu0 %v2562
        %v2688 = vpop.f32.mrf.mxu0
        %v2689 = vadd.f32 0.0, %v2688
        %v2690 = vpop.f32.mrf.mxu0
        %v2691 = vpop.f32.mrf.mxu0
        %v2692 = vadd.f32 0.0, %v2691
        %v2693 = vpop.f32.mrf.mxu0
        %2694 = vmatprep.mubr.bf16.mxu0 %v2565
        %2695 = vmatmul.mubr.bf16.gmra.mxu0 %v2564
        %v2696 = vpop.f32.mrf.mxu0
        %v2697 = vadd.f32 0.0, %v2696
        %v2698 = vpop.f32.mrf.mxu0
        %v2699 = vpop.f32.mrf.mxu0
        %v2700 = vadd.f32 0.0, %v2699
        %v2701 = vpop.f32.mrf.mxu0
        %2702 = vmatprep.mubr.bf16.mxu0 %v2567
        %2703 = vmatmul.mubr.bf16.gmra.mxu0 %v2566
        %v2704 = vpop.f32.mrf.mxu0
        %v2705 = vadd.f32 0.0, %v2704
        %v2706 = vpop.f32.mrf.mxu0
        %v2707 = vpop.f32.mrf.mxu0
        %v2708 = vadd.f32 0.0, %v2707
        %v2709 = vpop.f32.mrf.mxu0
        %2710 = vmatprep.mubr.bf16.mxu0 %v2569
        %2711 = vmatmul.mubr.bf16.gmra.mxu0 %v2568
        %v2712 = vpop.f32.mrf.mxu0
        %v2713 = vadd.f32 0.0, %v2712
        %v2714 = vpop.f32.mrf.mxu0
        %v2715 = vpop.f32.mrf.mxu0
        %v2716 = vadd.f32 0.0, %v2715
        %v2717 = vpop.f32.mrf.mxu0
        %2718 = vmatprep.mubr.bf16.mxu0 %v2571
        %2719 = vmatmul.mubr.bf16.gmra.mxu0 %v2570
        %v2720 = vpop.f32.mrf.mxu0
        %v2721 = vadd.f32 0.0, %v2720
        %v2722 = vpop.f32.mrf.mxu0
        %v2723 = vpop.f32.mrf.mxu0
        %v2724 = vadd.f32 0.0, %v2723
        %v2725 = vpop.f32.mrf.mxu0
        %2726 = vmatprep.mubr.bf16.mxu0 %v2573
        %2727 = vmatmul.mubr.bf16.gmra.mxu0 %v2572
        %v2728 = vpop.f32.mrf.mxu0
        %v2729 = vadd.f32 0.0, %v2728
        %v2730 = vpop.f32.mrf.mxu0
        %v2731 = vpop.f32.mrf.mxu0
        %v2732 = vadd.f32 0.0, %v2731
        %v2733 = vpop.f32.mrf.mxu0
        %2734 = vdwg.mxu0
        %v2735 = vpack.c.bf16 %v2612, %v2609
        %v2736 = vpack.c.bf16 %v2620, %v2617
        %v2737 = vpack.c.bf16 %v2628, %v2625
        %v2738 = vpack.c.bf16 %v2636, %v2633
        %v2739 = vpack.c.bf16 %v2644, %v2641
        %v2740 = vpack.c.bf16 %v2652, %v2649
        %v2741 = vpack.c.bf16 %v2660, %v2657
        %v2742 = vpack.c.bf16 %v2668, %v2665
        %v2743 = vpack.c.bf16 %v2676, %v2673
        %v2744 = vpack.c.bf16 %v2684, %v2681
        %v2745 = vpack.c.bf16 %v2692, %v2689
        %v2746 = vpack.c.bf16 %v2700, %v2697
        %v2747 = vpack.c.bf16 %v2708, %v2705
        %v2748 = vpack.c.bf16 %v2716, %v2713
        %v2749 = vpack.c.bf16 %v2724, %v2721
        %v2750 = vpack.c.bf16 %v2732, %v2729
        %s2751 = scalar_lea.vmem [#allocation10], 512
        %v2752 = vld [vmem:[%s2751] sm:$0xff]
        %v2753 = vld [vmem:[%s2751 + $0x8] sm:$0xff]
        %v2754 = vld [vmem:[%s2751 + $0x10] sm:$0xff]
        %v2755 = vld [vmem:[%s2751 + $0x18] sm:$0xff]
        %v2756 = vld [vmem:[%s2751 + $0x20] sm:$0xff]
        %v2757 = vld [vmem:[%s2751 + $0x28] sm:$0xff]
        %v2758 = vld [vmem:[%s2751 + $0x30] sm:$0xff]
        %v2759 = vld [vmem:[%s2751 + $0x38] sm:$0xff]
        %v2760 = vld [vmem:[%s2751 + $0x40] sm:$0xff]
        %v2761 = vld [vmem:[%s2751 + $0x48] sm:$0xff]
        %v2762 = vld [vmem:[%s2751 + $0x50] sm:$0xff]
        %v2763 = vld [vmem:[%s2751 + $0x58] sm:$0xff]
        %v2764 = vld [vmem:[%s2751 + $0x60] sm:$0xff]
        %v2765 = vld [vmem:[%s2751 + $0x68] sm:$0xff]
        %v2766 = vld [vmem:[%s2751 + $0x70] sm:$0xff]
        %v2767 = vld [vmem:[%s2751 + $0x78] sm:$0xff]
        %v2768 = vld [vmem:[%s2751 + $0x80] sm:$0xff]
        %v2769 = vld [vmem:[%s2751 + $0x88] sm:$0xff]
        %v2770 = vld [vmem:[%s2751 + $0x90] sm:$0xff]
        %v2771 = vld [vmem:[%s2751 + $0x98] sm:$0xff]
        %v2772 = vld [vmem:[%s2751 + $0xa0] sm:$0xff]
        %v2773 = vld [vmem:[%s2751 + $0xa8] sm:$0xff]
        %v2774 = vld [vmem:[%s2751 + $0xb0] sm:$0xff]
        %v2775 = vld [vmem:[%s2751 + $0xb8] sm:$0xff]
        %v2776 = vld [vmem:[%s2751 + $0xc0] sm:$0xff]
        %v2777 = vld [vmem:[%s2751 + $0xc8] sm:$0xff]
        %v2778 = vld [vmem:[%s2751 + $0xd0] sm:$0xff]
        %v2779 = vld [vmem:[%s2751 + $0xd8] sm:$0xff]
        %v2780 = vld [vmem:[%s2751 + $0xe0] sm:$0xff]
        %v2781 = vld [vmem:[%s2751 + $0xe8] sm:$0xff]
        %v2782 = vld [vmem:[%s2751 + $0xf0] sm:$0xff]
        %v2783 = vld [vmem:[%s2751 + $0xf8] sm:$0xff]
        %v2784 = vld [vmem:[%s2751 + $0x100] sm:$0xff]
        %v2785 = vld [vmem:[%s2751 + $0x108] sm:$0xff]
        %v2786 = vld [vmem:[%s2751 + $0x110] sm:$0xff]
        %v2787 = vld [vmem:[%s2751 + $0x118] sm:$0xff]
        %v2788 = vld [vmem:[%s2751 + $0x120] sm:$0xff]
        %v2789 = vld [vmem:[%s2751 + $0x128] sm:$0xff]
        %v2790 = vld [vmem:[%s2751 + $0x130] sm:$0xff]
        %v2791 = vld [vmem:[%s2751 + $0x138] sm:$0xff]
        %v2792 = vld [vmem:[%s2751 + $0x140] sm:$0xff]
        %v2793 = vld [vmem:[%s2751 + $0x148] sm:$0xff]
        %v2794 = vld [vmem:[%s2751 + $0x150] sm:$0xff]
        %v2795 = vld [vmem:[%s2751 + $0x158] sm:$0xff]
        %v2796 = vld [vmem:[%s2751 + $0x160] sm:$0xff]
        %v2797 = vld [vmem:[%s2751 + $0x168] sm:$0xff]
        %v2798 = vld [vmem:[%s2751 + $0x170] sm:$0xff]
        %v2799 = vld [vmem:[%s2751 + $0x178] sm:$0xff]
        %v2800 = vld [vmem:[%s2751 + $0x180] sm:$0xff]
        %v2801 = vld [vmem:[%s2751 + $0x188] sm:$0xff]
        %v2802 = vld [vmem:[%s2751 + $0x190] sm:$0xff]
        %v2803 = vld [vmem:[%s2751 + $0x198] sm:$0xff]
        %v2804 = vld [vmem:[%s2751 + $0x1a0] sm:$0xff]
        %v2805 = vld [vmem:[%s2751 + $0x1a8] sm:$0xff]
        %v2806 = vld [vmem:[%s2751 + $0x1b0] sm:$0xff]
        %v2807 = vld [vmem:[%s2751 + $0x1b8] sm:$0xff]
        %v2808 = vld [vmem:[%s2751 + $0x1c0] sm:$0xff]
        %v2809 = vld [vmem:[%s2751 + $0x1c8] sm:$0xff]
        %v2810 = vld [vmem:[%s2751 + $0x1d0] sm:$0xff]
        %v2811 = vld [vmem:[%s2751 + $0x1d8] sm:$0xff]
        %v2812 = vld [vmem:[%s2751 + $0x1e0] sm:$0xff]
        %v2813 = vld [vmem:[%s2751 + $0x1e8] sm:$0xff]
        %v2814 = vld [vmem:[%s2751 + $0x1f0] sm:$0xff]
        %v2815 = vld [vmem:[%s2751 + $0x1f8] sm:$0xff]
        %2816 = vmatprep.subr.bf16.mxu0 0
        %2817 = vmatpush1.bf16.xpose.msra.mxu0 %v1754
        %2818 = vmatprep.subr.bf16.mxu0 0
        %2819 = vmatpush1.bf16.xpose.msra.mxu0 %v1748
        %2820 = vmatprep.subr.bf16.mxu0 0
        %2821 = vmatpush1.bf16.xpose.msra.mxu0 %v1742
        %2822 = vmatprep.subr.bf16.mxu0 0
        %2823 = vmatpush1.bf16.xpose.msra.mxu0 %v1736
        %2824 = vmatprep.subr.bf16.mxu0 0
        %2825 = vmatpush1.bf16.xpose.msra.mxu0 %v1730
        %2826 = vmatprep.subr.bf16.mxu0 0
        %2827 = vmatpush1.bf16.xpose.msra.mxu0 %v1724
        %2828 = vmatprep.subr.bf16.mxu0 0
        %2829 = vmatpush1.bf16.xpose.msra.mxu0 %v1718
        %2830 = vmatprep.subr.bf16.mxu0 0
        %2831 = vmatpush1.bf16.xpose.msra.mxu0 %v1712
        %2832 = vmatprep.subr.bf16.mxu0 0
        %2833 = vmatpush2.bf16.xpose.msra.mxu0 %v1802
        %2834 = vmatprep.subr.bf16.mxu0 0
        %2835 = vmatpush2.bf16.xpose.msra.mxu0 %v1796
        %2836 = vmatprep.subr.bf16.mxu0 0
        %2837 = vmatpush2.bf16.xpose.msra.mxu0 %v1790
        %2838 = vmatprep.subr.bf16.mxu0 0
        %2839 = vmatpush2.bf16.xpose.msra.mxu0 %v1784
        %2840 = vmatprep.subr.bf16.mxu0 0
        %2841 = vmatpush2.bf16.xpose.msra.mxu0 %v1778
        %2842 = vmatprep.subr.bf16.mxu0 0
        %2843 = vmatpush2.bf16.xpose.msra.mxu0 %v1772
        %2844 = vmatprep.subr.bf16.mxu0 0
        %2845 = vmatpush2.bf16.xpose.msra.mxu0 %v1766
        %2846 = vmatprep.subr.bf16.mxu0 0
        %2847 = vmatpush2.bf16.xpose.msra.mxu0 %v1760
        %2848 = vmatprep.mubr.bf16.mxu0 0
        %2849 = vmatmul.mubr.bf16.gmra.mxu0 %v1710
        %v2850 = vpop.f32.mrf.mxu0
        %v2851 = vadd.f32 %v2752, %v2850
        %v2852 = vpop.f32.mrf.mxu0
        %v2853 = vadd.f32 %v2753, %v2852
        %v2854 = vpop.f32.mrf.mxu0
        %v2855 = vadd.f32 %v2754, %v2854
        %v2856 = vpop.f32.mrf.mxu0
        %v2857 = vadd.f32 %v2755, %v2856
        %2858 = vmatprep.mubr.bf16.mxu0 0
        %2859 = vmatmul.mubr.bf16.gmra.mxu0 %v1716
        %v2860 = vpop.f32.mrf.mxu0
        %v2861 = vadd.f32 %v2756, %v2860
        %v2862 = vpop.f32.mrf.mxu0
        %v2863 = vadd.f32 %v2757, %v2862
        %v2864 = vpop.f32.mrf.mxu0
        %v2865 = vadd.f32 %v2758, %v2864
        %v2866 = vpop.f32.mrf.mxu0
        %v2867 = vadd.f32 %v2759, %v2866
        %2868 = vmatprep.mubr.bf16.mxu0 0
        %2869 = vmatmul.mubr.bf16.gmra.mxu0 %v1722
        %v2870 = vpop.f32.mrf.mxu0
        %v2871 = vadd.f32 %v2760, %v2870
        %v2872 = vpop.f32.mrf.mxu0
        %v2873 = vadd.f32 %v2761, %v2872
        %v2874 = vpop.f32.mrf.mxu0
        %v2875 = vadd.f32 %v2762, %v2874
        %v2876 = vpop.f32.mrf.mxu0
        %v2877 = vadd.f32 %v2763, %v2876
        %2878 = vmatprep.mubr.bf16.mxu0 0
        %2879 = vmatmul.mubr.bf16.gmra.mxu0 %v1728
        %v2880 = vpop.f32.mrf.mxu0
        %v2881 = vadd.f32 %v2764, %v2880
        %v2882 = vpop.f32.mrf.mxu0
        %v2883 = vadd.f32 %v2765, %v2882
        %v2884 = vpop.f32.mrf.mxu0
        %v2885 = vadd.f32 %v2766, %v2884
        %v2886 = vpop.f32.mrf.mxu0
        %v2887 = vadd.f32 %v2767, %v2886
        %2888 = vmatprep.mubr.bf16.mxu0 0
        %2889 = vmatmul.mubr.bf16.gmra.mxu0 %v1734
        %v2890 = vpop.f32.mrf.mxu0
        %v2891 = vadd.f32 %v2768, %v2890
        %v2892 = vpop.f32.mrf.mxu0
        %v2893 = vadd.f32 %v2769, %v2892
        %v2894 = vpop.f32.mrf.mxu0
        %v2895 = vadd.f32 %v2770, %v2894
        %v2896 = vpop.f32.mrf.mxu0
        %v2897 = vadd.f32 %v2771, %v2896
        %2898 = vmatprep.mubr.bf16.mxu0 0
        %2899 = vmatmul.mubr.bf16.gmra.mxu0 %v1740
        %v2900 = vpop.f32.mrf.mxu0
        %v2901 = vadd.f32 %v2772, %v2900
        %v2902 = vpop.f32.mrf.mxu0
        %v2903 = vadd.f32 %v2773, %v2902
        %v2904 = vpop.f32.mrf.mxu0
        %v2905 = vadd.f32 %v2774, %v2904
        %v2906 = vpop.f32.mrf.mxu0
        %v2907 = vadd.f32 %v2775, %v2906
        %2908 = vmatprep.mubr.bf16.mxu0 0
        %2909 = vmatmul.mubr.bf16.gmra.mxu0 %v1746
        %v2910 = vpop.f32.mrf.mxu0
        %v2911 = vadd.f32 %v2776, %v2910
        %v2912 = vpop.f32.mrf.mxu0
        %v2913 = vadd.f32 %v2777, %v2912
        %v2914 = vpop.f32.mrf.mxu0
        %v2915 = vadd.f32 %v2778, %v2914
        %v2916 = vpop.f32.mrf.mxu0
        %v2917 = vadd.f32 %v2779, %v2916
        %2918 = vmatprep.mubr.bf16.mxu0 0
        %2919 = vmatmul.mubr.bf16.gmra.mxu0 %v1752
        %v2920 = vpop.f32.mrf.mxu0
        %v2921 = vadd.f32 %v2780, %v2920
        %v2922 = vpop.f32.mrf.mxu0
        %v2923 = vadd.f32 %v2781, %v2922
        %v2924 = vpop.f32.mrf.mxu0
        %v2925 = vadd.f32 %v2782, %v2924
        %v2926 = vpop.f32.mrf.mxu0
        %v2927 = vadd.f32 %v2783, %v2926
        %2928 = vmatprep.mubr.bf16.mxu0 0
        %2929 = vmatmul.mubr.bf16.gmra.mxu0 %v1758
        %v2930 = vpop.f32.mrf.mxu0
        %v2931 = vadd.f32 %v2784, %v2930
        %v2932 = vpop.f32.mrf.mxu0
        %v2933 = vadd.f32 %v2785, %v2932
        %v2934 = vpop.f32.mrf.mxu0
        %v2935 = vadd.f32 %v2786, %v2934
        %v2936 = vpop.f32.mrf.mxu0
        %v2937 = vadd.f32 %v2787, %v2936
        %2938 = vmatprep.mubr.bf16.mxu0 0
        %2939 = vmatmul.mubr.bf16.gmra.mxu0 %v1764
        %v2940 = vpop.f32.mrf.mxu0
        %v2941 = vadd.f32 %v2788, %v2940
        %v2942 = vpop.f32.mrf.mxu0
        %v2943 = vadd.f32 %v2789, %v2942
        %v2944 = vpop.f32.mrf.mxu0
        %v2945 = vadd.f32 %v2790, %v2944
        %v2946 = vpop.f32.mrf.mxu0
        %v2947 = vadd.f32 %v2791, %v2946
        %2948 = vmatprep.mubr.bf16.mxu0 0
        %2949 = vmatmul.mubr.bf16.gmra.mxu0 %v1770
        %v2950 = vpop.f32.mrf.mxu0
        %v2951 = vadd.f32 %v2792, %v2950
        %v2952 = vpop.f32.mrf.mxu0
        %v2953 = vadd.f32 %v2793, %v2952
        %v2954 = vpop.f32.mrf.mxu0
        %v2955 = vadd.f32 %v2794, %v2954
        %v2956 = vpop.f32.mrf.mxu0
        %v2957 = vadd.f32 %v2795, %v2956
        %2958 = vmatprep.mubr.bf16.mxu0 0
        %2959 = vmatmul.mubr.bf16.gmra.mxu0 %v1776
        %v2960 = vpop.f32.mrf.mxu0
        %v2961 = vadd.f32 %v2796, %v2960
        %v2962 = vpop.f32.mrf.mxu0
        %v2963 = vadd.f32 %v2797, %v2962
        %v2964 = vpop.f32.mrf.mxu0
        %v2965 = vadd.f32 %v2798, %v2964
        %v2966 = vpop.f32.mrf.mxu0
        %v2967 = vadd.f32 %v2799, %v2966
        %2968 = vmatprep.mubr.bf16.mxu0 0
        %2969 = vmatmul.mubr.bf16.gmra.mxu0 %v1782
        %v2970 = vpop.f32.mrf.mxu0
        %v2971 = vadd.f32 %v2800, %v2970
        %v2972 = vpop.f32.mrf.mxu0
        %v2973 = vadd.f32 %v2801, %v2972
        %v2974 = vpop.f32.mrf.mxu0
        %v2975 = vadd.f32 %v2802, %v2974
        %v2976 = vpop.f32.mrf.mxu0
        %v2977 = vadd.f32 %v2803, %v2976
        %2978 = vmatprep.mubr.bf16.mxu0 0
        %2979 = vmatmul.mubr.bf16.gmra.mxu0 %v1788
        %v2980 = vpop.f32.mrf.mxu0
        %v2981 = vadd.f32 %v2804, %v2980
        %v2982 = vpop.f32.mrf.mxu0
        %v2983 = vadd.f32 %v2805, %v2982
        %v2984 = vpop.f32.mrf.mxu0
        %v2985 = vadd.f32 %v2806, %v2984
        %v2986 = vpop.f32.mrf.mxu0
        %v2987 = vadd.f32 %v2807, %v2986
        %2988 = vmatprep.mubr.bf16.mxu0 0
        %2989 = vmatmul.mubr.bf16.gmra.mxu0 %v1794
        %v2990 = vpop.f32.mrf.mxu0
        %v2991 = vadd.f32 %v2808, %v2990
        %v2992 = vpop.f32.mrf.mxu0
        %v2993 = vadd.f32 %v2809, %v2992
        %v2994 = vpop.f32.mrf.mxu0
        %v2995 = vadd.f32 %v2810, %v2994
        %v2996 = vpop.f32.mrf.mxu0
        %v2997 = vadd.f32 %v2811, %v2996
        %2998 = vmatprep.mubr.bf16.mxu0 0
        %2999 = vmatmul.mubr.bf16.gmra.mxu0 %v1800
        %v3000 = vpop.f32.mrf.mxu0
        %v3001 = vadd.f32 %v2812, %v3000
        %v3002 = vpop.f32.mrf.mxu0
        %v3003 = vadd.f32 %v2813, %v3002
        %v3004 = vpop.f32.mrf.mxu0
        %v3005 = vadd.f32 %v2814, %v3004
        %v3006 = vpop.f32.mrf.mxu0
        %v3007 = vadd.f32 %v2815, %v3006
        %3008 = vdwg.mxu0
        %v3009 = vmax.f32 %v2851, %v2853
        %3010 = vmax.xlane.f32.xlu0 %v3009
        %v3011 = vpop.xlane.xlu0 %3010
        %v3012 = vmax.f32 %v2855, %v2857
        %3013 = vmax.xlane.f32.xlu0 %v3012
        %v3014 = vpop.xlane.xlu0 %3013
        %v3015 = vmax.f32 %v2861, %v2863
        %3016 = vmax.xlane.f32.xlu0 %v3015
        %v3017 = vpop.xlane.xlu0 %3016
        %v3018 = vmax.f32 %v2865, %v2867
        %3019 = vmax.xlane.f32.xlu0 %v3018
        %v3020 = vpop.xlane.xlu0 %3019
        %v3021 = vmax.f32 %v2871, %v2873
        %3022 = vmax.xlane.f32.xlu0 %v3021
        %v3023 = vpop.xlane.xlu0 %3022
        %v3024 = vmax.f32 %v2875, %v2877
        %3025 = vmax.xlane.f32.xlu0 %v3024
        %v3026 = vpop.xlane.xlu0 %3025
        %v3027 = vmax.f32 %v2881, %v2883
        %3028 = vmax.xlane.f32.xlu0 %v3027
        %v3029 = vpop.xlane.xlu0 %3028
        %v3030 = vmax.f32 %v2885, %v2887
        %3031 = vmax.xlane.f32.xlu0 %v3030
        %v3032 = vpop.xlane.xlu0 %3031
        %v3033 = vmax.f32 %v2891, %v2893
        %3034 = vmax.xlane.f32.xlu0 %v3033
        %v3035 = vpop.xlane.xlu0 %3034
        %v3036 = vmax.f32 %v2895, %v2897
        %3037 = vmax.xlane.f32.xlu0 %v3036
        %v3038 = vpop.xlane.xlu0 %3037
        %v3039 = vmax.f32 %v2901, %v2903
        %3040 = vmax.xlane.f32.xlu0 %v3039
        %v3041 = vpop.xlane.xlu0 %3040
        %v3042 = vmax.f32 %v2905, %v2907
        %3043 = vmax.xlane.f32.xlu0 %v3042
        %v3044 = vpop.xlane.xlu0 %3043
        %v3045 = vmax.f32 %v2911, %v2913
        %3046 = vmax.xlane.f32.xlu0 %v3045
        %v3047 = vpop.xlane.xlu0 %3046
        %v3048 = vmax.f32 %v2915, %v2917
        %3049 = vmax.xlane.f32.xlu0 %v3048
        %v3050 = vpop.xlane.xlu0 %3049
        %v3051 = vmax.f32 %v2921, %v2923
        %3052 = vmax.xlane.f32.xlu0 %v3051
        %v3053 = vpop.xlane.xlu0 %3052
        %v3054 = vmax.f32 %v2925, %v2927
        %3055 = vmax.xlane.f32.xlu0 %v3054
        %v3056 = vpop.xlane.xlu0 %3055
        %v3057 = vmax.f32 %v2931, %v2933
        %3058 = vmax.xlane.f32.xlu0 %v3057
        %v3059 = vpop.xlane.xlu0 %3058
        %v3060 = vmax.f32 %v2935, %v2937
        %3061 = vmax.xlane.f32.xlu0 %v3060
        %v3062 = vpop.xlane.xlu0 %3061
        %v3063 = vmax.f32 %v2941, %v2943
        %3064 = vmax.xlane.f32.xlu0 %v3063
        %v3065 = vpop.xlane.xlu0 %3064
        %v3066 = vmax.f32 %v2945, %v2947
        %3067 = vmax.xlane.f32.xlu0 %v3066
        %v3068 = vpop.xlane.xlu0 %3067
        %v3069 = vmax.f32 %v2951, %v2953
        %3070 = vmax.xlane.f32.xlu0 %v3069
        %v3071 = vpop.xlane.xlu0 %3070
        %v3072 = vmax.f32 %v2955, %v2957
        %3073 = vmax.xlane.f32.xlu0 %v3072
        %v3074 = vpop.xlane.xlu0 %3073
        %v3075 = vmax.f32 %v2961, %v2963
        %3076 = vmax.xlane.f32.xlu0 %v3075
        %v3077 = vpop.xlane.xlu0 %3076
        %v3078 = vmax.f32 %v2965, %v2967
        %3079 = vmax.xlane.f32.xlu0 %v3078
        %v3080 = vpop.xlane.xlu0 %3079
        %v3081 = vmax.f32 %v2971, %v2973
        %3082 = vmax.xlane.f32.xlu0 %v3081
        %v3083 = vpop.xlane.xlu0 %3082
        %v3084 = vmax.f32 %v2975, %v2977
        %3085 = vmax.xlane.f32.xlu0 %v3084
        %v3086 = vpop.xlane.xlu0 %3085
        %v3087 = vmax.f32 %v2981, %v2983
        %3088 = vmax.xlane.f32.xlu0 %v3087
        %v3089 = vpop.xlane.xlu0 %3088
        %v3090 = vmax.f32 %v2985, %v2987
        %3091 = vmax.xlane.f32.xlu0 %v3090
        %v3092 = vpop.xlane.xlu0 %3091
        %v3093 = vmax.f32 %v2991, %v2993
        %3094 = vmax.xlane.f32.xlu0 %v3093
        %v3095 = vpop.xlane.xlu0 %3094
        %v3096 = vmax.f32 %v2995, %v2997
        %3097 = vmax.xlane.f32.xlu0 %v3096
        %v3098 = vpop.xlane.xlu0 %3097
        %v3099 = vmax.f32 %v3001, %v3003
        %3100 = vmax.xlane.f32.xlu0 %v3099
        %v3101 = vpop.xlane.xlu0 %3100
        %v3102 = vmax.f32 %v3005, %v3007
        %3103 = vmax.xlane.f32.xlu0 %v3102
        %v3104 = vpop.xlane.xlu0 %3103
        %v3105 = vsub.f32 %v2851, %v3011
        %v3106 = vsub.f32 %v2853, %v3011
        %v3107 = vsub.f32 %v2855, %v3014
        %v3108 = vsub.f32 %v2857, %v3014
        %v3109 = vsub.f32 %v2861, %v3017
        %v3110 = vsub.f32 %v2863, %v3017
        %v3111 = vsub.f32 %v2865, %v3020
        %v3112 = vsub.f32 %v2867, %v3020
        %v3113 = vsub.f32 %v2871, %v3023
        %v3114 = vsub.f32 %v2873, %v3023
        %v3115 = vsub.f32 %v2875, %v3026
        %v3116 = vsub.f32 %v2877, %v3026
        %v3117 = vsub.f32 %v2881, %v3029
        %v3118 = vsub.f32 %v2883, %v3029
        %v3119 = vsub.f32 %v2885, %v3032
        %v3120 = vsub.f32 %v2887, %v3032
        %v3121 = vsub.f32 %v2891, %v3035
        %v3122 = vsub.f32 %v2893, %v3035
        %v3123 = vsub.f32 %v2895, %v3038
        %v3124 = vsub.f32 %v2897, %v3038
        %v3125 = vsub.f32 %v2901, %v3041
        %v3126 = vsub.f32 %v2903, %v3041
        %v3127 = vsub.f32 %v2905, %v3044
        %v3128 = vsub.f32 %v2907, %v3044
        %v3129 = vsub.f32 %v2911, %v3047
        %v3130 = vsub.f32 %v2913, %v3047
        %v3131 = vsub.f32 %v2915, %v3050
        %v3132 = vsub.f32 %v2917, %v3050
        %v3133 = vsub.f32 %v2921, %v3053
        %v3134 = vsub.f32 %v2923, %v3053
        %v3135 = vsub.f32 %v2925, %v3056
        %v3136 = vsub.f32 %v2927, %v3056
        %v3137 = vsub.f32 %v2931, %v3059
        %v3138 = vsub.f32 %v2933, %v3059
        %v3139 = vsub.f32 %v2935, %v3062
        %v3140 = vsub.f32 %v2937, %v3062
        %v3141 = vsub.f32 %v2941, %v3065
        %v3142 = vsub.f32 %v2943, %v3065
        %v3143 = vsub.f32 %v2945, %v3068
        %v3144 = vsub.f32 %v2947, %v3068
        %v3145 = vsub.f32 %v2951, %v3071
        %v3146 = vsub.f32 %v2953, %v3071
        %v3147 = vsub.f32 %v2955, %v3074
        %v3148 = vsub.f32 %v2957, %v3074
        %v3149 = vsub.f32 %v2961, %v3077
        %v3150 = vsub.f32 %v2963, %v3077
        %v3151 = vsub.f32 %v2965, %v3080
        %v3152 = vsub.f32 %v2967, %v3080
        %v3153 = vsub.f32 %v2971, %v3083
        %v3154 = vsub.f32 %v2973, %v3083
        %v3155 = vsub.f32 %v2975, %v3086
        %v3156 = vsub.f32 %v2977, %v3086
        %v3157 = vsub.f32 %v2981, %v3089
        %v3158 = vsub.f32 %v2983, %v3089
        %v3159 = vsub.f32 %v2985, %v3092
        %v3160 = vsub.f32 %v2987, %v3092
        %v3161 = vsub.f32 %v2991, %v3095
        %v3162 = vsub.f32 %v2993, %v3095
        %v3163 = vsub.f32 %v2995, %v3098
        %v3164 = vsub.f32 %v2997, %v3098
        %v3165 = vsub.f32 %v3001, %v3101
        %v3166 = vsub.f32 %v3003, %v3101
        %v3167 = vsub.f32 %v3005, %v3104
        %v3168 = vsub.f32 %v3007, %v3104
        %v3169 = vmul.f32 %v3105, 1.442695
        %v3170 = vpow.pop %v3169
        %v3171 = vmul.f32 %v3106, 1.442695
        %v3172 = vpow.pop %v3171
        %v3173 = vmul.f32 %v3107, 1.442695
        %v3174 = vpow.pop %v3173
        %v3175 = vmul.f32 %v3108, 1.442695
        %v3176 = vpow.pop %v3175
        %v3177 = vmul.f32 %v3109, 1.442695
        %v3178 = vpow.pop %v3177
        %v3179 = vmul.f32 %v3110, 1.442695
        %v3180 = vpow.pop %v3179
        %v3181 = vmul.f32 %v3111, 1.442695
        %v3182 = vpow.pop %v3181
        %v3183 = vmul.f32 %v3112, 1.442695
        %v3184 = vpow.pop %v3183
        %v3185 = vmul.f32 %v3113, 1.442695
        %v3186 = vpow.pop %v3185
        %v3187 = vmul.f32 %v3114, 1.442695
        %v3188 = vpow.pop %v3187
        %v3189 = vmul.f32 %v3115, 1.442695
        %v3190 = vpow.pop %v3189
        %v3191 = vmul.f32 %v3116, 1.442695
        %v3192 = vpow.pop %v3191
        %v3193 = vmul.f32 %v3117, 1.442695
        %v3194 = vpow.pop %v3193
        %v3195 = vmul.f32 %v3118, 1.442695
        %v3196 = vpow.pop %v3195
        %v3197 = vmul.f32 %v3119, 1.442695
        %v3198 = vpow.pop %v3197
        %v3199 = vmul.f32 %v3120, 1.442695
        %v3200 = vpow.pop %v3199
        %v3201 = vmul.f32 %v3121, 1.442695
        %v3202 = vpow.pop %v3201
        %v3203 = vmul.f32 %v3122, 1.442695
        %v3204 = vpow.pop %v3203
        %v3205 = vmul.f32 %v3123, 1.442695
        %v3206 = vpow.pop %v3205
        %v3207 = vmul.f32 %v3124, 1.442695
        %v3208 = vpow.pop %v3207
        %v3209 = vmul.f32 %v3125, 1.442695
        %v3210 = vpow.pop %v3209
        %v3211 = vmul.f32 %v3126, 1.442695
        %v3212 = vpow.pop %v3211
        %v3213 = vmul.f32 %v3127, 1.442695
        %v3214 = vpow.pop %v3213
        %v3215 = vmul.f32 %v3128, 1.442695
        %v3216 = vpow.pop %v3215
        %v3217 = vmul.f32 %v3129, 1.442695
        %v3218 = vpow.pop %v3217
        %v3219 = vmul.f32 %v3130, 1.442695
        %v3220 = vpow.pop %v3219
        %v3221 = vmul.f32 %v3131, 1.442695
        %v3222 = vpow.pop %v3221
        %v3223 = vmul.f32 %v3132, 1.442695
        %v3224 = vpow.pop %v3223
        %v3225 = vmul.f32 %v3133, 1.442695
        %v3226 = vpow.pop %v3225
        %v3227 = vmul.f32 %v3134, 1.442695
        %v3228 = vpow.pop %v3227
        %v3229 = vmul.f32 %v3135, 1.442695
        %v3230 = vpow.pop %v3229
        %v3231 = vmul.f32 %v3136, 1.442695
        %v3232 = vpow.pop %v3231
        %v3233 = vmul.f32 %v3137, 1.442695
        %v3234 = vpow.pop %v3233
        %v3235 = vmul.f32 %v3138, 1.442695
        %v3236 = vpow.pop %v3235
        %v3237 = vmul.f32 %v3139, 1.442695
        %v3238 = vpow.pop %v3237
        %v3239 = vmul.f32 %v3140, 1.442695
        %v3240 = vpow.pop %v3239
        %v3241 = vmul.f32 %v3141, 1.442695
        %v3242 = vpow.pop %v3241
        %v3243 = vmul.f32 %v3142, 1.442695
        %v3244 = vpow.pop %v3243
        %v3245 = vmul.f32 %v3143, 1.442695
        %v3246 = vpow.pop %v3245
        %v3247 = vmul.f32 %v3144, 1.442695
        %v3248 = vpow.pop %v3247
        %v3249 = vmul.f32 %v3145, 1.442695
        %v3250 = vpow.pop %v3249
        %v3251 = vmul.f32 %v3146, 1.442695
        %v3252 = vpow.pop %v3251
        %v3253 = vmul.f32 %v3147, 1.442695
        %v3254 = vpow.pop %v3253
        %v3255 = vmul.f32 %v3148, 1.442695
        %v3256 = vpow.pop %v3255
        %v3257 = vmul.f32 %v3149, 1.442695
        %v3258 = vpow.pop %v3257
        %v3259 = vmul.f32 %v3150, 1.442695
        %v3260 = vpow.pop %v3259
        %v3261 = vmul.f32 %v3151, 1.442695
        %v3262 = vpow.pop %v3261
        %v3263 = vmul.f32 %v3152, 1.442695
        %v3264 = vpow.pop %v3263
        %v3265 = vmul.f32 %v3153, 1.442695
        %v3266 = vpow.pop %v3265
        %v3267 = vmul.f32 %v3154, 1.442695
        %v3268 = vpow.pop %v3267
        %v3269 = vmul.f32 %v3155, 1.442695
        %v3270 = vpow.pop %v3269
        %v3271 = vmul.f32 %v3156, 1.442695
        %v3272 = vpow.pop %v3271
        %v3273 = vmul.f32 %v3157, 1.442695
        %v3274 = vpow.pop %v3273
        %v3275 = vmul.f32 %v3158, 1.442695
        %v3276 = vpow.pop %v3275
        %v3277 = vmul.f32 %v3159, 1.442695
        %v3278 = vpow.pop %v3277
        %v3279 = vmul.f32 %v3160, 1.442695
        %v3280 = vpow.pop %v3279
        %v3281 = vmul.f32 %v3161, 1.442695
        %v3282 = vpow.pop %v3281
        %v3283 = vmul.f32 %v3162, 1.442695
        %v3284 = vpow.pop %v3283
        %v3285 = vmul.f32 %v3163, 1.442695
        %v3286 = vpow.pop %v3285
        %v3287 = vmul.f32 %v3164, 1.442695
        %v3288 = vpow.pop %v3287
        %v3289 = vmul.f32 %v3165, 1.442695
        %v3290 = vpow.pop %v3289
        %v3291 = vmul.f32 %v3166, 1.442695
        %v3292 = vpow.pop %v3291
        %v3293 = vmul.f32 %v3167, 1.442695
        %v3294 = vpow.pop %v3293
        %v3295 = vmul.f32 %v3168, 1.442695
        %v3296 = vpow.pop %v3295
        %v3297 = vadd.f32 %v3170, %v3172
        %3298 = vadd.xlane.f32.xlu0 %v3297
        %v3299 = vpop.xlane.xlu0 %3298
        %v3300 = vadd.f32 %v3174, %v3176
        %3301 = vadd.xlane.f32.xlu0 %v3300
        %v3302 = vpop.xlane.xlu0 %3301
        %v3303 = vadd.f32 %v3178, %v3180
        %3304 = vadd.xlane.f32.xlu0 %v3303
        %v3305 = vpop.xlane.xlu0 %3304
        %v3306 = vadd.f32 %v3182, %v3184
        %3307 = vadd.xlane.f32.xlu0 %v3306
        %v3308 = vpop.xlane.xlu0 %3307
        %v3309 = vadd.f32 %v3186, %v3188
        %3310 = vadd.xlane.f32.xlu0 %v3309
        %v3311 = vpop.xlane.xlu0 %3310
        %v3312 = vadd.f32 %v3190, %v3192
        %3313 = vadd.xlane.f32.xlu0 %v3312
        %v3314 = vpop.xlane.xlu0 %3313
        %v3315 = vadd.f32 %v3194, %v3196
        %3316 = vadd.xlane.f32.xlu0 %v3315
        %v3317 = vpop.xlane.xlu0 %3316
        %v3318 = vadd.f32 %v3198, %v3200
        %3319 = vadd.xlane.f32.xlu0 %v3318
        %v3320 = vpop.xlane.xlu0 %3319
        %v3321 = vadd.f32 %v3202, %v3204
        %3322 = vadd.xlane.f32.xlu0 %v3321
        %v3323 = vpop.xlane.xlu0 %3322
        %v3324 = vadd.f32 %v3206, %v3208
        %3325 = vadd.xlane.f32.xlu0 %v3324
        %v3326 = vpop.xlane.xlu0 %3325
        %v3327 = vadd.f32 %v3210, %v3212
        %3328 = vadd.xlane.f32.xlu0 %v3327
        %v3329 = vpop.xlane.xlu0 %3328
        %v3330 = vadd.f32 %v3214, %v3216
        %3331 = vadd.xlane.f32.xlu0 %v3330
        %v3332 = vpop.xlane.xlu0 %3331
        %v3333 = vadd.f32 %v3218, %v3220
        %3334 = vadd.xlane.f32.xlu0 %v3333
        %v3335 = vpop.xlane.xlu0 %3334
        %v3336 = vadd.f32 %v3222, %v3224
        %3337 = vadd.xlane.f32.xlu0 %v3336
        %v3338 = vpop.xlane.xlu0 %3337
        %v3339 = vadd.f32 %v3226, %v3228
        %3340 = vadd.xlane.f32.xlu0 %v3339
        %v3341 = vpop.xlane.xlu0 %3340
        %v3342 = vadd.f32 %v3230, %v3232
        %3343 = vadd.xlane.f32.xlu0 %v3342
        %v3344 = vpop.xlane.xlu0 %3343
        %v3345 = vadd.f32 %v3234, %v3236
        %3346 = vadd.xlane.f32.xlu0 %v3345
        %v3347 = vpop.xlane.xlu0 %3346
        %v3348 = vadd.f32 %v3238, %v3240
        %3349 = vadd.xlane.f32.xlu0 %v3348
        %v3350 = vpop.xlane.xlu0 %3349
        %v3351 = vadd.f32 %v3242, %v3244
        %3352 = vadd.xlane.f32.xlu0 %v3351
        %v3353 = vpop.xlane.xlu0 %3352
        %v3354 = vadd.f32 %v3246, %v3248
        %3355 = vadd.xlane.f32.xlu0 %v3354
        %v3356 = vpop.xlane.xlu0 %3355
        %v3357 = vadd.f32 %v3250, %v3252
        %3358 = vadd.xlane.f32.xlu0 %v3357
        %v3359 = vpop.xlane.xlu0 %3358
        %v3360 = vadd.f32 %v3254, %v3256
        %3361 = vadd.xlane.f32.xlu0 %v3360
        %v3362 = vpop.xlane.xlu0 %3361
        %v3363 = vadd.f32 %v3258, %v3260
        %3364 = vadd.xlane.f32.xlu0 %v3363
        %v3365 = vpop.xlane.xlu0 %3364
        %v3366 = vadd.f32 %v3262, %v3264
        %3367 = vadd.xlane.f32.xlu0 %v3366
        %v3368 = vpop.xlane.xlu0 %3367
        %v3369 = vadd.f32 %v3266, %v3268
        %3370 = vadd.xlane.f32.xlu0 %v3369
        %v3371 = vpop.xlane.xlu0 %3370
        %v3372 = vadd.f32 %v3270, %v3272
        %3373 = vadd.xlane.f32.xlu0 %v3372
        %v3374 = vpop.xlane.xlu0 %3373
        %v3375 = vadd.f32 %v3274, %v3276
        %3376 = vadd.xlane.f32.xlu0 %v3375
        %v3377 = vpop.xlane.xlu0 %3376
        %v3378 = vadd.f32 %v3278, %v3280
        %3379 = vadd.xlane.f32.xlu0 %v3378
        %v3380 = vpop.xlane.xlu0 %3379
        %v3381 = vadd.f32 %v3282, %v3284
        %3382 = vadd.xlane.f32.xlu0 %v3381
        %v3383 = vpop.xlane.xlu0 %3382
        %v3384 = vadd.f32 %v3286, %v3288
        %3385 = vadd.xlane.f32.xlu0 %v3384
        %v3386 = vpop.xlane.xlu0 %3385
        %v3387 = vadd.f32 %v3290, %v3292
        %3388 = vadd.xlane.f32.xlu0 %v3387
        %v3389 = vpop.xlane.xlu0 %3388
        %v3390 = vadd.f32 %v3294, %v3296
        %3391 = vadd.xlane.f32.xlu0 %v3390
        %v3392 = vpop.xlane.xlu0 %3391
        %v3393 = vrcp.pop %v3299
        %v3394 = vrcp.pop %v3302
        %v3395 = vrcp.pop %v3305
        %v3396 = vrcp.pop %v3308
        %v3397 = vrcp.pop %v3311
        %v3398 = vrcp.pop %v3314
        %v3399 = vrcp.pop %v3317
        %v3400 = vrcp.pop %v3320
        %v3401 = vrcp.pop %v3323
        %v3402 = vrcp.pop %v3326
        %v3403 = vrcp.pop %v3329
        %v3404 = vrcp.pop %v3332
        %v3405 = vrcp.pop %v3335
        %v3406 = vrcp.pop %v3338
        %v3407 = vrcp.pop %v3341
        %v3408 = vrcp.pop %v3344
        %v3409 = vrcp.pop %v3347
        %v3410 = vrcp.pop %v3350
        %v3411 = vrcp.pop %v3353
        %v3412 = vrcp.pop %v3356
        %v3413 = vrcp.pop %v3359
        %v3414 = vrcp.pop %v3362
        %v3415 = vrcp.pop %v3365
        %v3416 = vrcp.pop %v3368
        %v3417 = vrcp.pop %v3371
        %v3418 = vrcp.pop %v3374
        %v3419 = vrcp.pop %v3377
        %v3420 = vrcp.pop %v3380
        %v3421 = vrcp.pop %v3383
        %v3422 = vrcp.pop %v3386
        %v3423 = vrcp.pop %v3389
        %v3424 = vrcp.pop %v3392
        %v3425 = vmul.f32 %v3170, %v3393
        %v3426 = vmul.f32 %v3172, %v3393
        %v3427 = vmul.f32 %v3174, %v3394
        %v3428 = vmul.f32 %v3176, %v3394
        %v3429 = vmul.f32 %v3178, %v3395
        %v3430 = vmul.f32 %v3180, %v3395
        %v3431 = vmul.f32 %v3182, %v3396
        %v3432 = vmul.f32 %v3184, %v3396
        %v3433 = vmul.f32 %v3186, %v3397
        %v3434 = vmul.f32 %v3188, %v3397
        %v3435 = vmul.f32 %v3190, %v3398
        %v3436 = vmul.f32 %v3192, %v3398
        %v3437 = vmul.f32 %v3194, %v3399
        %v3438 = vmul.f32 %v3196, %v3399
        %v3439 = vmul.f32 %v3198, %v3400
        %v3440 = vmul.f32 %v3200, %v3400
        %v3441 = vmul.f32 %v3202, %v3401
        %v3442 = vmul.f32 %v3204, %v3401
        %v3443 = vmul.f32 %v3206, %v3402
        %v3444 = vmul.f32 %v3208, %v3402
        %v3445 = vmul.f32 %v3210, %v3403
        %v3446 = vmul.f32 %v3212, %v3403
        %v3447 = vmul.f32 %v3214, %v3404
        %v3448 = vmul.f32 %v3216, %v3404
        %v3449 = vmul.f32 %v3218, %v3405
        %v3450 = vmul.f32 %v3220, %v3405
        %v3451 = vmul.f32 %v3222, %v3406
        %v3452 = vmul.f32 %v3224, %v3406
        %v3453 = vmul.f32 %v3226, %v3407
        %v3454 = vmul.f32 %v3228, %v3407
        %v3455 = vmul.f32 %v3230, %v3408
        %v3456 = vmul.f32 %v3232, %v3408
        %v3457 = vmul.f32 %v3234, %v3409
        %v3458 = vmul.f32 %v3236, %v3409
        %v3459 = vmul.f32 %v3238, %v3410
        %v3460 = vmul.f32 %v3240, %v3410
        %v3461 = vmul.f32 %v3242, %v3411
        %v3462 = vmul.f32 %v3244, %v3411
        %v3463 = vmul.f32 %v3246, %v3412
        %v3464 = vmul.f32 %v3248, %v3412
        %v3465 = vmul.f32 %v3250, %v3413
        %v3466 = vmul.f32 %v3252, %v3413
        %v3467 = vmul.f32 %v3254, %v3414
        %v3468 = vmul.f32 %v3256, %v3414
        %v3469 = vmul.f32 %v3258, %v3415
        %v3470 = vmul.f32 %v3260, %v3415
        %v3471 = vmul.f32 %v3262, %v3416
        %v3472 = vmul.f32 %v3264, %v3416
        %v3473 = vmul.f32 %v3266, %v3417
        %v3474 = vmul.f32 %v3268, %v3417
        %v3475 = vmul.f32 %v3270, %v3418
        %v3476 = vmul.f32 %v3272, %v3418
        %v3477 = vmul.f32 %v3274, %v3419
        %v3478 = vmul.f32 %v3276, %v3419
        %v3479 = vmul.f32 %v3278, %v3420
        %v3480 = vmul.f32 %v3280, %v3420
        %v3481 = vmul.f32 %v3282, %v3421
        %v3482 = vmul.f32 %v3284, %v3421
        %v3483 = vmul.f32 %v3286, %v3422
        %v3484 = vmul.f32 %v3288, %v3422
        %v3485 = vmul.f32 %v3290, %v3423
        %v3486 = vmul.f32 %v3292, %v3423
        %v3487 = vmul.f32 %v3294, %v3424
        %v3488 = vmul.f32 %v3296, %v3424
        %v3489 = vpack.c.bf16 %v3427, %v3425
        %v3490 = vpack.c.bf16 %v3428, %v3426
        %v3491 = vpack.c.bf16 %v3431, %v3429
        %v3492 = vpack.c.bf16 %v3432, %v3430
        %v3493 = vpack.c.bf16 %v3435, %v3433
        %v3494 = vpack.c.bf16 %v3436, %v3434
        %v3495 = vpack.c.bf16 %v3439, %v3437
        %v3496 = vpack.c.bf16 %v3440, %v3438
        %v3497 = vpack.c.bf16 %v3443, %v3441
        %v3498 = vpack.c.bf16 %v3444, %v3442
        %v3499 = vpack.c.bf16 %v3447, %v3445
        %v3500 = vpack.c.bf16 %v3448, %v3446
        %v3501 = vpack.c.bf16 %v3451, %v3449
        %v3502 = vpack.c.bf16 %v3452, %v3450
        %v3503 = vpack.c.bf16 %v3455, %v3453
        %v3504 = vpack.c.bf16 %v3456, %v3454
        %v3505 = vpack.c.bf16 %v3459, %v3457
        %v3506 = vpack.c.bf16 %v3460, %v3458
        %v3507 = vpack.c.bf16 %v3463, %v3461
        %v3508 = vpack.c.bf16 %v3464, %v3462
        %v3509 = vpack.c.bf16 %v3467, %v3465
        %v3510 = vpack.c.bf16 %v3468, %v3466
        %v3511 = vpack.c.bf16 %v3471, %v3469
        %v3512 = vpack.c.bf16 %v3472, %v3470
        %v3513 = vpack.c.bf16 %v3475, %v3473
        %v3514 = vpack.c.bf16 %v3476, %v3474
        %v3515 = vpack.c.bf16 %v3479, %v3477
        %v3516 = vpack.c.bf16 %v3480, %v3478
        %v3517 = vpack.c.bf16 %v3483, %v3481
        %v3518 = vpack.c.bf16 %v3484, %v3482
        %v3519 = vpack.c.bf16 %v3487, %v3485
        %v3520 = vpack.c.bf16 %v3488, %v3486
        %3521 = vmatprep.subr.bf16.mxu0 0
        %3522 = vmatpush1.bf16.msra.mxu0 %v1756
        %3523 = vmatprep.subr.bf16.mxu0 0
        %3524 = vmatpush1.bf16.msra.mxu0 %v1750
        %3525 = vmatprep.subr.bf16.mxu0 0
        %3526 = vmatpush1.bf16.msra.mxu0 %v1744
        %3527 = vmatprep.subr.bf16.mxu0 0
        %3528 = vmatpush1.bf16.msra.mxu0 %v1738
        %3529 = vmatprep.subr.bf16.mxu0 0
        %3530 = vmatpush1.bf16.msra.mxu0 %v1732
        %3531 = vmatprep.subr.bf16.mxu0 0
        %3532 = vmatpush1.bf16.msra.mxu0 %v1726
        %3533 = vmatprep.subr.bf16.mxu0 0
        %3534 = vmatpush1.bf16.msra.mxu0 %v1720
        %3535 = vmatprep.subr.bf16.mxu0 0
        %3536 = vmatpush1.bf16.msra.mxu0 %v1714
        %3537 = vmatprep.subr.bf16.mxu0 0
        %3538 = vmatpush2.bf16.msra.mxu0 %v1804
        %3539 = vmatprep.subr.bf16.mxu0 0
        %3540 = vmatpush2.bf16.msra.mxu0 %v1798
        %3541 = vmatprep.subr.bf16.mxu0 0
        %3542 = vmatpush2.bf16.msra.mxu0 %v1792
        %3543 = vmatprep.subr.bf16.mxu0 0
        %3544 = vmatpush2.bf16.msra.mxu0 %v1786
        %3545 = vmatprep.subr.bf16.mxu0 0
        %3546 = vmatpush2.bf16.msra.mxu0 %v1780
        %3547 = vmatprep.subr.bf16.mxu0 0
        %3548 = vmatpush2.bf16.msra.mxu0 %v1774
        %3549 = vmatprep.subr.bf16.mxu0 0
        %3550 = vmatpush2.bf16.msra.mxu0 %v1768
        %3551 = vmatprep.subr.bf16.mxu0 0
        %3552 = vmatpush2.bf16.msra.mxu0 %v1762
        %3553 = vmatprep.mubr.bf16.mxu0 %v3490
        %3554 = vmatmul.mubr.bf16.gmra.mxu0 %v3489
        %v3555 = vpop.f32.mrf.mxu0
        %v3556 = vadd.f32 0.0, %v3555
        %v3557 = vpop.f32.mrf.mxu0
        %v3558 = vpop.f32.mrf.mxu0
        %v3559 = vadd.f32 0.0, %v3558
        %v3560 = vpop.f32.mrf.mxu0
        %3561 = vmatprep.mubr.bf16.mxu0 %v3492
        %3562 = vmatmul.mubr.bf16.gmra.mxu0 %v3491
        %v3563 = vpop.f32.mrf.mxu0
        %v3564 = vadd.f32 0.0, %v3563
        %v3565 = vpop.f32.mrf.mxu0
        %v3566 = vpop.f32.mrf.mxu0
        %v3567 = vadd.f32 0.0, %v3566
        %v3568 = vpop.f32.mrf.mxu0
        %3569 = vmatprep.mubr.bf16.mxu0 %v3494
        %3570 = vmatmul.mubr.bf16.gmra.mxu0 %v3493
        %v3571 = vpop.f32.mrf.mxu0
        %v3572 = vadd.f32 0.0, %v3571
        %v3573 = vpop.f32.mrf.mxu0
        %v3574 = vpop.f32.mrf.mxu0
        %v3575 = vadd.f32 0.0, %v3574
        %v3576 = vpop.f32.mrf.mxu0
        %3577 = vmatprep.mubr.bf16.mxu0 %v3496
        %3578 = vmatmul.mubr.bf16.gmra.mxu0 %v3495
        %v3579 = vpop.f32.mrf.mxu0
        %v3580 = vadd.f32 0.0, %v3579
        %v3581 = vpop.f32.mrf.mxu0
        %v3582 = vpop.f32.mrf.mxu0
        %v3583 = vadd.f32 0.0, %v3582
        %v3584 = vpop.f32.mrf.mxu0
        %3585 = vmatprep.mubr.bf16.mxu0 %v3498
        %3586 = vmatmul.mubr.bf16.gmra.mxu0 %v3497
        %v3587 = vpop.f32.mrf.mxu0
        %v3588 = vadd.f32 0.0, %v3587
        %v3589 = vpop.f32.mrf.mxu0
        %v3590 = vpop.f32.mrf.mxu0
        %v3591 = vadd.f32 0.0, %v3590
        %v3592 = vpop.f32.mrf.mxu0
        %3593 = vmatprep.mubr.bf16.mxu0 %v3500
        %3594 = vmatmul.mubr.bf16.gmra.mxu0 %v3499
        %v3595 = vpop.f32.mrf.mxu0
        %v3596 = vadd.f32 0.0, %v3595
        %v3597 = vpop.f32.mrf.mxu0
        %v3598 = vpop.f32.mrf.mxu0
        %v3599 = vadd.f32 0.0, %v3598
        %v3600 = vpop.f32.mrf.mxu0
        %3601 = vmatprep.mubr.bf16.mxu0 %v3502
        %3602 = vmatmul.mubr.bf16.gmra.mxu0 %v3501
        %v3603 = vpop.f32.mrf.mxu0
        %v3604 = vadd.f32 0.0, %v3603
        %v3605 = vpop.f32.mrf.mxu0
        %v3606 = vpop.f32.mrf.mxu0
        %v3607 = vadd.f32 0.0, %v3606
        %v3608 = vpop.f32.mrf.mxu0
        %3609 = vmatprep.mubr.bf16.mxu0 %v3504
        %3610 = vmatmul.mubr.bf16.gmra.mxu0 %v3503
        %v3611 = vpop.f32.mrf.mxu0
        %v3612 = vadd.f32 0.0, %v3611
        %v3613 = vpop.f32.mrf.mxu0
        %v3614 = vpop.f32.mrf.mxu0
        %v3615 = vadd.f32 0.0, %v3614
        %v3616 = vpop.f32.mrf.mxu0
        %3617 = vmatprep.mubr.bf16.mxu0 %v3506
        %3618 = vmatmul.mubr.bf16.gmra.mxu0 %v3505
        %v3619 = vpop.f32.mrf.mxu0
        %v3620 = vadd.f32 0.0, %v3619
        %v3621 = vpop.f32.mrf.mxu0
        %v3622 = vpop.f32.mrf.mxu0
        %v3623 = vadd.f32 0.0, %v3622
        %v3624 = vpop.f32.mrf.mxu0
        %3625 = vmatprep.mubr.bf16.mxu0 %v3508
        %3626 = vmatmul.mubr.bf16.gmra.mxu0 %v3507
        %v3627 = vpop.f32.mrf.mxu0
        %v3628 = vadd.f32 0.0, %v3627
        %v3629 = vpop.f32.mrf.mxu0
        %v3630 = vpop.f32.mrf.mxu0
        %v3631 = vadd.f32 0.0, %v3630
        %v3632 = vpop.f32.mrf.mxu0
        %3633 = vmatprep.mubr.bf16.mxu0 %v3510
        %3634 = vmatmul.mubr.bf16.gmra.mxu0 %v3509
        %v3635 = vpop.f32.mrf.mxu0
        %v3636 = vadd.f32 0.0, %v3635
        %v3637 = vpop.f32.mrf.mxu0
        %v3638 = vpop.f32.mrf.mxu0
        %v3639 = vadd.f32 0.0, %v3638
        %v3640 = vpop.f32.mrf.mxu0
        %3641 = vmatprep.mubr.bf16.mxu0 %v3512
        %3642 = vmatmul.mubr.bf16.gmra.mxu0 %v3511
        %v3643 = vpop.f32.mrf.mxu0
        %v3644 = vadd.f32 0.0, %v3643
        %v3645 = vpop.f32.mrf.mxu0
        %v3646 = vpop.f32.mrf.mxu0
        %v3647 = vadd.f32 0.0, %v3646
        %v3648 = vpop.f32.mrf.mxu0
        %3649 = vmatprep.mubr.bf16.mxu0 %v3514
        %3650 = vmatmul.mubr.bf16.gmra.mxu0 %v3513
        %v3651 = vpop.f32.mrf.mxu0
        %v3652 = vadd.f32 0.0, %v3651
        %v3653 = vpop.f32.mrf.mxu0
        %v3654 = vpop.f32.mrf.mxu0
        %v3655 = vadd.f32 0.0, %v3654
        %v3656 = vpop.f32.mrf.mxu0
        %3657 = vmatprep.mubr.bf16.mxu0 %v3516
        %3658 = vmatmul.mubr.bf16.gmra.mxu0 %v3515
        %v3659 = vpop.f32.mrf.mxu0
        %v3660 = vadd.f32 0.0, %v3659
        %v3661 = vpop.f32.mrf.mxu0
        %v3662 = vpop.f32.mrf.mxu0
        %v3663 = vadd.f32 0.0, %v3662
        %v3664 = vpop.f32.mrf.mxu0
        %3665 = vmatprep.mubr.bf16.mxu0 %v3518
        %3666 = vmatmul.mubr.bf16.gmra.mxu0 %v3517
        %v3667 = vpop.f32.mrf.mxu0
        %v3668 = vadd.f32 0.0, %v3667
        %v3669 = vpop.f32.mrf.mxu0
        %v3670 = vpop.f32.mrf.mxu0
        %v3671 = vadd.f32 0.0, %v3670
        %v3672 = vpop.f32.mrf.mxu0
        %3673 = vmatprep.mubr.bf16.mxu0 %v3520
        %3674 = vmatmul.mubr.bf16.gmra.mxu0 %v3519
        %v3675 = vpop.f32.mrf.mxu0
        %v3676 = vadd.f32 0.0, %v3675
        %v3677 = vpop.f32.mrf.mxu0
        %v3678 = vpop.f32.mrf.mxu0
        %v3679 = vadd.f32 0.0, %v3678
        %v3680 = vpop.f32.mrf.mxu0
        %3681 = vdwg.mxu0
        %v3682 = vpack.c.bf16 %v3559, %v3556
        %v3683 = vpack.c.bf16 %v3567, %v3564
        %v3684 = vpack.c.bf16 %v3575, %v3572
        %v3685 = vpack.c.bf16 %v3583, %v3580
        %v3686 = vpack.c.bf16 %v3591, %v3588
        %v3687 = vpack.c.bf16 %v3599, %v3596
        %v3688 = vpack.c.bf16 %v3607, %v3604
        %v3689 = vpack.c.bf16 %v3615, %v3612
        %v3690 = vpack.c.bf16 %v3623, %v3620
        %v3691 = vpack.c.bf16 %v3631, %v3628
        %v3692 = vpack.c.bf16 %v3639, %v3636
        %v3693 = vpack.c.bf16 %v3647, %v3644
        %v3694 = vpack.c.bf16 %v3655, %v3652
        %v3695 = vpack.c.bf16 %v3663, %v3660
        %v3696 = vpack.c.bf16 %v3671, %v3668
        %v3697 = vpack.c.bf16 %v3679, %v3676
        %v3698 = vld [vmem:[#allocation8] sm:$0xff]
        %v3699 = vld [vmem:[#allocation8 + $0x8] sm:$0xff]
        %v3700 = vld [vmem:[#allocation8 + $0x10] sm:$0xff]
        %v3701 = vld [vmem:[#allocation8 + $0x18] sm:$0xff]
        %v3702 = vld [vmem:[#allocation8 + $0x20] sm:$0xff]
        %v3703 = vld [vmem:[#allocation8 + $0x28] sm:$0xff]
        %v3704 = vld [vmem:[#allocation8 + $0x30] sm:$0xff]
        %v3705 = vld [vmem:[#allocation8 + $0x38] sm:$0xff]
        %v3706 = vld [vmem:[#allocation8 + $0x40] sm:$0xff]
        %v3707 = vld [vmem:[#allocation8 + $0x48] sm:$0xff]
        %v3708 = vld [vmem:[#allocation8 + $0x50] sm:$0xff]
        %v3709 = vld [vmem:[#allocation8 + $0x58] sm:$0xff]
        %v3710 = vld [vmem:[#allocation8 + $0x60] sm:$0xff]
        %v3711 = vld [vmem:[#allocation8 + $0x68] sm:$0xff]
        %v3712 = vld [vmem:[#allocation8 + $0x70] sm:$0xff]
        %v3713 = vld [vmem:[#allocation8 + $0x78] sm:$0xff]
        %v3714 = vld [vmem:[#allocation8 + $0x80] sm:$0xff]
        %v3715 = vld [vmem:[#allocation8 + $0x88] sm:$0xff]
        %v3716 = vld [vmem:[#allocation8 + $0x90] sm:$0xff]
        %v3717 = vld [vmem:[#allocation8 + $0x98] sm:$0xff]
        %v3718 = vld [vmem:[#allocation8 + $0xa0] sm:$0xff]
        %v3719 = vld [vmem:[#allocation8 + $0xa8] sm:$0xff]
        %v3720 = vld [vmem:[#allocation8 + $0xb0] sm:$0xff]
        %v3721 = vld [vmem:[#allocation8 + $0xb8] sm:$0xff]
        %v3722 = vld [vmem:[#allocation8 + $0xc0] sm:$0xff]
        %v3723 = vld [vmem:[#allocation8 + $0xc8] sm:$0xff]
        %v3724 = vld [vmem:[#allocation8 + $0xd0] sm:$0xff]
        %v3725 = vld [vmem:[#allocation8 + $0xd8] sm:$0xff]
        %v3726 = vld [vmem:[#allocation8 + $0xe0] sm:$0xff]
        %v3727 = vld [vmem:[#allocation8 + $0xe8] sm:$0xff]
        %v3728 = vld [vmem:[#allocation8 + $0xf0] sm:$0xff]
        %v3729 = vld [vmem:[#allocation8 + $0xf8] sm:$0xff]
        %v3730 = vld [vmem:[%s4] sm:$0x3]
        %v3732 = vlaneseq
        %v3733 = vshrl.u32 %v3732, 7
        %v3734 = vsub.s32 0, %v3733
        %v3735 = vrot.slane %v3730, %v3734
        %v3736 = vlaneseq
        %v3737 = vshrl.u32 %v3736, 7
        %v3738 = vsub.s32 1, %v3737
        %v3739 = vrot.slane %v3730, %v3738
        %v3774 = vunpack.c.l.b16 %v3698
        %v3775 = vunpack.c.h.b16 %v3698
        %v3776 = vunpack.c.l.b16 %v3699
        %v3777 = vunpack.c.h.b16 %v3699
        %v3778 = vunpack.c.l.b16 %v3700
        %v3779 = vunpack.c.h.b16 %v3700
        %v3780 = vunpack.c.l.b16 %v3701
        %v3781 = vunpack.c.h.b16 %v3701
        %v3782 = vunpack.c.l.b16 %v3702
        %v3783 = vunpack.c.h.b16 %v3702
        %v3784 = vunpack.c.l.b16 %v3703
        %v3785 = vunpack.c.h.b16 %v3703
        %v3786 = vunpack.c.l.b16 %v3704
        %v3787 = vunpack.c.h.b16 %v3704
        %v3788 = vunpack.c.l.b16 %v3705
        %v3789 = vunpack.c.h.b16 %v3705
        %v3790 = vunpack.c.l.b16 %v3706
        %v3791 = vunpack.c.h.b16 %v3706
        %v3792 = vunpack.c.l.b16 %v3707
        %v3793 = vunpack.c.h.b16 %v3707
        %v3794 = vunpack.c.l.b16 %v3708
        %v3795 = vunpack.c.h.b16 %v3708
        %v3796 = vunpack.c.l.b16 %v3709
        %v3797 = vunpack.c.h.b16 %v3709
        %v3798 = vunpack.c.l.b16 %v3710
        %v3799 = vunpack.c.h.b16 %v3710
        %v3800 = vunpack.c.l.b16 %v3711
        %v3801 = vunpack.c.h.b16 %v3711
        %v3802 = vunpack.c.l.b16 %v3712
        %v3803 = vunpack.c.h.b16 %v3712
        %v3804 = vunpack.c.l.b16 %v3713
        %v3805 = vunpack.c.h.b16 %v3713
        %v3806 = vunpack.c.l.b16 %v3714
        %v3807 = vunpack.c.h.b16 %v3714
        %v3808 = vunpack.c.l.b16 %v3715
        %v3809 = vunpack.c.h.b16 %v3715
        %v3810 = vunpack.c.l.b16 %v3716
        %v3811 = vunpack.c.h.b16 %v3716
        %v3812 = vunpack.c.l.b16 %v3717
        %v3813 = vunpack.c.h.b16 %v3717
        %v3814 = vunpack.c.l.b16 %v3718
        %v3815 = vunpack.c.h.b16 %v3718
        %v3816 = vunpack.c.l.b16 %v3719
        %v3817 = vunpack.c.h.b16 %v3719
        %v3818 = vunpack.c.l.b16 %v3720
        %v3819 = vunpack.c.h.b16 %v3720
        %v3820 = vunpack.c.l.b16 %v3721
        %v3821 = vunpack.c.h.b16 %v3721
        %v3822 = vunpack.c.l.b16 %v3722
        %v3823 = vunpack.c.h.b16 %v3722
        %v3824 = vunpack.c.l.b16 %v3723
        %v3825 = vunpack.c.h.b16 %v3723
        %v3826 = vunpack.c.l.b16 %v3724
        %v3827 = vunpack.c.h.b16 %v3724
        %v3828 = vunpack.c.l.b16 %v3725
        %v3829 = vunpack.c.h.b16 %v3725
        %v3830 = vunpack.c.l.b16 %v3726
        %v3831 = vunpack.c.h.b16 %v3726
        %v3832 = vunpack.c.l.b16 %v3727
        %v3833 = vunpack.c.h.b16 %v3727
        %v3834 = vunpack.c.l.b16 %v3728
        %v3835 = vunpack.c.h.b16 %v3728
        %v3836 = vunpack.c.l.b16 %v3729
        %v3837 = vunpack.c.h.b16 %v3729
        %v3838 = vpack.c.b16 %v3776, %v3774
        %v3839 = vpack.c.b16 %v3777, %v3775
        %v3840 = vpack.c.b16 %v3780, %v3778
        %v3841 = vpack.c.b16 %v3781, %v3779
        %v3842 = vpack.c.b16 %v3784, %v3782
        %v3843 = vpack.c.b16 %v3785, %v3783
        %v3844 = vpack.c.b16 %v3788, %v3786
        %v3845 = vpack.c.b16 %v3789, %v3787
        %v3846 = vpack.c.b16 %v3792, %v3790
        %v3847 = vpack.c.b16 %v3793, %v3791
        %v3848 = vpack.c.b16 %v3796, %v3794
        %v3849 = vpack.c.b16 %v3797, %v3795
        %v3850 = vpack.c.b16 %v3800, %v3798
        %v3851 = vpack.c.b16 %v3801, %v3799
        %v3852 = vpack.c.b16 %v3804, %v3802
        %v3853 = vpack.c.b16 %v3805, %v3803
        %v3854 = vpack.c.b16 %v3808, %v3806
        %v3855 = vpack.c.b16 %v3809, %v3807
        %v3856 = vpack.c.b16 %v3812, %v3810
        %v3857 = vpack.c.b16 %v3813, %v3811
        %v3858 = vpack.c.b16 %v3816, %v3814
        %v3859 = vpack.c.b16 %v3817, %v3815
        %v3860 = vpack.c.b16 %v3820, %v3818
        %v3861 = vpack.c.b16 %v3821, %v3819
        %v3862 = vpack.c.b16 %v3824, %v3822
        %v3863 = vpack.c.b16 %v3825, %v3823
        %v3864 = vpack.c.b16 %v3828, %v3826
        %v3865 = vpack.c.b16 %v3829, %v3827
        %v3866 = vpack.c.b16 %v3832, %v3830
        %v3867 = vpack.c.b16 %v3833, %v3831
        %v3868 = vpack.c.b16 %v3836, %v3834
        %v3869 = vpack.c.b16 %v3837, %v3835
        %3902 = vmatprep.subr.bf16.mxu0 %v3853
        %3903 = vmatpush1.bf16.msra.mxu0 %v3852
        %3904 = vmatprep.subr.bf16.mxu0 %v3851
        %3905 = vmatpush1.bf16.msra.mxu0 %v3850
        %3906 = vmatprep.subr.bf16.mxu0 %v3849
        %3907 = vmatpush1.bf16.msra.mxu0 %v3848
        %3908 = vmatprep.subr.bf16.mxu0 %v3847
        %3909 = vmatpush1.bf16.msra.mxu0 %v3846
        %3910 = vmatprep.subr.bf16.mxu0 %v3845
        %3911 = vmatpush1.bf16.msra.mxu0 %v3844
        %3912 = vmatprep.subr.bf16.mxu0 %v3843
        %3913 = vmatpush1.bf16.msra.mxu0 %v3842
        %3914 = vmatprep.subr.bf16.mxu0 %v3841
        %3915 = vmatpush1.bf16.msra.mxu0 %v3840
        %3916 = vmatprep.subr.bf16.mxu0 %v3839
        %3917 = vmatpush1.bf16.msra.mxu0 %v3838
        %3918 = vmatprep.subr.bf16.mxu0 %v3869
        %3919 = vmatpush2.bf16.msra.mxu0 %v3868
        %3920 = vmatprep.subr.bf16.mxu0 %v3867
        %3921 = vmatpush2.bf16.msra.mxu0 %v3866
        %3922 = vmatprep.subr.bf16.mxu0 %v3865
        %3923 = vmatpush2.bf16.msra.mxu0 %v3864
        %3924 = vmatprep.subr.bf16.mxu0 %v3863
        %3925 = vmatpush2.bf16.msra.mxu0 %v3862
        %3926 = vmatprep.subr.bf16.mxu0 %v3861
        %3927 = vmatpush2.bf16.msra.mxu0 %v3860
        %3928 = vmatprep.subr.bf16.mxu0 %v3859
        %3929 = vmatpush2.bf16.msra.mxu0 %v3858
        %3930 = vmatprep.subr.bf16.mxu0 %v3857
        %3931 = vmatpush2.bf16.msra.mxu0 %v3856
        %3932 = vmatprep.subr.bf16.mxu0 %v3855
        %3933 = vmatpush2.bf16.msra.mxu0 %v3854
        %3934 = vmatprep.mubr.bf16.mxu0 %v3682
        %3935 = vmatmul.mubr.bf16.gmra.mxu0 %v2735
        %v3936 = vpop.f32.mrf.mxu0
        %v3937 = vadd.f32 %v3735, %v3936
        %v3938 = vpop.f32.mrf.mxu0
        %v3939 = vadd.f32 %v3739, %v3938
        %v3940 = vpop.f32.mrf.mxu0
        %v3941 = vadd.f32 %v3735, %v3940
        %v3942 = vpop.f32.mrf.mxu0
        %v3943 = vadd.f32 %v3739, %v3942
        %3944 = vmatprep.mubr.bf16.mxu0 %v3683
        %3945 = vmatmul.mubr.bf16.gmra.mxu0 %v2736
        %v3946 = vpop.f32.mrf.mxu0
        %v3947 = vadd.f32 %v3735, %v3946
        %v3948 = vpop.f32.mrf.mxu0
        %v3949 = vadd.f32 %v3739, %v3948
        %v3950 = vpop.f32.mrf.mxu0
        %v3951 = vadd.f32 %v3735, %v3950
        %v3952 = vpop.f32.mrf.mxu0
        %v3953 = vadd.f32 %v3739, %v3952
        %3954 = vmatprep.mubr.bf16.mxu0 %v3684
        %3955 = vmatmul.mubr.bf16.gmra.mxu0 %v2737
        %v3956 = vpop.f32.mrf.mxu0
        %v3957 = vadd.f32 %v3735, %v3956
        %v3958 = vpop.f32.mrf.mxu0
        %v3959 = vadd.f32 %v3739, %v3958
        %v3960 = vpop.f32.mrf.mxu0
        %v3961 = vadd.f32 %v3735, %v3960
        %v3962 = vpop.f32.mrf.mxu0
        %v3963 = vadd.f32 %v3739, %v3962
        %3964 = vmatprep.mubr.bf16.mxu0 %v3685
        %3965 = vmatmul.mubr.bf16.gmra.mxu0 %v2738
        %v3966 = vpop.f32.mrf.mxu0
        %v3967 = vadd.f32 %v3735, %v3966
        %v3968 = vpop.f32.mrf.mxu0
        %v3969 = vadd.f32 %v3739, %v3968
        %v3970 = vpop.f32.mrf.mxu0
        %v3971 = vadd.f32 %v3735, %v3970
        %v3972 = vpop.f32.mrf.mxu0
        %v3973 = vadd.f32 %v3739, %v3972
        %3974 = vmatprep.mubr.bf16.mxu0 %v3686
        %3975 = vmatmul.mubr.bf16.gmra.mxu0 %v2739
        %v3976 = vpop.f32.mrf.mxu0
        %v3977 = vadd.f32 %v3735, %v3976
        %v3978 = vpop.f32.mrf.mxu0
        %v3979 = vadd.f32 %v3739, %v3978
        %v3980 = vpop.f32.mrf.mxu0
        %v3981 = vadd.f32 %v3735, %v3980
        %v3982 = vpop.f32.mrf.mxu0
        %v3983 = vadd.f32 %v3739, %v3982
        %3984 = vmatprep.mubr.bf16.mxu0 %v3687
        %3985 = vmatmul.mubr.bf16.gmra.mxu0 %v2740
        %v3986 = vpop.f32.mrf.mxu0
        %v3987 = vadd.f32 %v3735, %v3986
        %v3988 = vpop.f32.mrf.mxu0
        %v3989 = vadd.f32 %v3739, %v3988
        %v3990 = vpop.f32.mrf.mxu0
        %v3991 = vadd.f32 %v3735, %v3990
        %v3992 = vpop.f32.mrf.mxu0
        %v3993 = vadd.f32 %v3739, %v3992
        %3994 = vmatprep.mubr.bf16.mxu0 %v3688
        %3995 = vmatmul.mubr.bf16.gmra.mxu0 %v2741
        %v3996 = vpop.f32.mrf.mxu0
        %v3997 = vadd.f32 %v3735, %v3996
        %v3998 = vpop.f32.mrf.mxu0
        %v3999 = vadd.f32 %v3739, %v3998
        %v4000 = vpop.f32.mrf.mxu0
        %v4001 = vadd.f32 %v3735, %v4000
        %v4002 = vpop.f32.mrf.mxu0
        %v4003 = vadd.f32 %v3739, %v4002
        %4004 = vmatprep.mubr.bf16.mxu0 %v3689
        %4005 = vmatmul.mubr.bf16.gmra.mxu0 %v2742
        %v4006 = vpop.f32.mrf.mxu0
        %v4007 = vadd.f32 %v3735, %v4006
        %v4008 = vpop.f32.mrf.mxu0
        %v4009 = vadd.f32 %v3739, %v4008
        %v4010 = vpop.f32.mrf.mxu0
        %v4011 = vadd.f32 %v3735, %v4010
        %v4012 = vpop.f32.mrf.mxu0
        %v4013 = vadd.f32 %v3739, %v4012
        %4014 = vmatprep.mubr.bf16.mxu0 %v3690
        %4015 = vmatmul.mubr.bf16.gmra.mxu0 %v2743
        %v4016 = vpop.f32.mrf.mxu0
        %v4017 = vadd.f32 %v3735, %v4016
        %v4018 = vpop.f32.mrf.mxu0
        %v4019 = vadd.f32 %v3739, %v4018
        %v4020 = vpop.f32.mrf.mxu0
        %v4021 = vadd.f32 %v3735, %v4020
        %v4022 = vpop.f32.mrf.mxu0
        %v4023 = vadd.f32 %v3739, %v4022
        %4024 = vmatprep.mubr.bf16.mxu0 %v3691
        %4025 = vmatmul.mubr.bf16.gmra.mxu0 %v2744
        %v4026 = vpop.f32.mrf.mxu0
        %v4027 = vadd.f32 %v3735, %v4026
        %v4028 = vpop.f32.mrf.mxu0
        %v4029 = vadd.f32 %v3739, %v4028
        %v4030 = vpop.f32.mrf.mxu0
        %v4031 = vadd.f32 %v3735, %v4030
        %v4032 = vpop.f32.mrf.mxu0
        %v4033 = vadd.f32 %v3739, %v4032
        %4034 = vmatprep.mubr.bf16.mxu0 %v3692
        %4035 = vmatmul.mubr.bf16.gmra.mxu0 %v2745
        %v4036 = vpop.f32.mrf.mxu0
        %v4037 = vadd.f32 %v3735, %v4036
        %v4038 = vpop.f32.mrf.mxu0
        %v4039 = vadd.f32 %v3739, %v4038
        %v4040 = vpop.f32.mrf.mxu0
        %v4041 = vadd.f32 %v3735, %v4040
        %v4042 = vpop.f32.mrf.mxu0
        %v4043 = vadd.f32 %v3739, %v4042
        %4044 = vmatprep.mubr.bf16.mxu0 %v3693
        %4045 = vmatmul.mubr.bf16.gmra.mxu0 %v2746
        %v4046 = vpop.f32.mrf.mxu0
        %v4047 = vadd.f32 %v3735, %v4046
        %v4048 = vpop.f32.mrf.mxu0
        %v4049 = vadd.f32 %v3739, %v4048
        %v4050 = vpop.f32.mrf.mxu0
        %v4051 = vadd.f32 %v3735, %v4050
        %v4052 = vpop.f32.mrf.mxu0
        %v4053 = vadd.f32 %v3739, %v4052
        %4054 = vmatprep.mubr.bf16.mxu0 %v3694
        %4055 = vmatmul.mubr.bf16.gmra.mxu0 %v2747
        %v4056 = vpop.f32.mrf.mxu0
        %v4057 = vadd.f32 %v3735, %v4056
        %v4058 = vpop.f32.mrf.mxu0
        %v4059 = vadd.f32 %v3739, %v4058
        %v4060 = vpop.f32.mrf.mxu0
        %v4061 = vadd.f32 %v3735, %v4060
        %v4062 = vpop.f32.mrf.mxu0
        %v4063 = vadd.f32 %v3739, %v4062
        %4064 = vmatprep.mubr.bf16.mxu0 %v3695
        %4065 = vmatmul.mubr.bf16.gmra.mxu0 %v2748
        %v4066 = vpop.f32.mrf.mxu0
        %v4067 = vadd.f32 %v3735, %v4066
        %v4068 = vpop.f32.mrf.mxu0
        %v4069 = vadd.f32 %v3739, %v4068
        %v4070 = vpop.f32.mrf.mxu0
        %v4071 = vadd.f32 %v3735, %v4070
        %v4072 = vpop.f32.mrf.mxu0
        %v4073 = vadd.f32 %v3739, %v4072
        %4074 = vmatprep.mubr.bf16.mxu0 %v3696
        %4075 = vmatmul.mubr.bf16.gmra.mxu0 %v2749
        %v4076 = vpop.f32.mrf.mxu0
        %v4077 = vadd.f32 %v3735, %v4076
        %v4078 = vpop.f32.mrf.mxu0
        %v4079 = vadd.f32 %v3739, %v4078
        %v4080 = vpop.f32.mrf.mxu0
        %v4081 = vadd.f32 %v3735, %v4080
        %v4082 = vpop.f32.mrf.mxu0
        %v4083 = vadd.f32 %v3739, %v4082
        %4084 = vmatprep.mubr.bf16.mxu0 %v3697
        %4085 = vmatmul.mubr.bf16.gmra.mxu0 %v2750
        %v4086 = vpop.f32.mrf.mxu0
        %v4087 = vadd.f32 %v3735, %v4086
        %v4088 = vpop.f32.mrf.mxu0
        %v4089 = vadd.f32 %v3739, %v4088
        %v4090 = vpop.f32.mrf.mxu0
        %v4091 = vadd.f32 %v3735, %v4090
        %v4092 = vpop.f32.mrf.mxu0
        %v4093 = vadd.f32 %v3739, %v4092
        %4094 = vdwg.mxu0
        %v4095 = vpack.c.bf16 %v3941, %v3937
        %v4096 = vpack.c.bf16 %v3943, %v3939
        %v4097 = vpack.c.bf16 %v3951, %v3947
        %v4098 = vpack.c.bf16 %v3953, %v3949
        %v4099 = vpack.c.bf16 %v3961, %v3957
        %v4100 = vpack.c.bf16 %v3963, %v3959
        %v4101 = vpack.c.bf16 %v3971, %v3967
        %v4102 = vpack.c.bf16 %v3973, %v3969
        %v4103 = vpack.c.bf16 %v3981, %v3977
        %v4104 = vpack.c.bf16 %v3983, %v3979
        %v4105 = vpack.c.bf16 %v3991, %v3987
        %v4106 = vpack.c.bf16 %v3993, %v3989
        %v4107 = vpack.c.bf16 %v4001, %v3997
        %v4108 = vpack.c.bf16 %v4003, %v3999
        %v4109 = vpack.c.bf16 %v4011, %v4007
        %v4110 = vpack.c.bf16 %v4013, %v4009
        %v4111 = vpack.c.bf16 %v4021, %v4017
        %v4112 = vpack.c.bf16 %v4023, %v4019
        %v4113 = vpack.c.bf16 %v4031, %v4027
        %v4114 = vpack.c.bf16 %v4033, %v4029
        %v4115 = vpack.c.bf16 %v4041, %v4037
        %v4116 = vpack.c.bf16 %v4043, %v4039
        %v4117 = vpack.c.bf16 %v4051, %v4047
        %v4118 = vpack.c.bf16 %v4053, %v4049
        %v4119 = vpack.c.bf16 %v4061, %v4057
        %v4120 = vpack.c.bf16 %v4063, %v4059
        %v4121 = vpack.c.bf16 %v4071, %v4067
        %v4122 = vpack.c.bf16 %v4073, %v4069
        %v4123 = vpack.c.bf16 %v4081, %v4077
        %v4124 = vpack.c.bf16 %v4083, %v4079
        %v4125 = vpack.c.bf16 %v4091, %v4087
        %v4126 = vpack.c.bf16 %v4093, %v4089
        %v4159 = vunpack.c.l.b16 %v4095
        %v4160 = vunpack.c.l.b16 %v4096
        %v4161 = vunpack.c.h.b16 %v4095
        %v4162 = vunpack.c.h.b16 %v4096
        %v4163 = vunpack.c.l.b16 %v4097
        %v4164 = vunpack.c.l.b16 %v4098
        %v4165 = vunpack.c.h.b16 %v4097
        %v4166 = vunpack.c.h.b16 %v4098
        %v4167 = vunpack.c.l.b16 %v4099
        %v4168 = vunpack.c.l.b16 %v4100
        %v4169 = vunpack.c.h.b16 %v4099
        %v4170 = vunpack.c.h.b16 %v4100
        %v4171 = vunpack.c.l.b16 %v4101
        %v4172 = vunpack.c.l.b16 %v4102
        %v4173 = vunpack.c.h.b16 %v4101
        %v4174 = vunpack.c.h.b16 %v4102
        %v4175 = vunpack.c.l.b16 %v4103
        %v4176 = vunpack.c.l.b16 %v4104
        %v4177 = vunpack.c.h.b16 %v4103
        %v4178 = vunpack.c.h.b16 %v4104
        %v4179 = vunpack.c.l.b16 %v4105
        %v4180 = vunpack.c.l.b16 %v4106
        %v4181 = vunpack.c.h.b16 %v4105
        %v4182 = vunpack.c.h.b16 %v4106
        %v4183 = vunpack.c.l.b16 %v4107
        %v4184 = vunpack.c.l.b16 %v4108
        %v4185 = vunpack.c.h.b16 %v4107
        %v4186 = vunpack.c.h.b16 %v4108
        %v4187 = vunpack.c.l.b16 %v4109
        %v4188 = vunpack.c.l.b16 %v4110
        %v4189 = vunpack.c.h.b16 %v4109
        %v4190 = vunpack.c.h.b16 %v4110
        %v4191 = vunpack.c.l.b16 %v4111
        %v4192 = vunpack.c.l.b16 %v4112
        %v4193 = vunpack.c.h.b16 %v4111
        %v4194 = vunpack.c.h.b16 %v4112
        %v4195 = vunpack.c.l.b16 %v4113
        %v4196 = vunpack.c.l.b16 %v4114
        %v4197 = vunpack.c.h.b16 %v4113
        %v4198 = vunpack.c.h.b16 %v4114
        %v4199 = vunpack.c.l.b16 %v4115
        %v4200 = vunpack.c.l.b16 %v4116
        %v4201 = vunpack.c.h.b16 %v4115
        %v4202 = vunpack.c.h.b16 %v4116
        %v4203 = vunpack.c.l.b16 %v4117
        %v4204 = vunpack.c.l.b16 %v4118
        %v4205 = vunpack.c.h.b16 %v4117
        %v4206 = vunpack.c.h.b16 %v4118
        %v4207 = vunpack.c.l.b16 %v4119
        %v4208 = vunpack.c.l.b16 %v4120
        %v4209 = vunpack.c.h.b16 %v4119
        %v4210 = vunpack.c.h.b16 %v4120
        %v4211 = vunpack.c.l.b16 %v4121
        %v4212 = vunpack.c.l.b16 %v4122
        %v4213 = vunpack.c.h.b16 %v4121
        %v4214 = vunpack.c.h.b16 %v4122
        %v4215 = vunpack.c.l.b16 %v4123
        %v4216 = vunpack.c.l.b16 %v4124
        %v4217 = vunpack.c.h.b16 %v4123
        %v4218 = vunpack.c.h.b16 %v4124
        %v4219 = vunpack.c.l.b16 %v4125
        %v4220 = vunpack.c.l.b16 %v4126
        %v4221 = vunpack.c.h.b16 %v4125
        %v4222 = vunpack.c.h.b16 %v4126
        %v4223 = vpack.c.b16 %v4160, %v4159
        %v4224 = vpack.c.b16 %v4162, %v4161
        %v4225 = vpack.c.b16 %v4164, %v4163
        %v4226 = vpack.c.b16 %v4166, %v4165
        %v4227 = vpack.c.b16 %v4168, %v4167
        %v4228 = vpack.c.b16 %v4170, %v4169
        %v4229 = vpack.c.b16 %v4172, %v4171
        %v4230 = vpack.c.b16 %v4174, %v4173
        %v4231 = vpack.c.b16 %v4176, %v4175
        %v4232 = vpack.c.b16 %v4178, %v4177
        %v4233 = vpack.c.b16 %v4180, %v4179
        %v4234 = vpack.c.b16 %v4182, %v4181
        %v4235 = vpack.c.b16 %v4184, %v4183
        %v4236 = vpack.c.b16 %v4186, %v4185
        %v4237 = vpack.c.b16 %v4188, %v4187
        %v4238 = vpack.c.b16 %v4190, %v4189
        %v4239 = vpack.c.b16 %v4192, %v4191
        %v4240 = vpack.c.b16 %v4194, %v4193
        %v4241 = vpack.c.b16 %v4196, %v4195
        %v4242 = vpack.c.b16 %v4198, %v4197
        %v4243 = vpack.c.b16 %v4200, %v4199
        %v4244 = vpack.c.b16 %v4202, %v4201
        %v4245 = vpack.c.b16 %v4204, %v4203
        %v4246 = vpack.c.b16 %v4206, %v4205
        %v4247 = vpack.c.b16 %v4208, %v4207
        %v4248 = vpack.c.b16 %v4210, %v4209
        %v4249 = vpack.c.b16 %v4212, %v4211
        %v4250 = vpack.c.b16 %v4214, %v4213
        %v4251 = vpack.c.b16 %v4216, %v4215
        %v4252 = vpack.c.b16 %v4218, %v4217
        %v4253 = vpack.c.b16 %v4220, %v4219
        %v4254 = vpack.c.b16 %v4222, %v4221
        %4287 = vst [vmem:[%s326] sm:$0xff] %v4223
        %4288 = vst [vmem:[%s326 + $0x8] sm:$0xff] %v4224
        %4289 = vst [vmem:[%s326 + $0x10] sm:$0xff] %v4225
        %4290 = vst [vmem:[%s326 + $0x18] sm:$0xff] %v4226
        %4291 = vst [vmem:[%s326 + $0x20] sm:$0xff] %v4227
        %4292 = vst [vmem:[%s326 + $0x28] sm:$0xff] %v4228
        %4293 = vst [vmem:[%s326 + $0x30] sm:$0xff] %v4229
        %4294 = vst [vmem:[%s326 + $0x38] sm:$0xff] %v4230
        %4295 = vst [vmem:[%s326 + $0x40] sm:$0xff] %v4231
        %4296 = vst [vmem:[%s326 + $0x48] sm:$0xff] %v4232
        %4297 = vst [vmem:[%s326 + $0x50] sm:$0xff] %v4233
        %4298 = vst [vmem:[%s326 + $0x58] sm:$0xff] %v4234
        %4299 = vst [vmem:[%s326 + $0x60] sm:$0xff] %v4235
        %4300 = vst [vmem:[%s326 + $0x68] sm:$0xff] %v4236
        %4301 = vst [vmem:[%s326 + $0x70] sm:$0xff] %v4237
        %4302 = vst [vmem:[%s326 + $0x78] sm:$0xff] %v4238
        %4303 = vst [vmem:[%s326 + $0x80] sm:$0xff] %v4239
        %4304 = vst [vmem:[%s326 + $0x88] sm:$0xff] %v4240
        %4305 = vst [vmem:[%s326 + $0x90] sm:$0xff] %v4241
        %4306 = vst [vmem:[%s326 + $0x98] sm:$0xff] %v4242
        %4307 = vst [vmem:[%s326 + $0xa0] sm:$0xff] %v4243
        %4308 = vst [vmem:[%s326 + $0xa8] sm:$0xff] %v4244
        %4309 = vst [vmem:[%s326 + $0xb0] sm:$0xff] %v4245
        %4310 = vst [vmem:[%s326 + $0xb8] sm:$0xff] %v4246
        %4311 = vst [vmem:[%s326 + $0xc0] sm:$0xff] %v4247
        %4312 = vst [vmem:[%s326 + $0xc8] sm:$0xff] %v4248
        %4313 = vst [vmem:[%s326 + $0xd0] sm:$0xff] %v4249
        %4314 = vst [vmem:[%s326 + $0xd8] sm:$0xff] %v4250
        %4315 = vst [vmem:[%s326 + $0xe0] sm:$0xff] %v4251
        %4316 = vst [vmem:[%s326 + $0xe8] sm:$0xff] %v4252
        %4317 = vst [vmem:[%s326 + $0xf0] sm:$0xff] %v4253
        %4318 = vst [vmem:[%s326 + $0xf8] sm:$0xff] %v4254
        %s4319 = sand.u32 %s164, 1
        %s4320 = scalar_lea.sflag [#allocation4], %s4319
        %s4321 = sand.u32 %s164, 1
        %s4322 = smul.addr %s4321, 256
        %s4323 = scalar_lea.vmem [#allocation11], %s4322
        // Predicated region
        $region65: #{tpu_custom_call.1} parent=43 // pred_check
          %p4324 = pneg %p174
        $region66: #{tpu_custom_call.1} parent=43 // pred_check_branch
          %4326 = sbr.rel (%p4324) target = $region68
        $region67: #{tpu_custom_call.1} parent=43 // pred_region
          %s4327 = smul.u32 32, %s25
          %s4329 = ssub.s32 4096, 4096
          %4330 = vsyncadd %s4320, %s4329
          %s4331 = smul.addr %s4327, 2
          %s4332 = smul.addr %s4331, 64
          %s4333 = scalar_lea.hbm %s6, %s4332
          %s4334 = sshll.u32 %s4323, 4
          %s4335 = int_to_ptr.vmem [resolvable:$true] %s4334
          %4340 = dma.vmem_to_hbm [thread:$0]  %s4335, 4096, %s4333, %s4320, 128, 128, 8
        $region68: #{tpu_custom_call.1} parent=43 // pred_fallthru
          _
      $region44: #{tpu_custom_call.1} parent=5 // pred_fallthru
        _
      %p4341 = scmp.le.s32.totalorder 2, %s20
      // Predicated region
      $region69: #{tpu_custom_call.1} parent=5 // pred_check
        %p4342 = pneg %p4341
      $region70: #{tpu_custom_call.1} parent=5 // pred_check_branch
        %4344 = sbr.rel (%p4342) target = $region72
      $region71: #{tpu_custom_call.1} parent=5 // pred_region
        %s4345 = ssub.s32 %s20, 2
        // Predicated region
        $region73: #{tpu_custom_call.1} parent=71 // pred_check
          %p4346 = pneg %p180
        $region74: #{tpu_custom_call.1} parent=71 // pred_check_branch
          %4348 = sbr.rel (%p4346) target = $region76
        $region75: #{tpu_custom_call.1} parent=71 // pred_region
          %s4349 = sand.u32 %s165, 1
          %s4350 = scalar_lea.sflag [#allocation4], %s4349
          %s4351 = sand.u32 %s165, 1
          %s4352 = smul.addr %s4351, 256
          %s4353 = scalar_lea.vmem [#allocation11], %s4352
          %4354 = dma.done %s4350, 4096
        $region76: #{tpu_custom_call.1} parent=71 // pred_fallthru
          _
      $region72: #{tpu_custom_call.1} parent=5 // pred_fallthru
        _
    $region6: #{tpu_custom_call.1} parent=1 // loop_footer
      %s24 = sadd.s32 1, %s20
    $region7: #{tpu_custom_call.1} parent=1 // loop_footer_branch
      %19 = sbr.rel target = $region3
    $region8: #{tpu_custom_call.1} parent=1 // loop_exit
      _
    %4355 = vsyncpa [#allocation3], 1
    %s4356 = scalar_lea.sflag [#allocation3], 1
    %4357 = vsyncpa %s4356, 1
    %4358 = vsyncpa [#allocation6], 1
    %4359 = vsyncpa [#allocation9], 1
    %4360 = vsyncpa [#allocation4], 1
    %s4361 = scalar_lea.sflag [#allocation4], 1
    %4362 = vsyncpa %s4361, 1

</llo_original>
